<compile_context>
chip_gen: v6e
topology: v6e:2x2x1
jax: 0.10.0
libtpu: 0.0.40
codegen_flags: <defaults>
</compile_context>

<pallas_src>
import math
import jax
import jax.numpy as jnp
from jax.experimental import pallas as pl
from jax.experimental.pallas import tpu as pltpu

INPUT_SIZE = 606
HIDDEN_SIZE = 200
H1 = HIDDEN_SIZE * 2      # 400 (true)
H2 = HIDDEN_SIZE          # 200 (true)
H1P = 512                 # 400 padded to a lane multiple
H2P = 256                 # 200 padded to a lane multiple


def mlp_kernel(x_ref, w1_ref, b1_ref, w2_ref, b2_ref, w3_ref, b3_ref, o_ref):
    # fc1 + relu: cast the f32 x tile to bf16 in VMEM, MXU matmul, f32 accumulate.
    x = x_ref[...].astype(jnp.bfloat16)                      # (tb, 606)
    h1 = jnp.dot(x, w1_ref[...], preferred_element_type=jnp.float32)
    h1 = jnp.maximum(h1 + b1_ref[...], 0.0)                  # (tb, 512) f32
    # fc2 + relu
    h2 = jnp.dot(h1.astype(jnp.bfloat16), w2_ref[...],
                 preferred_element_type=jnp.float32)
    h2 = jnp.maximum(h2 + b2_ref[...], 0.0)                  # (tb, 256) f32
    # fc3 (N=1): keep it off the MXU — f32 VPU multiply + cross-lane (XLU) reduce.
    out = jnp.sum(h2 * w3_ref[...], axis=-1, keepdims=True) + b3_ref[...]
    o_ref[...] = out.astype(o_ref.dtype)                     # (tb, 1)


def _choose_tile(batch):
    """Pick (tile_rows, pad_rows).  Prefer large tiles that divide B exactly
    (no batch pad copy) while keeping >= 2 grid steps so v7x's two TensorCores
    both get work on the 'parallel' axis."""
    for tb in (1024, 512, 256):
        if batch % tb == 0 and batch // tb >= 2:
            return tb, 0
    if batch <= 1024:
        tb = max(8, ((batch + 7) // 8) * 8)     # single tile, sublane-aligned
        return tb, tb - batch
    # Large, awkward batch: pad up to a multiple of 1024 (one extra copy of x,
    # only taken when no clean divisor exists).
    tb = 1024
    return tb, (-batch) % tb


def neural_net_forward(x, params):
    """x: (B, INPUT_SIZE) float32 -> (B, 1) float32. `params` from prepare_params."""
    w1, b1, w2, b2, w3, b3 = params
    B, K = x.shape
    assert K == INPUT_SIZE

    tb, pad = _choose_tile(B)
    x_in = jnp.pad(x, ((0, pad), (0, 0))) if pad else x
    b_total = B + pad
    num_tiles = b_total // tb

    def pinned(arr):
        # Whole-array block with a constant index_map: DMA'd once, then
        # VMEM-resident (the pipeline skips re-fetching unchanged blocks).
        return pl.BlockSpec(arr.shape, lambda i: (0,) * arr.ndim)

    flops = 2 * b_total * (INPUT_SIZE * H1P + H1P * H2P + H2P)
    bytes_accessed = (x_in.size * 4 + w1.size * 2 + w2.size * 2
                      + (b1.size + b2.size + w3.size + b3.size) * 4
                      + b_total * 4)

    out = pl.pallas_call(
        mlp_kernel,
        out_shape=jax.ShapeDtypeStruct((b_total, 1), jnp.float32),
        grid=(num_tiles,),
        in_specs=[
            pl.BlockSpec((tb, INPUT_SIZE), lambda i: (i, 0)),  # x tile (pipelined)
            pinned(w1), pinned(b1),
            pinned(w2), pinned(b2),
            pinned(w3), pinned(b3),
        ],
        out_specs=pl.BlockSpec((tb, 1), lambda i: (i, 0)),
        compiler_params=pltpu.CompilerParams(
            dimension_semantics=("parallel",),   # shard batch tiles across TCs on v7x
            vmem_limit_bytes=32 << 20,           # headroom for tb=1024 double-buffering
        ),
        cost_estimate=pl.CostEstimate(
            flops=flops, transcendentals=0, bytes_accessed=bytes_accessed),
    )(x_in, w1, b1, w2, b2, w3, b3)
    return out[:B] if pad else out


def init_params(key, input_size, hidden_size):
    """Deterministic init mimicking torch.nn.Linear's U(-1/sqrt(fan_in), 1/sqrt(fan_in)).
    Weights are stored as (in, out) so the forward is x @ W + b."""
    dims = [(input_size, hidden_size * 2),
            (hidden_size * 2, hidden_size),
            (hidden_size, 1)]
    params = []
    for (fan_in, fan_out) in dims:
        key, kw, kb = jax.random.split(key, 3)
        bound = 1.0 / math.sqrt(fan_in)
        w = jax.random.uniform(kw, (fan_in, fan_out), jnp.float32, -bound, bound)
        b = jax.random.uniform(kb, (1, fan_out), jnp.float32, -bound, bound)
        params.extend([w, b])
    return tuple(params)


def prepare_params(params):
    """Convert f32 (in, out) params to the kernel layout: hidden dims zero-padded
    to lane multiples (400->512, 200->256), big matrices cast to bf16, biases and
    the tiny fc3 weight kept f32 (fc3 runs on the VPU/XLU as a (1, 256) row)."""
    w1, b1, w2, b2, w3, b3 = params
    w1p = jnp.pad(w1, ((0, 0), (0, H1P - w1.shape[1]))).astype(jnp.bfloat16)   # (606, 512)
    b1p = jnp.pad(b1, ((0, 0), (0, H1P - b1.shape[1]))).astype(jnp.float32)    # (1, 512)
    w2p = jnp.pad(w2, ((0, H1P - w2.shape[0]),
                       (0, H2P - w2.shape[1]))).astype(jnp.bfloat16)           # (512, 256)
    b2p = jnp.pad(b2, ((0, 0), (0, H2P - b2.shape[1]))).astype(jnp.float32)    # (1, 256)
    w3p = jnp.pad(w3.reshape(1, -1),
                  ((0, 0), (0, H2P - w3.shape[0]))).astype(jnp.float32)        # (1, 256)
    return (w1p, b1p, w2p, b2p, w3p, b3.astype(jnp.float32))


def reference_forward(x, params):
    w1, b1, w2, b2, w3, b3 = params
    h1 = jnp.maximum(x @ w1 + b1, 0.0)
    h2 = jnp.maximum(h1 @ w2 + b2, 0.0)
    return h2 @ w3 + b3


if __name__ == "__main__":
    key = jax.random.PRNGKey(0)
    key, kx = jax.random.split(key)
    B = 1024  # exercises the multi-tile path (2 tiles of 512), no batch padding
    x = jax.random.normal(kx, (B, INPUT_SIZE), jnp.float32)
    params = init_params(key, INPUT_SIZE, HIDDEN_SIZE)
    kernel_params = prepare_params(params)

    out = neural_net_forward(x, kernel_params)
    out = jax.block_until_ready(out)

    ref = reference_forward(x, params)
    assert out.shape == (B, 1)
    # bf16 inputs/weights (f32 accumulation) -> slightly looser tolerance than pure f32.
    assert jnp.allclose(out, ref, atol=2e-2, rtol=2e-2), float(
        jnp.max(jnp.abs(out - ref)))

    print("KERNEL_OK")
</pallas_src>

<mosaic_0001>
module attributes {stable_mosaic.version = 11 : i64} {
  func.func @mlp_kernel(%arg0: i32, %arg1: memref<512x606xf32, #tpu.memory_space<vmem>>, %arg2: memref<606x512xbf16, #tpu.memory_space<vmem>>, %arg3: memref<1x512xf32, #tpu.memory_space<vmem>>, %arg4: memref<512x256xbf16, #tpu.memory_space<vmem>>, %arg5: memref<1x256xf32, #tpu.memory_space<vmem>>, %arg6: memref<1x256xf32, #tpu.memory_space<vmem>>, %arg7: memref<1x1xf32, #tpu.memory_space<vmem>>, %arg8: memref<512x1xf32, #tpu.memory_space<vmem>>) attributes {dimension_semantics = [#tpu.dimension_semantics<parallel>], iteration_bounds = array<i64: 2>, scalar_prefetch = 0 : i64, scratch_operands = 0 : i64, tpu.core_type = #tpu.core_type<tc>, window_params = [{transform_indices = @transform_0, window_bounds = array<i64: 512, 606>}, {pipeline_mode = #tpu.pipeline_mode<synchronous>, transform_indices = @transform_1, window_bounds = array<i64: 606, 512>}, {pipeline_mode = #tpu.pipeline_mode<synchronous>, transform_indices = @transform_2, window_bounds = array<i64: 1, 512>}, {pipeline_mode = #tpu.pipeline_mode<synchronous>, transform_indices = @transform_3, window_bounds = array<i64: 512, 256>}, {pipeline_mode = #tpu.pipeline_mode<synchronous>, transform_indices = @transform_4, window_bounds = array<i64: 1, 256>}, {pipeline_mode = #tpu.pipeline_mode<synchronous>, transform_indices = @transform_5, window_bounds = array<i64: 1, 256>}, {pipeline_mode = #tpu.pipeline_mode<synchronous>, transform_indices = @transform_6, window_bounds = array<i64: 1, 1>}, {transform_indices = @transform_7, window_bounds = array<i64: 512, 1>}]} {
    %c0 = arith.constant 0 : index
    %c0_0 = arith.constant 0 : index
    %0 = vector.load %arg1[%c0, %c0_0] : memref<512x606xf32, #tpu.memory_space<vmem>>, vector<512x606xf32>
    %1 = arith.truncf %0 : vector<512x606xf32> to vector<512x606xbf16>
    %c0_1 = arith.constant 0 : index
    %c0_2 = arith.constant 0 : index
    %2 = vector.load %arg2[%c0_1, %c0_2] : memref<606x512xbf16, #tpu.memory_space<vmem>>, vector<606x512xbf16>
    %cst = arith.constant dense<0.000000e+00> : vector<512x512xf32>
    %3 = tpu.matmul %1, %2, %cst {dimension_numbers = #tpu.dot_dimension_numbers<[1], [0], [0], [1], [0, 0, 1, 1], [], []>} : vector<512x606xbf16>, vector<606x512xbf16>, vector<512x512xf32> -> vector<512x512xf32>
    %c0_3 = arith.constant 0 : index
    %c0_4 = arith.constant 0 : index
    %4 = vector.load %arg3[%c0_3, %c0_4] : memref<1x512xf32, #tpu.memory_space<vmem>>, vector<1x512xf32>
    %5 = vector.broadcast %4 : vector<1x512xf32> to vector<512x512xf32>
    %6 = arith.addf %3, %5 : vector<512x512xf32>
    %cst_5 = arith.constant 0.000000e+00 : f32
    %7 = vector.broadcast %cst_5 : f32 to vector<512x512xf32>
    %8 = arith.maximumf %6, %7 : vector<512x512xf32>
    %9 = arith.truncf %8 : vector<512x512xf32> to vector<512x512xbf16>
    %c0_6 = arith.constant 0 : index
    %c0_7 = arith.constant 0 : index
    %10 = vector.load %arg4[%c0_6, %c0_7] : memref<512x256xbf16, #tpu.memory_space<vmem>>, vector<512x256xbf16>
    %cst_8 = arith.constant dense<0.000000e+00> : vector<512x256xf32>
    %11 = tpu.matmul %9, %10, %cst_8 {dimension_numbers = #tpu.dot_dimension_numbers<[1], [0], [0], [1], [0, 0, 1, 1], [], []>} : vector<512x512xbf16>, vector<512x256xbf16>, vector<512x256xf32> -> vector<512x256xf32>
    %c0_9 = arith.constant 0 : index
    %c0_10 = arith.constant 0 : index
    %12 = vector.load %arg5[%c0_9, %c0_10] : memref<1x256xf32, #tpu.memory_space<vmem>>, vector<1x256xf32>
    %13 = vector.broadcast %12 : vector<1x256xf32> to vector<512x256xf32>
    %14 = arith.addf %11, %13 : vector<512x256xf32>
    %cst_11 = arith.constant 0.000000e+00 : f32
    %15 = vector.broadcast %cst_11 : f32 to vector<512x256xf32>
    %16 = arith.maximumf %14, %15 : vector<512x256xf32>
    %c0_12 = arith.constant 0 : index
    %c0_13 = arith.constant 0 : index
    %17 = vector.load %arg6[%c0_12, %c0_13] : memref<1x256xf32, #tpu.memory_space<vmem>>, vector<1x256xf32>
    %18 = vector.broadcast %17 : vector<1x256xf32> to vector<512x256xf32>
    %19 = arith.mulf %16, %18 : vector<512x256xf32>
    %cst_14 = arith.constant dense<0.000000e+00> : vector<512xf32>
    %20 = vector.multi_reduction <add>, %19, %cst_14 [1] : vector<512x256xf32> to vector<512xf32>
    %21 = vector.shape_cast %20 : vector<512xf32> to vector<512x1xf32>
    %c0_15 = arith.constant 0 : index
    %c0_16 = arith.constant 0 : index
    %22 = vector.load %arg7[%c0_15, %c0_16] : memref<1x1xf32, #tpu.memory_space<vmem>>, vector<1x1xf32>
    %23 = vector.broadcast %22 : vector<1x1xf32> to vector<512x1xf32>
    %24 = arith.addf %21, %23 : vector<512x1xf32>
    %c0_17 = arith.constant 0 : index
    %c0_18 = arith.constant 0 : index
    %25 = vector.load %arg8[%c0_17, %c0_18] : memref<512x1xf32, #tpu.memory_space<vmem>>, vector<512x1xf32>
    tpu.vector_store %arg8[%c0_17, %c0_18], %24 {strides = array<i32>} : memref<512x1xf32, #tpu.memory_space<vmem>>, vector<512x1xf32>,
    return
  }
  func.func @transform_0(%arg0: i32) -> (i32, i32) {
    %c0_i32 = arith.constant 0 : i32
    %c0_i32_0 = arith.constant 0 : i32
    return %arg0, %c0_i32 : i32, i32
  }
  func.func @transform_1(%arg0: i32) -> (i32, i32) {
    %c0_i32 = arith.constant 0 : i32
    %c0_i32_0 = arith.constant 0 : i32
    %c0_i32_1 = arith.constant 0 : i32
    return %c0_i32, %c0_i32_0 : i32, i32
  }
  func.func @transform_2(%arg0: i32) -> (i32, i32) {
    %c0_i32 = arith.constant 0 : i32
    %c0_i32_0 = arith.constant 0 : i32
    %c0_i32_1 = arith.constant 0 : i32
    return %c0_i32, %c0_i32_0 : i32, i32
  }
  func.func @transform_3(%arg0: i32) -> (i32, i32) {
    %c0_i32 = arith.constant 0 : i32
    %c0_i32_0 = arith.constant 0 : i32
    %c0_i32_1 = arith.constant 0 : i32
    return %c0_i32, %c0_i32_0 : i32, i32
  }
  func.func @transform_4(%arg0: i32) -> (i32, i32) {
    %c0_i32 = arith.constant 0 : i32
    %c0_i32_0 = arith.constant 0 : i32
    %c0_i32_1 = arith.constant 0 : i32
    return %c0_i32, %c0_i32_0 : i32, i32
  }
  func.func @transform_5(%arg0: i32) -> (i32, i32) {
    %c0_i32 = arith.constant 0 : i32
    %c0_i32_0 = arith.constant 0 : i32
    %c0_i32_1 = arith.constant 0 : i32
    return %c0_i32, %c0_i32_0 : i32, i32
  }
  func.func @transform_6(%arg0: i32) -> (i32, i32) {
    %c0_i32 = arith.constant 0 : i32
    %c0_i32_0 = arith.constant 0 : i32
    %c0_i32_1 = arith.constant 0 : i32
    return %c0_i32, %c0_i32_0 : i32, i32
  }
  func.func @transform_7(%arg0: i32) -> (i32, i32) {
    %c0_i32 = arith.constant 0 : i32
    %c0_i32_0 = arith.constant 0 : i32
    return %arg0, %c0_i32 : i32, i32
  }
}

</mosaic_0001>

<llo_original>
// kernel: tpu_custom_call.1
$region0: #{tpu_custom_call.1}
  #allocation0 [shape = 'u32[]', space=smem, size = 0x4, offset = 0x4, fixed_abs, tag = 'smem constant byte address 0x4 - core index']
  #allocation1 [shape = 'u32[144,128]{1,0:T(1,128)}', space=vmem, size = 0x12000, scoped, tag = 'internal scratch']
  #allocation2 [shape = 'f32[1,1]{1,0:T(1,128)S(1)}', space=vmem, size = 0x200, scoped, tag = 'scoped memory for tpu_custom_call.1']
  %s0 = inlined_call_operand.vmem [shape: f32[1024,606], index: 0, kind: input, shape index: {}]
  %s1 = inlined_call_operand.vmem [shape: bf16[606,512], index: 1, kind: input, shape index: {}]
  %s2 = inlined_call_operand.vmem [shape: f32[1,512], index: 2, kind: input, shape index: {}]
  %s3 = inlined_call_operand.vmem [shape: bf16[512,256], index: 3, kind: input, shape index: {}]
  %s4 = inlined_call_operand.vmem [shape: f32[1,256], index: 4, kind: input, shape index: {}]
  %s5 = inlined_call_operand.vmem [shape: f32[1,256], index: 5, kind: input, shape index: {}]
  %s6 = inlined_call_operand.<no memory space> [shape: f32[1,1], index: 6, kind: input, shape index: {}]
  %s7 = inlined_call_operand.vmem [shape: f32[1024,1], index: 7, kind: output, shape index: {}]
  %s8 = sld [smem:[#allocation0]]
  $region61: #{tpu_custom_call.1} parent=0
    _
  %s10 = ssub.s32 1, %s8
  %s11 = scalar_select 0, %s10, %s8
  %v12 = vstv %s6
  %13 = vst [vmem:[#allocation2] sm:$0x1] %v12
  loop: start=0, step=1, limit=4
  $region2: #{tpu_custom_call.1} parent=0 // loop_pre_header
    _
  $region3: #{tpu_custom_call.1} parent=0 // loop_header
    %s15 = sphi 0, %s19
    %p16 = scmp.ge.s32.totalorder %s15, 4
    %s25 = sphi 0, %s27
    %s28 = sphi 0, %s25
    %s29 = sphi 0, %s28
    %s45 = sphi 0, %s29
    %s49 = sphi 0, %s49
    %s51 = sphi 0, %s49
    %s52 = sphi 0, %s51
    %s66 = sphi 0, %s52
    %s70 = sphi 0, %s70
    %s72 = sphi 0, %s70
    %s73 = sphi 0, %s72
    %s87 = sphi 0, %s73
    %s91 = sphi 0, %s91
    %s93 = sphi 0, %s91
    %s94 = sphi 0, %s93
    %s108 = sphi 0, %s94
    %s112 = sphi 0, %s112
    %s114 = sphi 0, %s112
    %s115 = sphi 0, %s114
    %s129 = sphi 0, %s115
    %s133 = sphi 0, %s133
    %s135 = sphi 0, %s133
    %s136 = sphi 0, %s135
    %s150 = sphi 0, %s136
    %s154 = sphi 0, %s154
    %s156 = sphi 0, %s154
    %s157 = sphi 0, %s156
    %s171 = sphi 0, %s157
    %s177 = sphi 0, %s179
    %s180 = sphi 0, %s177
    %s181 = sphi 0, %s180
    %s197 = sphi 0, %s181
  $region4: #{tpu_custom_call.1} parent=0 // loop_header_branch
    %18 = sbr.rel (%p16) target = $region8
  $region5: #{tpu_custom_call.1} parent=0 // loop_body
    %s20 = ssub.s32 %s15, 1
    %s21 = ssub.s32 %s15, 2
    %s22 = sadd.s32 %s15, 1
    %s23 = ssub.s32 %s15, %s22
    %p24 = scmp.eq.s32.totalorder %s23, 0
    %s26 = sadd.s32 %s25, 1
    %s27 = scalar_select %p24, %s25, %s26
    %p30 = pneg %p24
    %p31 = scmp.eq.s32.totalorder %s15, 1
    %p32 = por %p30, %p31
    %p33 = scmp.ne.s32.totalorder %s25, %s28
    %p34 = scmp.eq.s32.totalorder %s15, 0
    %p35 = por %p33, %p34
    %p36 = scmp.ne.s32.totalorder %s25, %s28
    %p37 = scmp.eq.s32.totalorder %s20, 1
    %p38 = por %p36, %p37
    %p39 = scmp.ne.s32.totalorder %s28, %s29
    %p40 = scmp.eq.s32.totalorder %s20, 0
    %p41 = por %p39, %p40
    %p42 = scmp.ne.s32.totalorder %s28, %s29
    %p43 = scmp.eq.s32.totalorder %s21, 1
    %p44 = por %p42, %p43
    %p46 = scmp.ne.s32.totalorder %s29, %s45
    %p47 = scmp.eq.s32.totalorder %s21, 0
    %p48 = por %p46, %p47
    %s50 = sadd.s32 %s49, 1
    %p53 = scmp.eq.s32.totalorder %s15, 1
    %p54 = scmp.ne.s32.totalorder %s49, %s51
    %p55 = scmp.eq.s32.totalorder %s15, 0
    %p56 = por %p54, %p55
    %p57 = scmp.ne.s32.totalorder %s49, %s51
    %p58 = scmp.eq.s32.totalorder %s20, 1
    %p59 = por %p57, %p58
    %p60 = scmp.ne.s32.totalorder %s51, %s52
    %p61 = scmp.eq.s32.totalorder %s20, 0
    %p62 = por %p60, %p61
    %p63 = scmp.ne.s32.totalorder %s51, %s52
    %p64 = scmp.eq.s32.totalorder %s21, 1
    %p65 = por %p63, %p64
    %p67 = scmp.ne.s32.totalorder %s52, %s66
    %p68 = scmp.eq.s32.totalorder %s21, 0
    %p69 = por %p67, %p68
    %s71 = sadd.s32 %s70, 1
    %p74 = scmp.eq.s32.totalorder %s15, 1
    %p75 = scmp.ne.s32.totalorder %s70, %s72
    %p76 = scmp.eq.s32.totalorder %s15, 0
    %p77 = por %p75, %p76
    %p78 = scmp.ne.s32.totalorder %s70, %s72
    %p79 = scmp.eq.s32.totalorder %s20, 1
    %p80 = por %p78, %p79
    %p81 = scmp.ne.s32.totalorder %s72, %s73
    %p82 = scmp.eq.s32.totalorder %s20, 0
    %p83 = por %p81, %p82
    %p84 = scmp.ne.s32.totalorder %s72, %s73
    %p85 = scmp.eq.s32.totalorder %s21, 1
    %p86 = por %p84, %p85
    %p88 = scmp.ne.s32.totalorder %s73, %s87
    %p89 = scmp.eq.s32.totalorder %s21, 0
    %p90 = por %p88, %p89
    %s92 = sadd.s32 %s91, 1
    %p95 = scmp.eq.s32.totalorder %s15, 1
    %p96 = scmp.ne.s32.totalorder %s91, %s93
    %p97 = scmp.eq.s32.totalorder %s15, 0
    %p98 = por %p96, %p97
    %p99 = scmp.ne.s32.totalorder %s91, %s93
    %p100 = scmp.eq.s32.totalorder %s20, 1
    %p101 = por %p99, %p100
    %p102 = scmp.ne.s32.totalorder %s93, %s94
    %p103 = scmp.eq.s32.totalorder %s20, 0
    %p104 = por %p102, %p103
    %p105 = scmp.ne.s32.totalorder %s93, %s94
    %p106 = scmp.eq.s32.totalorder %s21, 1
    %p107 = por %p105, %p106
    %p109 = scmp.ne.s32.totalorder %s94, %s108
    %p110 = scmp.eq.s32.totalorder %s21, 0
    %p111 = por %p109, %p110
    %s113 = sadd.s32 %s112, 1
    %p116 = scmp.eq.s32.totalorder %s15, 1
    %p117 = scmp.ne.s32.totalorder %s112, %s114
    %p118 = scmp.eq.s32.totalorder %s15, 0
    %p119 = por %p117, %p118
    %p120 = scmp.ne.s32.totalorder %s112, %s114
    %p121 = scmp.eq.s32.totalorder %s20, 1
    %p122 = por %p120, %p121
    %p123 = scmp.ne.s32.totalorder %s114, %s115
    %p124 = scmp.eq.s32.totalorder %s20, 0
    %p125 = por %p123, %p124
    %p126 = scmp.ne.s32.totalorder %s114, %s115
    %p127 = scmp.eq.s32.totalorder %s21, 1
    %p128 = por %p126, %p127
    %p130 = scmp.ne.s32.totalorder %s115, %s129
    %p131 = scmp.eq.s32.totalorder %s21, 0
    %p132 = por %p130, %p131
    %s134 = sadd.s32 %s133, 1
    %p137 = scmp.eq.s32.totalorder %s15, 1
    %p138 = scmp.ne.s32.totalorder %s133, %s135
    %p139 = scmp.eq.s32.totalorder %s15, 0
    %p140 = por %p138, %p139
    %p141 = scmp.ne.s32.totalorder %s133, %s135
    %p142 = scmp.eq.s32.totalorder %s20, 1
    %p143 = por %p141, %p142
    %p144 = scmp.ne.s32.totalorder %s135, %s136
    %p145 = scmp.eq.s32.totalorder %s20, 0
    %p146 = por %p144, %p145
    %p147 = scmp.ne.s32.totalorder %s135, %s136
    %p148 = scmp.eq.s32.totalorder %s21, 1
    %p149 = por %p147, %p148
    %p151 = scmp.ne.s32.totalorder %s136, %s150
    %p152 = scmp.eq.s32.totalorder %s21, 0
    %p153 = por %p151, %p152
    %s155 = sadd.s32 %s154, 1
    %p158 = scmp.eq.s32.totalorder %s15, 1
    %p159 = scmp.ne.s32.totalorder %s154, %s156
    %p160 = scmp.eq.s32.totalorder %s15, 0
    %p161 = por %p159, %p160
    %p162 = scmp.ne.s32.totalorder %s154, %s156
    %p163 = scmp.eq.s32.totalorder %s20, 1
    %p164 = por %p162, %p163
    %p165 = scmp.ne.s32.totalorder %s156, %s157
    %p166 = scmp.eq.s32.totalorder %s20, 0
    %p167 = por %p165, %p166
    %p168 = scmp.ne.s32.totalorder %s156, %s157
    %p169 = scmp.eq.s32.totalorder %s21, 1
    %p170 = por %p168, %p169
    %p172 = scmp.ne.s32.totalorder %s157, %s171
    %p173 = scmp.eq.s32.totalorder %s21, 0
    %p174 = por %p172, %p173
    %s175 = ssub.s32 %s15, %s22
    %p176 = scmp.eq.s32.totalorder %s175, 0
    %s178 = sadd.s32 %s177, 1
    %s179 = scalar_select %p176, %s177, %s178
    %p182 = pneg %p176
    %p183 = scmp.eq.s32.totalorder %s15, 1
    %p184 = por %p182, %p183
    %p185 = scmp.ne.s32.totalorder %s177, %s180
    %p186 = scmp.eq.s32.totalorder %s15, 0
    %p187 = por %p185, %p186
    %p188 = scmp.ne.s32.totalorder %s177, %s180
    %p189 = scmp.eq.s32.totalorder %s20, 1
    %p190 = por %p188, %p189
    %p191 = scmp.ne.s32.totalorder %s180, %s181
    %p192 = scmp.eq.s32.totalorder %s20, 0
    %p193 = por %p191, %p192
    %p194 = scmp.ne.s32.totalorder %s180, %s181
    %p195 = scmp.eq.s32.totalorder %s21, 1
    %p196 = por %p194, %p195
    %p198 = scmp.ne.s32.totalorder %s181, %s197
    %p199 = scmp.eq.s32.totalorder %s21, 0
    %p200 = por %p198, %p199
    %p201 = scmp.le.s32.totalorder 1, %s15
    %p202 = scmp.lt.s32.totalorder %s15, 3
    %p203 = pnand %p201, %p202
    %p204 = pneg %p203
    // Predicated region
    $region9: #{tpu_custom_call.1} parent=5 // pred_check
      _
    $region10: #{tpu_custom_call.1} parent=5 // pred_check_branch
      %206 = sbr.rel (%p203) target = $region12
    $region11: #{tpu_custom_call.1} parent=5 // pred_region
      %s207 = ssub.s32 %s15, 1
      // Predicated region
      $region13: #{tpu_custom_call.1} parent=11 // pred_check
        %p208 = pneg %p62
      $region14: #{tpu_custom_call.1} parent=11 // pred_check_branch
        %210 = sbr.rel (%p208) target = $region16
      $region15: #{tpu_custom_call.1} parent=11 // pred_region
        _
      $region16: #{tpu_custom_call.1} parent=11 // pred_fallthru
        _
      // Predicated region
      $region17: #{tpu_custom_call.1} parent=11 // pred_check
        %p211 = pneg %p83
      $region18: #{tpu_custom_call.1} parent=11 // pred_check_branch
        %213 = sbr.rel (%p211) target = $region20
      $region19: #{tpu_custom_call.1} parent=11 // pred_region
        _
      $region20: #{tpu_custom_call.1} parent=11 // pred_fallthru
        _
      // Predicated region
      $region21: #{tpu_custom_call.1} parent=11 // pred_check
        %p214 = pneg %p104
      $region22: #{tpu_custom_call.1} parent=11 // pred_check_branch
        %216 = sbr.rel (%p214) target = $region24
      $region23: #{tpu_custom_call.1} parent=11 // pred_region
        _
      $region24: #{tpu_custom_call.1} parent=11 // pred_fallthru
        _
      // Predicated region
      $region25: #{tpu_custom_call.1} parent=11 // pred_check
        %p217 = pneg %p125
      $region26: #{tpu_custom_call.1} parent=11 // pred_check_branch
        %219 = sbr.rel (%p217) target = $region28
      $region27: #{tpu_custom_call.1} parent=11 // pred_region
        _
      $region28: #{tpu_custom_call.1} parent=11 // pred_fallthru
        _
      // Predicated region
      $region29: #{tpu_custom_call.1} parent=11 // pred_check
        %p220 = pneg %p146
      $region30: #{tpu_custom_call.1} parent=11 // pred_check_branch
        %222 = sbr.rel (%p220) target = $region32
      $region31: #{tpu_custom_call.1} parent=11 // pred_region
        _
      $region32: #{tpu_custom_call.1} parent=11 // pred_fallthru
        _
      // Predicated region
      $region33: #{tpu_custom_call.1} parent=11 // pred_check
        %p223 = pneg %p167
      $region34: #{tpu_custom_call.1} parent=11 // pred_check_branch
        %225 = sbr.rel (%p223) target = $region36
      $region35: #{tpu_custom_call.1} parent=11 // pred_region
        _
      $region36: #{tpu_custom_call.1} parent=11 // pred_fallthru
        _
    $region12: #{tpu_custom_call.1} parent=5 // pred_fallthru
      _
    %p226 = scmp.lt.s32.totalorder %s15, 2
    // Predicated region
    $region37: #{tpu_custom_call.1} parent=5 // pred_check
      %p227 = pneg %p226
    $region38: #{tpu_custom_call.1} parent=5 // pred_check_branch
      %229 = sbr.rel (%p227) target = $region40
    $region39: #{tpu_custom_call.1} parent=5 // pred_region
      // Predicated region
      $region41: #{tpu_custom_call.1} parent=39 // pred_check
        %p230 = pneg %p35
      $region42: #{tpu_custom_call.1} parent=39 // pred_check_branch
        %232 = sbr.rel (%p230) target = $region44
      $region43: #{tpu_custom_call.1} parent=39 // pred_region
        %s233 = smul.u32 64, %s15
        %p234 = scmp.lt.s32.totalorder %s233, 127
        %s235 = scalar_select %p234, %s233, 127
        %s236 = smul.addr %s235, 5
        %s237 = smul.addr %s236, 8
        %s238 = scalar_lea.vmem %s0, %s237
        %s239 = smul.u32 64, %s15
      $region44: #{tpu_custom_call.1} parent=39 // pred_fallthru
        _
    $region40: #{tpu_custom_call.1} parent=5 // pred_fallthru
      _
    %p240 = scmp.le.s32.totalorder 1, %s15
    %p241 = scmp.lt.s32.totalorder %s15, 3
    %p242 = pnand %p240, %p241
    %p243 = pneg %p242
    // Predicated region
    $region45: #{tpu_custom_call.1} parent=5 // pred_check
      _
    $region46: #{tpu_custom_call.1} parent=5 // pred_check_branch
      %245 = sbr.rel (%p242) target = $region48
    $region47: #{tpu_custom_call.1} parent=5 // pred_region
      %s246 = ssub.s32 %s15, 1
      %s247 = smul.u32 64, %s20
      %p248 = scmp.lt.s32.totalorder %s247, 127
      %s249 = scalar_select %p248, %s247, 127
      %s250 = smul.addr %s249, 5
      %s251 = smul.addr %s250, 8
      %s252 = scalar_lea.vmem %s0, %s251
      %p253 = pneg %p41
      %p254 = pneg %p38
      %p255 = pneg %p62
      %p256 = pneg %p59
      %p257 = pneg %p83
      %p258 = pneg %p80
      %p259 = pneg %p104
      %p260 = pneg %p101
      %p261 = pneg %p125
      %p262 = pneg %p122
      %p263 = pneg %p146
      %p264 = pneg %p143
      %p265 = pneg %p167
      %p266 = pneg %p164
      %p267 = pneg %p193
      %p268 = pneg %p190
      %s269 = smul.u32 64, %s20
      %p270 = scmp.lt.s32.totalorder %s269, 127
      %s271 = scalar_select %p270, %s269, 127
      %s272 = smul.addr %s271, 8
      %s273 = scalar_lea.vmem %s7, %s272
      %s274 = smul.u32 64, %s20
      %p275 = scmp.lt.s32.totalorder %s274, 127
      %s276 = scalar_select %p275, %s274, 127
      %s277 = smul.addr %s276, 5
      %s278 = smul.addr %s277, 8
      %s279 = scalar_lea.vmem %s0, %s278
      %s280 = smul.u32 64, %s20
      %s281 = smul.u32 64, %s20
      %p282 = scmp.lt.s32.totalorder %s281, 127
      %s283 = scalar_select %p282, %s281, 127
      %s284 = smul.addr %s283, 8
      %s285 = scalar_lea.vmem %s7, %s284
      %s286 = smul.u32 64, %s20
      %v288 = vld [vmem:[%s279] sm:$0xff]
      %v289 = vld [vmem:[%s279 + $0x8] sm:$0xff]
      %v290 = vld [vmem:[%s279 + $0x10] sm:$0xff]
      %v291 = vld [vmem:[%s279 + $0x18] sm:$0xff]
      %v292 = vld [vmem:[%s279 + $0x20] sm:$0xff]
      %v293 = vld [vmem:[%s279 + $0x28] sm:$0xff]
      %v294 = vld [vmem:[%s279 + $0x30] sm:$0xff]
      %v295 = vld [vmem:[%s279 + $0x38] sm:$0xff]
      %v296 = vld [vmem:[%s279 + $0x40] sm:$0xff]
      %v297 = vld [vmem:[%s279 + $0x48] sm:$0xff]
      %v298 = vld [vmem:[%s279 + $0x50] sm:$0xff]
      %v299 = vld [vmem:[%s279 + $0x58] sm:$0xff]
      %v300 = vld [vmem:[%s279 + $0x60] sm:$0xff]
      %v301 = vld [vmem:[%s279 + $0x68] sm:$0xff]
      %v302 = vld [vmem:[%s279 + $0x70] sm:$0xff]
      %v303 = vld [vmem:[%s279 + $0x78] sm:$0xff]
      %v304 = vld [vmem:[%s279 + $0x80] sm:$0xff]
      %v305 = vld [vmem:[%s279 + $0x88] sm:$0xff]
      %v306 = vld [vmem:[%s279 + $0x90] sm:$0xff]
      %v307 = vld [vmem:[%s279 + $0x98] sm:$0xff]
      %v308 = vld [vmem:[%s279 + $0xa0] sm:$0xff]
      %v309 = vld [vmem:[%s279 + $0xa8] sm:$0xff]
      %v310 = vld [vmem:[%s279 + $0xb0] sm:$0xff]
      %v311 = vld [vmem:[%s279 + $0xb8] sm:$0xff]
      %v312 = vld [vmem:[%s279 + $0xc0] sm:$0xff]
      %v313 = vld [vmem:[%s279 + $0xc8] sm:$0xff]
      %v314 = vld [vmem:[%s279 + $0xd0] sm:$0xff]
      %v315 = vld [vmem:[%s279 + $0xd8] sm:$0xff]
      %v316 = vld [vmem:[%s279 + $0xe0] sm:$0xff]
      %v317 = vld [vmem:[%s279 + $0xe8] sm:$0xff]
      %v318 = vld [vmem:[%s279 + $0xf0] sm:$0xff]
      %v319 = vld [vmem:[%s279 + $0xf8] sm:$0xff]
      %v320 = vld [vmem:[%s279 + $0x100] sm:$0xff]
      %v321 = vld [vmem:[%s279 + $0x108] sm:$0xff]
      %v322 = vld [vmem:[%s279 + $0x110] sm:$0xff]
      %v323 = vld [vmem:[%s279 + $0x118] sm:$0xff]
      %v324 = vld [vmem:[%s279 + $0x120] sm:$0xff]
      %v325 = vld [vmem:[%s279 + $0x128] sm:$0xff]
      %v326 = vld [vmem:[%s279 + $0x130] sm:$0xff]
      %v327 = vld [vmem:[%s279 + $0x138] sm:$0xff]
      %v328 = vld [vmem:[%s279 + $0x140] sm:$0xff]
      %v329 = vld [vmem:[%s279 + $0x148] sm:$0xff]
      %v330 = vld [vmem:[%s279 + $0x150] sm:$0xff]
      %v331 = vld [vmem:[%s279 + $0x158] sm:$0xff]
      %v332 = vld [vmem:[%s279 + $0x160] sm:$0xff]
      %v333 = vld [vmem:[%s279 + $0x168] sm:$0xff]
      %v334 = vld [vmem:[%s279 + $0x170] sm:$0xff]
      %v335 = vld [vmem:[%s279 + $0x178] sm:$0xff]
      %v336 = vld [vmem:[%s279 + $0x180] sm:$0xff]
      %v337 = vld [vmem:[%s279 + $0x188] sm:$0xff]
      %v338 = vld [vmem:[%s279 + $0x190] sm:$0xff]
      %v339 = vld [vmem:[%s279 + $0x198] sm:$0xff]
      %v340 = vld [vmem:[%s279 + $0x1a0] sm:$0xff]
      %v341 = vld [vmem:[%s279 + $0x1a8] sm:$0xff]
      %v342 = vld [vmem:[%s279 + $0x1b0] sm:$0xff]
      %v343 = vld [vmem:[%s279 + $0x1b8] sm:$0xff]
      %v344 = vld [vmem:[%s279 + $0x1c0] sm:$0xff]
      %v345 = vld [vmem:[%s279 + $0x1c8] sm:$0xff]
      %v346 = vld [vmem:[%s279 + $0x1d0] sm:$0xff]
      %v347 = vld [vmem:[%s279 + $0x1d8] sm:$0xff]
      %v348 = vld [vmem:[%s279 + $0x1e0] sm:$0xff]
      %v349 = vld [vmem:[%s279 + $0x1e8] sm:$0xff]
      %v350 = vld [vmem:[%s279 + $0x1f0] sm:$0xff]
      %v351 = vld [vmem:[%s279 + $0x1f8] sm:$0xff]
      %v352 = vld [vmem:[%s279 + $0x200] sm:$0xff]
      %v353 = vld [vmem:[%s279 + $0x208] sm:$0xff]
      %v354 = vld [vmem:[%s279 + $0x210] sm:$0xff]
      %v355 = vld [vmem:[%s279 + $0x218] sm:$0xff]
      %v356 = vld [vmem:[%s279 + $0x220] sm:$0xff]
      %v357 = vld [vmem:[%s279 + $0x228] sm:$0xff]
      %v358 = vld [vmem:[%s279 + $0x230] sm:$0xff]
      %v359 = vld [vmem:[%s279 + $0x238] sm:$0xff]
      %v360 = vld [vmem:[%s279 + $0x240] sm:$0xff]
      %v361 = vld [vmem:[%s279 + $0x248] sm:$0xff]
      %v362 = vld [vmem:[%s279 + $0x250] sm:$0xff]
      %v363 = vld [vmem:[%s279 + $0x258] sm:$0xff]
      %v364 = vld [vmem:[%s279 + $0x260] sm:$0xff]
      %v365 = vld [vmem:[%s279 + $0x268] sm:$0xff]
      %v366 = vld [vmem:[%s279 + $0x270] sm:$0xff]
      %v367 = vld [vmem:[%s279 + $0x278] sm:$0xff]
      %v368 = vld [vmem:[%s279 + $0x280] sm:$0xff]
      %v369 = vld [vmem:[%s279 + $0x288] sm:$0xff]
      %v370 = vld [vmem:[%s279 + $0x290] sm:$0xff]
      %v371 = vld [vmem:[%s279 + $0x298] sm:$0xff]
      %v372 = vld [vmem:[%s279 + $0x2a0] sm:$0xff]
      %v373 = vld [vmem:[%s279 + $0x2a8] sm:$0xff]
      %v374 = vld [vmem:[%s279 + $0x2b0] sm:$0xff]
      %v375 = vld [vmem:[%s279 + $0x2b8] sm:$0xff]
      %v376 = vld [vmem:[%s279 + $0x2c0] sm:$0xff]
      %v377 = vld [vmem:[%s279 + $0x2c8] sm:$0xff]
      %v378 = vld [vmem:[%s279 + $0x2d0] sm:$0xff]
      %v379 = vld [vmem:[%s279 + $0x2d8] sm:$0xff]
      %v380 = vld [vmem:[%s279 + $0x2e0] sm:$0xff]
      %v381 = vld [vmem:[%s279 + $0x2e8] sm:$0xff]
      %v382 = vld [vmem:[%s279 + $0x2f0] sm:$0xff]
      %v383 = vld [vmem:[%s279 + $0x2f8] sm:$0xff]
      %v384 = vld [vmem:[%s279 + $0x300] sm:$0xff]
      %v385 = vld [vmem:[%s279 + $0x308] sm:$0xff]
      %v386 = vld [vmem:[%s279 + $0x310] sm:$0xff]
      %v387 = vld [vmem:[%s279 + $0x318] sm:$0xff]
      %v388 = vld [vmem:[%s279 + $0x320] sm:$0xff]
      %v389 = vld [vmem:[%s279 + $0x328] sm:$0xff]
      %v390 = vld [vmem:[%s279 + $0x330] sm:$0xff]
      %v391 = vld [vmem:[%s279 + $0x338] sm:$0xff]
      %v392 = vld [vmem:[%s279 + $0x340] sm:$0xff]
      %v393 = vld [vmem:[%s279 + $0x348] sm:$0xff]
      %v394 = vld [vmem:[%s279 + $0x350] sm:$0xff]
      %v395 = vld [vmem:[%s279 + $0x358] sm:$0xff]
      %v396 = vld [vmem:[%s279 + $0x360] sm:$0xff]
      %v397 = vld [vmem:[%s279 + $0x368] sm:$0xff]
      %v398 = vld [vmem:[%s279 + $0x370] sm:$0xff]
      %v399 = vld [vmem:[%s279 + $0x378] sm:$0xff]
      %v400 = vld [vmem:[%s279 + $0x380] sm:$0xff]
      %v401 = vld [vmem:[%s279 + $0x388] sm:$0xff]
      %v402 = vld [vmem:[%s279 + $0x390] sm:$0xff]
      %v403 = vld [vmem:[%s279 + $0x398] sm:$0xff]
      %v404 = vld [vmem:[%s279 + $0x3a0] sm:$0xff]
      %v405 = vld [vmem:[%s279 + $0x3a8] sm:$0xff]
      %v406 = vld [vmem:[%s279 + $0x3b0] sm:$0xff]
      %v407 = vld [vmem:[%s279 + $0x3b8] sm:$0xff]
      %v408 = vld [vmem:[%s279 + $0x3c0] sm:$0xff]
      %v409 = vld [vmem:[%s279 + $0x3c8] sm:$0xff]
      %v410 = vld [vmem:[%s279 + $0x3d0] sm:$0xff]
      %v411 = vld [vmem:[%s279 + $0x3d8] sm:$0xff]
      %v412 = vld [vmem:[%s279 + $0x3e0] sm:$0xff]
      %v413 = vld [vmem:[%s279 + $0x3e8] sm:$0xff]
      %v414 = vld [vmem:[%s279 + $0x3f0] sm:$0xff]
      %v415 = vld [vmem:[%s279 + $0x3f8] sm:$0xff]
      %v416 = vld [vmem:[%s279 + $0x400] sm:$0xff]
      %v417 = vld [vmem:[%s279 + $0x408] sm:$0xff]
      %v418 = vld [vmem:[%s279 + $0x410] sm:$0xff]
      %v419 = vld [vmem:[%s279 + $0x418] sm:$0xff]
      %v420 = vld [vmem:[%s279 + $0x420] sm:$0xff]
      %v421 = vld [vmem:[%s279 + $0x428] sm:$0xff]
      %v422 = vld [vmem:[%s279 + $0x430] sm:$0xff]
      %v423 = vld [vmem:[%s279 + $0x438] sm:$0xff]
      %v424 = vld [vmem:[%s279 + $0x440] sm:$0xff]
      %v425 = vld [vmem:[%s279 + $0x448] sm:$0xff]
      %v426 = vld [vmem:[%s279 + $0x450] sm:$0xff]
      %v427 = vld [vmem:[%s279 + $0x458] sm:$0xff]
      %v428 = vld [vmem:[%s279 + $0x460] sm:$0xff]
      %v429 = vld [vmem:[%s279 + $0x468] sm:$0xff]
      %v430 = vld [vmem:[%s279 + $0x470] sm:$0xff]
      %v431 = vld [vmem:[%s279 + $0x478] sm:$0xff]
      %v432 = vld [vmem:[%s279 + $0x480] sm:$0xff]
      %v433 = vld [vmem:[%s279 + $0x488] sm:$0xff]
      %v434 = vld [vmem:[%s279 + $0x490] sm:$0xff]
      %v435 = vld [vmem:[%s279 + $0x498] sm:$0xff]
      %v436 = vld [vmem:[%s279 + $0x4a0] sm:$0xff]
      %v437 = vld [vmem:[%s279 + $0x4a8] sm:$0xff]
      %v438 = vld [vmem:[%s279 + $0x4b0] sm:$0xff]
      %v439 = vld [vmem:[%s279 + $0x4b8] sm:$0xff]
      %v440 = vld [vmem:[%s279 + $0x4c0] sm:$0xff]
      %v441 = vld [vmem:[%s279 + $0x4c8] sm:$0xff]
      %v442 = vld [vmem:[%s279 + $0x4d0] sm:$0xff]
      %v443 = vld [vmem:[%s279 + $0x4d8] sm:$0xff]
      %v444 = vld [vmem:[%s279 + $0x4e0] sm:$0xff]
      %v445 = vld [vmem:[%s279 + $0x4e8] sm:$0xff]
      %v446 = vld [vmem:[%s279 + $0x4f0] sm:$0xff]
      %v447 = vld [vmem:[%s279 + $0x4f8] sm:$0xff]
      %v448 = vld [vmem:[%s279 + $0x500] sm:$0xff]
      %v449 = vld [vmem:[%s279 + $0x508] sm:$0xff]
      %v450 = vld [vmem:[%s279 + $0x510] sm:$0xff]
      %v451 = vld [vmem:[%s279 + $0x518] sm:$0xff]
      %v452 = vld [vmem:[%s279 + $0x520] sm:$0xff]
      %v453 = vld [vmem:[%s279 + $0x528] sm:$0xff]
      %v454 = vld [vmem:[%s279 + $0x530] sm:$0xff]
      %v455 = vld [vmem:[%s279 + $0x538] sm:$0xff]
      %v456 = vld [vmem:[%s279 + $0x540] sm:$0xff]
      %v457 = vld [vmem:[%s279 + $0x548] sm:$0xff]
      %v458 = vld [vmem:[%s279 + $0x550] sm:$0xff]
      %v459 = vld [vmem:[%s279 + $0x558] sm:$0xff]
      %v460 = vld [vmem:[%s279 + $0x560] sm:$0xff]
      %v461 = vld [vmem:[%s279 + $0x568] sm:$0xff]
      %v462 = vld [vmem:[%s279 + $0x570] sm:$0xff]
      %v463 = vld [vmem:[%s279 + $0x578] sm:$0xff]
      %v464 = vld [vmem:[%s279 + $0x580] sm:$0xff]
      %v465 = vld [vmem:[%s279 + $0x588] sm:$0xff]
      %v466 = vld [vmem:[%s279 + $0x590] sm:$0xff]
      %v467 = vld [vmem:[%s279 + $0x598] sm:$0xff]
      %v468 = vld [vmem:[%s279 + $0x5a0] sm:$0xff]
      %v469 = vld [vmem:[%s279 + $0x5a8] sm:$0xff]
      %v470 = vld [vmem:[%s279 + $0x5b0] sm:$0xff]
      %v471 = vld [vmem:[%s279 + $0x5b8] sm:$0xff]
      %v472 = vld [vmem:[%s279 + $0x5c0] sm:$0xff]
      %v473 = vld [vmem:[%s279 + $0x5c8] sm:$0xff]
      %v474 = vld [vmem:[%s279 + $0x5d0] sm:$0xff]
      %v475 = vld [vmem:[%s279 + $0x5d8] sm:$0xff]
      %v476 = vld [vmem:[%s279 + $0x5e0] sm:$0xff]
      %v477 = vld [vmem:[%s279 + $0x5e8] sm:$0xff]
      %v478 = vld [vmem:[%s279 + $0x5f0] sm:$0xff]
      %v479 = vld [vmem:[%s279 + $0x5f8] sm:$0xff]
      %v480 = vld [vmem:[%s279 + $0x600] sm:$0xff]
      %v481 = vld [vmem:[%s279 + $0x608] sm:$0xff]
      %v482 = vld [vmem:[%s279 + $0x610] sm:$0xff]
      %v483 = vld [vmem:[%s279 + $0x618] sm:$0xff]
      %v484 = vld [vmem:[%s279 + $0x620] sm:$0xff]
      %v485 = vld [vmem:[%s279 + $0x628] sm:$0xff]
      %v486 = vld [vmem:[%s279 + $0x630] sm:$0xff]
      %v487 = vld [vmem:[%s279 + $0x638] sm:$0xff]
      %v488 = vld [vmem:[%s279 + $0x640] sm:$0xff]
      %v489 = vld [vmem:[%s279 + $0x648] sm:$0xff]
      %v490 = vld [vmem:[%s279 + $0x650] sm:$0xff]
      %v491 = vld [vmem:[%s279 + $0x658] sm:$0xff]
      %v492 = vld [vmem:[%s279 + $0x660] sm:$0xff]
      %v493 = vld [vmem:[%s279 + $0x668] sm:$0xff]
      %v494 = vld [vmem:[%s279 + $0x670] sm:$0xff]
      %v495 = vld [vmem:[%s279 + $0x678] sm:$0xff]
      %v496 = vld [vmem:[%s279 + $0x680] sm:$0xff]
      %v497 = vld [vmem:[%s279 + $0x688] sm:$0xff]
      %v498 = vld [vmem:[%s279 + $0x690] sm:$0xff]
      %v499 = vld [vmem:[%s279 + $0x698] sm:$0xff]
      %v500 = vld [vmem:[%s279 + $0x6a0] sm:$0xff]
      %v501 = vld [vmem:[%s279 + $0x6a8] sm:$0xff]
      %v502 = vld [vmem:[%s279 + $0x6b0] sm:$0xff]
      %v503 = vld [vmem:[%s279 + $0x6b8] sm:$0xff]
      %v504 = vld [vmem:[%s279 + $0x6c0] sm:$0xff]
      %v505 = vld [vmem:[%s279 + $0x6c8] sm:$0xff]
      %v506 = vld [vmem:[%s279 + $0x6d0] sm:$0xff]
      %v507 = vld [vmem:[%s279 + $0x6d8] sm:$0xff]
      %v508 = vld [vmem:[%s279 + $0x6e0] sm:$0xff]
      %v509 = vld [vmem:[%s279 + $0x6e8] sm:$0xff]
      %v510 = vld [vmem:[%s279 + $0x6f0] sm:$0xff]
      %v511 = vld [vmem:[%s279 + $0x6f8] sm:$0xff]
      %v512 = vld [vmem:[%s279 + $0x700] sm:$0xff]
      %v513 = vld [vmem:[%s279 + $0x708] sm:$0xff]
      %v514 = vld [vmem:[%s279 + $0x710] sm:$0xff]
      %v515 = vld [vmem:[%s279 + $0x718] sm:$0xff]
      %v516 = vld [vmem:[%s279 + $0x720] sm:$0xff]
      %v517 = vld [vmem:[%s279 + $0x728] sm:$0xff]
      %v518 = vld [vmem:[%s279 + $0x730] sm:$0xff]
      %v519 = vld [vmem:[%s279 + $0x738] sm:$0xff]
      %v520 = vld [vmem:[%s279 + $0x740] sm:$0xff]
      %v521 = vld [vmem:[%s279 + $0x748] sm:$0xff]
      %v522 = vld [vmem:[%s279 + $0x750] sm:$0xff]
      %v523 = vld [vmem:[%s279 + $0x758] sm:$0xff]
      %v524 = vld [vmem:[%s279 + $0x760] sm:$0xff]
      %v525 = vld [vmem:[%s279 + $0x768] sm:$0xff]
      %v526 = vld [vmem:[%s279 + $0x770] sm:$0xff]
      %v527 = vld [vmem:[%s279 + $0x778] sm:$0xff]
      %v528 = vld [vmem:[%s279 + $0x780] sm:$0xff]
      %v529 = vld [vmem:[%s279 + $0x788] sm:$0xff]
      %v530 = vld [vmem:[%s279 + $0x790] sm:$0xff]
      %v531 = vld [vmem:[%s279 + $0x798] sm:$0xff]
      %v532 = vld [vmem:[%s279 + $0x7a0] sm:$0xff]
      %v533 = vld [vmem:[%s279 + $0x7a8] sm:$0xff]
      %v534 = vld [vmem:[%s279 + $0x7b0] sm:$0xff]
      %v535 = vld [vmem:[%s279 + $0x7b8] sm:$0xff]
      %v536 = vld [vmem:[%s279 + $0x7c0] sm:$0xff]
      %v537 = vld [vmem:[%s279 + $0x7c8] sm:$0xff]
      %v538 = vld [vmem:[%s279 + $0x7d0] sm:$0xff]
      %v539 = vld [vmem:[%s279 + $0x7d8] sm:$0xff]
      %v540 = vld [vmem:[%s279 + $0x7e0] sm:$0xff]
      %v541 = vld [vmem:[%s279 + $0x7e8] sm:$0xff]
      %v542 = vld [vmem:[%s279 + $0x7f0] sm:$0xff]
      %v543 = vld [vmem:[%s279 + $0x7f8] sm:$0xff]
      %v544 = vld [vmem:[%s279 + $0x800] sm:$0xff]
      %v545 = vld [vmem:[%s279 + $0x808] sm:$0xff]
      %v546 = vld [vmem:[%s279 + $0x810] sm:$0xff]
      %v547 = vld [vmem:[%s279 + $0x818] sm:$0xff]
      %v548 = vld [vmem:[%s279 + $0x820] sm:$0xff]
      %v549 = vld [vmem:[%s279 + $0x828] sm:$0xff]
      %v550 = vld [vmem:[%s279 + $0x830] sm:$0xff]
      %v551 = vld [vmem:[%s279 + $0x838] sm:$0xff]
      %v552 = vld [vmem:[%s279 + $0x840] sm:$0xff]
      %v553 = vld [vmem:[%s279 + $0x848] sm:$0xff]
      %v554 = vld [vmem:[%s279 + $0x850] sm:$0xff]
      %v555 = vld [vmem:[%s279 + $0x858] sm:$0xff]
      %v556 = vld [vmem:[%s279 + $0x860] sm:$0xff]
      %v557 = vld [vmem:[%s279 + $0x868] sm:$0xff]
      %v558 = vld [vmem:[%s279 + $0x870] sm:$0xff]
      %v559 = vld [vmem:[%s279 + $0x878] sm:$0xff]
      %v560 = vld [vmem:[%s279 + $0x880] sm:$0xff]
      %v561 = vld [vmem:[%s279 + $0x888] sm:$0xff]
      %v562 = vld [vmem:[%s279 + $0x890] sm:$0xff]
      %v563 = vld [vmem:[%s279 + $0x898] sm:$0xff]
      %v564 = vld [vmem:[%s279 + $0x8a0] sm:$0xff]
      %v565 = vld [vmem:[%s279 + $0x8a8] sm:$0xff]
      %v566 = vld [vmem:[%s279 + $0x8b0] sm:$0xff]
      %v567 = vld [vmem:[%s279 + $0x8b8] sm:$0xff]
      %v568 = vld [vmem:[%s279 + $0x8c0] sm:$0xff]
      %v569 = vld [vmem:[%s279 + $0x8c8] sm:$0xff]
      %v570 = vld [vmem:[%s279 + $0x8d0] sm:$0xff]
      %v571 = vld [vmem:[%s279 + $0x8d8] sm:$0xff]
      %v572 = vld [vmem:[%s279 + $0x8e0] sm:$0xff]
      %v573 = vld [vmem:[%s279 + $0x8e8] sm:$0xff]
      %v574 = vld [vmem:[%s279 + $0x8f0] sm:$0xff]
      %v575 = vld [vmem:[%s279 + $0x8f8] sm:$0xff]
      %v576 = vld [vmem:[%s279 + $0x900] sm:$0xff]
      %v577 = vld [vmem:[%s279 + $0x908] sm:$0xff]
      %v578 = vld [vmem:[%s279 + $0x910] sm:$0xff]
      %v579 = vld [vmem:[%s279 + $0x918] sm:$0xff]
      %v580 = vld [vmem:[%s279 + $0x920] sm:$0xff]
      %v581 = vld [vmem:[%s279 + $0x928] sm:$0xff]
      %v582 = vld [vmem:[%s279 + $0x930] sm:$0xff]
      %v583 = vld [vmem:[%s279 + $0x938] sm:$0xff]
      %v584 = vld [vmem:[%s279 + $0x940] sm:$0xff]
      %v585 = vld [vmem:[%s279 + $0x948] sm:$0xff]
      %v586 = vld [vmem:[%s279 + $0x950] sm:$0xff]
      %v587 = vld [vmem:[%s279 + $0x958] sm:$0xff]
      %v588 = vld [vmem:[%s279 + $0x960] sm:$0xff]
      %v589 = vld [vmem:[%s279 + $0x968] sm:$0xff]
      %v590 = vld [vmem:[%s279 + $0x970] sm:$0xff]
      %v591 = vld [vmem:[%s279 + $0x978] sm:$0xff]
      %v592 = vld [vmem:[%s279 + $0x980] sm:$0xff]
      %v593 = vld [vmem:[%s279 + $0x988] sm:$0xff]
      %v594 = vld [vmem:[%s279 + $0x990] sm:$0xff]
      %v595 = vld [vmem:[%s279 + $0x998] sm:$0xff]
      %v596 = vld [vmem:[%s279 + $0x9a0] sm:$0xff]
      %v597 = vld [vmem:[%s279 + $0x9a8] sm:$0xff]
      %v598 = vld [vmem:[%s279 + $0x9b0] sm:$0xff]
      %v599 = vld [vmem:[%s279 + $0x9b8] sm:$0xff]
      %v600 = vld [vmem:[%s279 + $0x9c0] sm:$0xff]
      %v601 = vld [vmem:[%s279 + $0x9c8] sm:$0xff]
      %v602 = vld [vmem:[%s279 + $0x9d0] sm:$0xff]
      %v603 = vld [vmem:[%s279 + $0x9d8] sm:$0xff]
      %v604 = vld [vmem:[%s279 + $0x9e0] sm:$0xff]
      %v605 = vld [vmem:[%s279 + $0x9e8] sm:$0xff]
      %v606 = vld [vmem:[%s279 + $0x9f0] sm:$0xff]
      %v607 = vld [vmem:[%s279 + $0x9f8] sm:$0xff]
      %v608 = vpack.c.bf16 %v293, %v288
      %v609 = vpack.c.bf16 %v294, %v289
      %v610 = vpack.c.bf16 %v295, %v290
      %v611 = vpack.c.bf16 %v296, %v291
      %v612 = vpack.c.bf16 %v297, %v292
      %v613 = vpack.c.bf16 %v303, %v298
      %v614 = vpack.c.bf16 %v304, %v299
      %v615 = vpack.c.bf16 %v305, %v300
      %v616 = vpack.c.bf16 %v306, %v301
      %v617 = vpack.c.bf16 %v307, %v302
      %v618 = vpack.c.bf16 %v313, %v308
      %v619 = vpack.c.bf16 %v314, %v309
      %v620 = vpack.c.bf16 %v315, %v310
      %v621 = vpack.c.bf16 %v316, %v311
      %v622 = vpack.c.bf16 %v317, %v312
      %v623 = vpack.c.bf16 %v323, %v318
      %v624 = vpack.c.bf16 %v324, %v319
      %v625 = vpack.c.bf16 %v325, %v320
      %v626 = vpack.c.bf16 %v326, %v321
      %v627 = vpack.c.bf16 %v327, %v322
      %v628 = vpack.c.bf16 %v333, %v328
      %v629 = vpack.c.bf16 %v334, %v329
      %v630 = vpack.c.bf16 %v335, %v330
      %v631 = vpack.c.bf16 %v336, %v331
      %v632 = vpack.c.bf16 %v337, %v332
      %v633 = vpack.c.bf16 %v343, %v338
      %v634 = vpack.c.bf16 %v344, %v339
      %v635 = vpack.c.bf16 %v345, %v340
      %v636 = vpack.c.bf16 %v346, %v341
      %v637 = vpack.c.bf16 %v347, %v342
      %v638 = vpack.c.bf16 %v353, %v348
      %v639 = vpack.c.bf16 %v354, %v349
      %v640 = vpack.c.bf16 %v355, %v350
      %v641 = vpack.c.bf16 %v356, %v351
      %v642 = vpack.c.bf16 %v357, %v352
      %v643 = vpack.c.bf16 %v363, %v358
      %v644 = vpack.c.bf16 %v364, %v359
      %v645 = vpack.c.bf16 %v365, %v360
      %v646 = vpack.c.bf16 %v366, %v361
      %v647 = vpack.c.bf16 %v367, %v362
      %v648 = vpack.c.bf16 %v373, %v368
      %v649 = vpack.c.bf16 %v374, %v369
      %v650 = vpack.c.bf16 %v375, %v370
      %v651 = vpack.c.bf16 %v376, %v371
      %v652 = vpack.c.bf16 %v377, %v372
      %v653 = vpack.c.bf16 %v383, %v378
      %v654 = vpack.c.bf16 %v384, %v379
      %v655 = vpack.c.bf16 %v385, %v380
      %v656 = vpack.c.bf16 %v386, %v381
      %v657 = vpack.c.bf16 %v387, %v382
      %v658 = vpack.c.bf16 %v393, %v388
      %v659 = vpack.c.bf16 %v394, %v389
      %v660 = vpack.c.bf16 %v395, %v390
      %v661 = vpack.c.bf16 %v396, %v391
      %v662 = vpack.c.bf16 %v397, %v392
      %v663 = vpack.c.bf16 %v403, %v398
      %v664 = vpack.c.bf16 %v404, %v399
      %v665 = vpack.c.bf16 %v405, %v400
      %v666 = vpack.c.bf16 %v406, %v401
      %v667 = vpack.c.bf16 %v407, %v402
      %v668 = vpack.c.bf16 %v413, %v408
      %v669 = vpack.c.bf16 %v414, %v409
      %v670 = vpack.c.bf16 %v415, %v410
      %v671 = vpack.c.bf16 %v416, %v411
      %v672 = vpack.c.bf16 %v417, %v412
      %v673 = vpack.c.bf16 %v423, %v418
      %v674 = vpack.c.bf16 %v424, %v419
      %v675 = vpack.c.bf16 %v425, %v420
      %v676 = vpack.c.bf16 %v426, %v421
      %v677 = vpack.c.bf16 %v427, %v422
      %v678 = vpack.c.bf16 %v433, %v428
      %v679 = vpack.c.bf16 %v434, %v429
      %v680 = vpack.c.bf16 %v435, %v430
      %v681 = vpack.c.bf16 %v436, %v431
      %v682 = vpack.c.bf16 %v437, %v432
      %v683 = vpack.c.bf16 %v443, %v438
      %v684 = vpack.c.bf16 %v444, %v439
      %v685 = vpack.c.bf16 %v445, %v440
      %v686 = vpack.c.bf16 %v446, %v441
      %v687 = vpack.c.bf16 %v447, %v442
      %v688 = vpack.c.bf16 %v453, %v448
      %v689 = vpack.c.bf16 %v454, %v449
      %v690 = vpack.c.bf16 %v455, %v450
      %v691 = vpack.c.bf16 %v456, %v451
      %v692 = vpack.c.bf16 %v457, %v452
      %v693 = vpack.c.bf16 %v463, %v458
      %v694 = vpack.c.bf16 %v464, %v459
      %v695 = vpack.c.bf16 %v465, %v460
      %v696 = vpack.c.bf16 %v466, %v461
      %v697 = vpack.c.bf16 %v467, %v462
      %v698 = vpack.c.bf16 %v473, %v468
      %v699 = vpack.c.bf16 %v474, %v469
      %v700 = vpack.c.bf16 %v475, %v470
      %v701 = vpack.c.bf16 %v476, %v471
      %v702 = vpack.c.bf16 %v477, %v472
      %v703 = vpack.c.bf16 %v483, %v478
      %v704 = vpack.c.bf16 %v484, %v479
      %v705 = vpack.c.bf16 %v485, %v480
      %v706 = vpack.c.bf16 %v486, %v481
      %v707 = vpack.c.bf16 %v487, %v482
      %v708 = vpack.c.bf16 %v493, %v488
      %v709 = vpack.c.bf16 %v494, %v489
      %v710 = vpack.c.bf16 %v495, %v490
      %v711 = vpack.c.bf16 %v496, %v491
      %v712 = vpack.c.bf16 %v497, %v492
      %v713 = vpack.c.bf16 %v503, %v498
      %v714 = vpack.c.bf16 %v504, %v499
      %v715 = vpack.c.bf16 %v505, %v500
      %v716 = vpack.c.bf16 %v506, %v501
      %v717 = vpack.c.bf16 %v507, %v502
      %v718 = vpack.c.bf16 %v513, %v508
      %v719 = vpack.c.bf16 %v514, %v509
      %v720 = vpack.c.bf16 %v515, %v510
      %v721 = vpack.c.bf16 %v516, %v511
      %v722 = vpack.c.bf16 %v517, %v512
      %v723 = vpack.c.bf16 %v523, %v518
      %v724 = vpack.c.bf16 %v524, %v519
      %v725 = vpack.c.bf16 %v525, %v520
      %v726 = vpack.c.bf16 %v526, %v521
      %v727 = vpack.c.bf16 %v527, %v522
      %v728 = vpack.c.bf16 %v533, %v528
      %v729 = vpack.c.bf16 %v534, %v529
      %v730 = vpack.c.bf16 %v535, %v530
      %v731 = vpack.c.bf16 %v536, %v531
      %v732 = vpack.c.bf16 %v537, %v532
      %v733 = vpack.c.bf16 %v543, %v538
      %v734 = vpack.c.bf16 %v544, %v539
      %v735 = vpack.c.bf16 %v545, %v540
      %v736 = vpack.c.bf16 %v546, %v541
      %v737 = vpack.c.bf16 %v547, %v542
      %v738 = vpack.c.bf16 %v553, %v548
      %v739 = vpack.c.bf16 %v554, %v549
      %v740 = vpack.c.bf16 %v555, %v550
      %v741 = vpack.c.bf16 %v556, %v551
      %v742 = vpack.c.bf16 %v557, %v552
      %v743 = vpack.c.bf16 %v563, %v558
      %v744 = vpack.c.bf16 %v564, %v559
      %v745 = vpack.c.bf16 %v565, %v560
      %v746 = vpack.c.bf16 %v566, %v561
      %v747 = vpack.c.bf16 %v567, %v562
      %v748 = vpack.c.bf16 %v573, %v568
      %v749 = vpack.c.bf16 %v574, %v569
      %v750 = vpack.c.bf16 %v575, %v570
      %v751 = vpack.c.bf16 %v576, %v571
      %v752 = vpack.c.bf16 %v577, %v572
      %v753 = vpack.c.bf16 %v583, %v578
      %v754 = vpack.c.bf16 %v584, %v579
      %v755 = vpack.c.bf16 %v585, %v580
      %v756 = vpack.c.bf16 %v586, %v581
      %v757 = vpack.c.bf16 %v587, %v582
      %v758 = vpack.c.bf16 %v593, %v588
      %v759 = vpack.c.bf16 %v594, %v589
      %v760 = vpack.c.bf16 %v595, %v590
      %v761 = vpack.c.bf16 %v596, %v591
      %v762 = vpack.c.bf16 %v597, %v592
      %v763 = vpack.c.bf16 %v603, %v598
      %v764 = vpack.c.bf16 %v604, %v599
      %v765 = vpack.c.bf16 %v605, %v600
      %v766 = vpack.c.bf16 %v606, %v601
      %v767 = vpack.c.bf16 %v607, %v602
      %v768 = vld [vmem:[%s1] sm:$0xff]
      %v769 = vld [vmem:[%s1 + $0x8] sm:$0xff]
      %v770 = vld [vmem:[%s1 + $0x10] sm:$0xff]
      %v771 = vld [vmem:[%s1 + $0x18] sm:$0xff]
      %v772 = vld [vmem:[%s1 + $0x20] sm:$0xff]
      %v773 = vld [vmem:[%s1 + $0x28] sm:$0xff]
      %v774 = vld [vmem:[%s1 + $0x30] sm:$0xff]
      %v775 = vld [vmem:[%s1 + $0x38] sm:$0xff]
      %v776 = vld [vmem:[%s1 + $0x40] sm:$0xff]
      %v777 = vld [vmem:[%s1 + $0x48] sm:$0xff]
      %v778 = vld [vmem:[%s1 + $0x50] sm:$0xff]
      %v779 = vld [vmem:[%s1 + $0x58] sm:$0xff]
      %v780 = vld [vmem:[%s1 + $0x60] sm:$0xff]
      %v781 = vld [vmem:[%s1 + $0x68] sm:$0xff]
      %v782 = vld [vmem:[%s1 + $0x70] sm:$0xff]
      %v783 = vld [vmem:[%s1 + $0x78] sm:$0xff]
      %v784 = vld [vmem:[%s1 + $0x80] sm:$0xff]
      %v785 = vld [vmem:[%s1 + $0x88] sm:$0xff]
      %v786 = vld [vmem:[%s1 + $0x90] sm:$0xff]
      %v787 = vld [vmem:[%s1 + $0x98] sm:$0xff]
      %v788 = vld [vmem:[%s1 + $0xa0] sm:$0xff]
      %v789 = vld [vmem:[%s1 + $0xa8] sm:$0xff]
      %v790 = vld [vmem:[%s1 + $0xb0] sm:$0xff]
      %v791 = vld [vmem:[%s1 + $0xb8] sm:$0xff]
      %v792 = vld [vmem:[%s1 + $0xc0] sm:$0xff]
      %v793 = vld [vmem:[%s1 + $0xc8] sm:$0xff]
      %v794 = vld [vmem:[%s1 + $0xd0] sm:$0xff]
      %v795 = vld [vmem:[%s1 + $0xd8] sm:$0xff]
      %v796 = vld [vmem:[%s1 + $0xe0] sm:$0xff]
      %v797 = vld [vmem:[%s1 + $0xe8] sm:$0xff]
      %v798 = vld [vmem:[%s1 + $0xf0] sm:$0xff]
      %v799 = vld [vmem:[%s1 + $0xf8] sm:$0xff]
      %v800 = vld [vmem:[%s1 + $0x100] sm:$0xff]
      %v801 = vld [vmem:[%s1 + $0x108] sm:$0xff]
      %v802 = vld [vmem:[%s1 + $0x110] sm:$0xff]
      %v803 = vld [vmem:[%s1 + $0x118] sm:$0xff]
      %v804 = vld [vmem:[%s1 + $0x120] sm:$0xff]
      %v805 = vld [vmem:[%s1 + $0x128] sm:$0xff]
      %v806 = vld [vmem:[%s1 + $0x130] sm:$0xff]
      %v807 = vld [vmem:[%s1 + $0x138] sm:$0xff]
      %v808 = vld [vmem:[%s1 + $0x140] sm:$0xff]
      %v809 = vld [vmem:[%s1 + $0x148] sm:$0xff]
      %v810 = vld [vmem:[%s1 + $0x150] sm:$0xff]
      %v811 = vld [vmem:[%s1 + $0x158] sm:$0xff]
      %v812 = vld [vmem:[%s1 + $0x160] sm:$0xff]
      %v813 = vld [vmem:[%s1 + $0x168] sm:$0xff]
      %v814 = vld [vmem:[%s1 + $0x170] sm:$0xff]
      %v815 = vld [vmem:[%s1 + $0x178] sm:$0xff]
      %v816 = vld [vmem:[%s1 + $0x180] sm:$0xff]
      %v817 = vld [vmem:[%s1 + $0x188] sm:$0xff]
      %v818 = vld [vmem:[%s1 + $0x190] sm:$0xff]
      %v819 = vld [vmem:[%s1 + $0x198] sm:$0xff]
      %v820 = vld [vmem:[%s1 + $0x1a0] sm:$0xff]
      %v821 = vld [vmem:[%s1 + $0x1a8] sm:$0xff]
      %v822 = vld [vmem:[%s1 + $0x1b0] sm:$0xff]
      %v823 = vld [vmem:[%s1 + $0x1b8] sm:$0xff]
      %v824 = vld [vmem:[%s1 + $0x1c0] sm:$0xff]
      %v825 = vld [vmem:[%s1 + $0x1c8] sm:$0xff]
      %v826 = vld [vmem:[%s1 + $0x1d0] sm:$0xff]
      %v827 = vld [vmem:[%s1 + $0x1d8] sm:$0xff]
      %v828 = vld [vmem:[%s1 + $0x1e0] sm:$0xff]
      %v829 = vld [vmem:[%s1 + $0x1e8] sm:$0xff]
      %v830 = vld [vmem:[%s1 + $0x1f0] sm:$0xff]
      %v831 = vld [vmem:[%s1 + $0x1f8] sm:$0xff]
      %v832 = vld [vmem:[%s1 + $0x200] sm:$0xff]
      %v833 = vld [vmem:[%s1 + $0x208] sm:$0xff]
      %v834 = vld [vmem:[%s1 + $0x210] sm:$0xff]
      %v835 = vld [vmem:[%s1 + $0x218] sm:$0xff]
      %v836 = vld [vmem:[%s1 + $0x220] sm:$0xff]
      %v837 = vld [vmem:[%s1 + $0x228] sm:$0xff]
      %v838 = vld [vmem:[%s1 + $0x230] sm:$0xff]
      %v839 = vld [vmem:[%s1 + $0x238] sm:$0xff]
      %v840 = vld [vmem:[%s1 + $0x240] sm:$0xff]
      %v841 = vld [vmem:[%s1 + $0x248] sm:$0xff]
      %v842 = vld [vmem:[%s1 + $0x250] sm:$0xff]
      %v843 = vld [vmem:[%s1 + $0x258] sm:$0xff]
      %v844 = vld [vmem:[%s1 + $0x260] sm:$0xff]
      %v845 = vld [vmem:[%s1 + $0x268] sm:$0xff]
      %v846 = vld [vmem:[%s1 + $0x270] sm:$0xff]
      %v847 = vld [vmem:[%s1 + $0x278] sm:$0xff]
      %v848 = vld [vmem:[%s1 + $0x280] sm:$0xff]
      %v849 = vld [vmem:[%s1 + $0x288] sm:$0xff]
      %v850 = vld [vmem:[%s1 + $0x290] sm:$0xff]
      %v851 = vld [vmem:[%s1 + $0x298] sm:$0xff]
      %v852 = vld [vmem:[%s1 + $0x2a0] sm:$0xff]
      %v853 = vld [vmem:[%s1 + $0x2a8] sm:$0xff]
      %v854 = vld [vmem:[%s1 + $0x2b0] sm:$0xff]
      %v855 = vld [vmem:[%s1 + $0x2b8] sm:$0xff]
      %v856 = vld [vmem:[%s1 + $0x2c0] sm:$0xff]
      %v857 = vld [vmem:[%s1 + $0x2c8] sm:$0xff]
      %v858 = vld [vmem:[%s1 + $0x2d0] sm:$0xff]
      %v859 = vld [vmem:[%s1 + $0x2d8] sm:$0xff]
      %v860 = vld [vmem:[%s1 + $0x2e0] sm:$0xff]
      %v861 = vld [vmem:[%s1 + $0x2e8] sm:$0xff]
      %v862 = vld [vmem:[%s1 + $0x2f0] sm:$0xff]
      %v863 = vld [vmem:[%s1 + $0x2f8] sm:$0xff]
      %v864 = vld [vmem:[%s1 + $0x300] sm:$0xff]
      %v865 = vld [vmem:[%s1 + $0x308] sm:$0xff]
      %v866 = vld [vmem:[%s1 + $0x310] sm:$0xff]
      %v867 = vld [vmem:[%s1 + $0x318] sm:$0xff]
      %v868 = vld [vmem:[%s1 + $0x320] sm:$0xff]
      %v869 = vld [vmem:[%s1 + $0x328] sm:$0xff]
      %v870 = vld [vmem:[%s1 + $0x330] sm:$0xff]
      %v871 = vld [vmem:[%s1 + $0x338] sm:$0xff]
      %v872 = vld [vmem:[%s1 + $0x340] sm:$0xff]
      %v873 = vld [vmem:[%s1 + $0x348] sm:$0xff]
      %v874 = vld [vmem:[%s1 + $0x350] sm:$0xff]
      %v875 = vld [vmem:[%s1 + $0x358] sm:$0xff]
      %v876 = vld [vmem:[%s1 + $0x360] sm:$0xff]
      %v877 = vld [vmem:[%s1 + $0x368] sm:$0xff]
      %v878 = vld [vmem:[%s1 + $0x370] sm:$0xff]
      %v879 = vld [vmem:[%s1 + $0x378] sm:$0xff]
      %v880 = vld [vmem:[%s1 + $0x380] sm:$0xff]
      %v881 = vld [vmem:[%s1 + $0x388] sm:$0xff]
      %v882 = vld [vmem:[%s1 + $0x390] sm:$0xff]
      %v883 = vld [vmem:[%s1 + $0x398] sm:$0xff]
      %v884 = vld [vmem:[%s1 + $0x3a0] sm:$0xff]
      %v885 = vld [vmem:[%s1 + $0x3a8] sm:$0xff]
      %v886 = vld [vmem:[%s1 + $0x3b0] sm:$0xff]
      %v887 = vld [vmem:[%s1 + $0x3b8] sm:$0xff]
      %v888 = vld [vmem:[%s1 + $0x3c0] sm:$0xff]
      %v889 = vld [vmem:[%s1 + $0x3c8] sm:$0xff]
      %v890 = vld [vmem:[%s1 + $0x3d0] sm:$0xff]
      %v891 = vld [vmem:[%s1 + $0x3d8] sm:$0xff]
      %v892 = vld [vmem:[%s1 + $0x3e0] sm:$0xff]
      %v893 = vld [vmem:[%s1 + $0x3e8] sm:$0xff]
      %v894 = vld [vmem:[%s1 + $0x3f0] sm:$0xff]
      %v895 = vld [vmem:[%s1 + $0x3f8] sm:$0xff]
      %v896 = vld [vmem:[%s1 + $0x400] sm:$0xff]
      %v897 = vld [vmem:[%s1 + $0x408] sm:$0xff]
      %v898 = vld [vmem:[%s1 + $0x410] sm:$0xff]
      %v899 = vld [vmem:[%s1 + $0x418] sm:$0xff]
      %v900 = vld [vmem:[%s1 + $0x420] sm:$0xff]
      %v901 = vld [vmem:[%s1 + $0x428] sm:$0xff]
      %v902 = vld [vmem:[%s1 + $0x430] sm:$0xff]
      %v903 = vld [vmem:[%s1 + $0x438] sm:$0xff]
      %v904 = vld [vmem:[%s1 + $0x440] sm:$0xff]
      %v905 = vld [vmem:[%s1 + $0x448] sm:$0xff]
      %v906 = vld [vmem:[%s1 + $0x450] sm:$0xff]
      %v907 = vld [vmem:[%s1 + $0x458] sm:$0xff]
      %v908 = vld [vmem:[%s1 + $0x460] sm:$0xff]
      %v909 = vld [vmem:[%s1 + $0x468] sm:$0xff]
      %v910 = vld [vmem:[%s1 + $0x470] sm:$0xff]
      %v911 = vld [vmem:[%s1 + $0x478] sm:$0xff]
      %v912 = vld [vmem:[%s1 + $0x480] sm:$0xff]
      %v913 = vld [vmem:[%s1 + $0x488] sm:$0xff]
      %v914 = vld [vmem:[%s1 + $0x490] sm:$0xff]
      %v915 = vld [vmem:[%s1 + $0x498] sm:$0xff]
      %v916 = vld [vmem:[%s1 + $0x4a0] sm:$0xff]
      %v917 = vld [vmem:[%s1 + $0x4a8] sm:$0xff]
      %v918 = vld [vmem:[%s1 + $0x4b0] sm:$0x77]
      %v919 = vld [vmem:[%s1 + $0x4b8] sm:$0x77]
      %v920 = vld [vmem:[%s2] sm:$0xf]
      %v922 = vlaneseq
      %v923 = vshrl.u32 %v922, 7
      %v924 = vsub.s32 0, %v923
      %v925 = vrot.slane %v920, %v924
      %v926 = vlaneseq
      %v927 = vshrl.u32 %v926, 7
      %v928 = vsub.s32 1, %v927
      %v929 = vrot.slane %v920, %v928
      %v930 = vlaneseq
      %v931 = vshrl.u32 %v930, 7
      %v932 = vsub.s32 2, %v931
      %v933 = vrot.slane %v920, %v932
      %v934 = vlaneseq
      %v935 = vshrl.u32 %v934, 7
      %v936 = vsub.s32 3, %v935
      %v937 = vrot.slane %v920, %v936
      %v1094 = vunpack.c.l.b16 %v768
      %v1095 = vunpack.c.h.b16 %v768
      %v1096 = vunpack.c.l.b16 %v769
      %v1097 = vunpack.c.h.b16 %v769
      %v1098 = vunpack.c.l.b16 %v770
      %v1099 = vunpack.c.h.b16 %v770
      %v1100 = vunpack.c.l.b16 %v771
      %v1101 = vunpack.c.h.b16 %v771
      %v1102 = vunpack.c.l.b16 %v772
      %v1103 = vunpack.c.h.b16 %v772
      %v1104 = vunpack.c.l.b16 %v773
      %v1105 = vunpack.c.h.b16 %v773
      %v1106 = vunpack.c.l.b16 %v774
      %v1107 = vunpack.c.h.b16 %v774
      %v1108 = vunpack.c.l.b16 %v775
      %v1109 = vunpack.c.h.b16 %v775
      %v1110 = vunpack.c.l.b16 %v776
      %v1111 = vunpack.c.h.b16 %v776
      %v1112 = vunpack.c.l.b16 %v777
      %v1113 = vunpack.c.h.b16 %v777
      %v1114 = vunpack.c.l.b16 %v778
      %v1115 = vunpack.c.h.b16 %v778
      %v1116 = vunpack.c.l.b16 %v779
      %v1117 = vunpack.c.h.b16 %v779
      %v1118 = vunpack.c.l.b16 %v780
      %v1119 = vunpack.c.h.b16 %v780
      %v1120 = vunpack.c.l.b16 %v781
      %v1121 = vunpack.c.h.b16 %v781
      %v1122 = vunpack.c.l.b16 %v782
      %v1123 = vunpack.c.h.b16 %v782
      %v1124 = vunpack.c.l.b16 %v783
      %v1125 = vunpack.c.h.b16 %v783
      %v1126 = vunpack.c.l.b16 %v784
      %v1127 = vunpack.c.h.b16 %v784
      %v1128 = vunpack.c.l.b16 %v785
      %v1129 = vunpack.c.h.b16 %v785
      %v1130 = vunpack.c.l.b16 %v786
      %v1131 = vunpack.c.h.b16 %v786
      %v1132 = vunpack.c.l.b16 %v787
      %v1133 = vunpack.c.h.b16 %v787
      %v1134 = vunpack.c.l.b16 %v788
      %v1135 = vunpack.c.h.b16 %v788
      %v1136 = vunpack.c.l.b16 %v789
      %v1137 = vunpack.c.h.b16 %v789
      %v1138 = vunpack.c.l.b16 %v790
      %v1139 = vunpack.c.h.b16 %v790
      %v1140 = vunpack.c.l.b16 %v791
      %v1141 = vunpack.c.h.b16 %v791
      %v1142 = vunpack.c.l.b16 %v792
      %v1143 = vunpack.c.h.b16 %v792
      %v1144 = vunpack.c.l.b16 %v793
      %v1145 = vunpack.c.h.b16 %v793
      %v1146 = vunpack.c.l.b16 %v794
      %v1147 = vunpack.c.h.b16 %v794
      %v1148 = vunpack.c.l.b16 %v795
      %v1149 = vunpack.c.h.b16 %v795
      %v1150 = vunpack.c.l.b16 %v796
      %v1151 = vunpack.c.h.b16 %v796
      %v1152 = vunpack.c.l.b16 %v797
      %v1153 = vunpack.c.h.b16 %v797
      %v1154 = vunpack.c.l.b16 %v798
      %v1155 = vunpack.c.h.b16 %v798
      %v1156 = vunpack.c.l.b16 %v799
      %v1157 = vunpack.c.h.b16 %v799
      %v1158 = vunpack.c.l.b16 %v800
      %v1159 = vunpack.c.h.b16 %v800
      %v1160 = vunpack.c.l.b16 %v801
      %v1161 = vunpack.c.h.b16 %v801
      %v1162 = vunpack.c.l.b16 %v802
      %v1163 = vunpack.c.h.b16 %v802
      %v1164 = vunpack.c.l.b16 %v803
      %v1165 = vunpack.c.h.b16 %v803
      %v1166 = vunpack.c.l.b16 %v804
      %v1167 = vunpack.c.h.b16 %v804
      %v1168 = vunpack.c.l.b16 %v805
      %v1169 = vunpack.c.h.b16 %v805
      %v1170 = vunpack.c.l.b16 %v806
      %v1171 = vunpack.c.h.b16 %v806
      %v1172 = vunpack.c.l.b16 %v807
      %v1173 = vunpack.c.h.b16 %v807
      %v1174 = vunpack.c.l.b16 %v808
      %v1175 = vunpack.c.h.b16 %v808
      %v1176 = vunpack.c.l.b16 %v809
      %v1177 = vunpack.c.h.b16 %v809
      %v1178 = vunpack.c.l.b16 %v810
      %v1179 = vunpack.c.h.b16 %v810
      %v1180 = vunpack.c.l.b16 %v811
      %v1181 = vunpack.c.h.b16 %v811
      %v1182 = vunpack.c.l.b16 %v812
      %v1183 = vunpack.c.h.b16 %v812
      %v1184 = vunpack.c.l.b16 %v813
      %v1185 = vunpack.c.h.b16 %v813
      %v1186 = vunpack.c.l.b16 %v814
      %v1187 = vunpack.c.h.b16 %v814
      %v1188 = vunpack.c.l.b16 %v815
      %v1189 = vunpack.c.h.b16 %v815
      %v1190 = vunpack.c.l.b16 %v816
      %v1191 = vunpack.c.h.b16 %v816
      %v1192 = vunpack.c.l.b16 %v817
      %v1193 = vunpack.c.h.b16 %v817
      %v1194 = vunpack.c.l.b16 %v818
      %v1195 = vunpack.c.h.b16 %v818
      %v1196 = vunpack.c.l.b16 %v819
      %v1197 = vunpack.c.h.b16 %v819
      %v1198 = vunpack.c.l.b16 %v820
      %v1199 = vunpack.c.h.b16 %v820
      %v1200 = vunpack.c.l.b16 %v821
      %v1201 = vunpack.c.h.b16 %v821
      %v1202 = vunpack.c.l.b16 %v822
      %v1203 = vunpack.c.h.b16 %v822
      %v1204 = vunpack.c.l.b16 %v823
      %v1205 = vunpack.c.h.b16 %v823
      %v1206 = vunpack.c.l.b16 %v824
      %v1207 = vunpack.c.h.b16 %v824
      %v1208 = vunpack.c.l.b16 %v825
      %v1209 = vunpack.c.h.b16 %v825
      %v1210 = vunpack.c.l.b16 %v826
      %v1211 = vunpack.c.h.b16 %v826
      %v1212 = vunpack.c.l.b16 %v827
      %v1213 = vunpack.c.h.b16 %v827
      %v1214 = vunpack.c.l.b16 %v828
      %v1215 = vunpack.c.h.b16 %v828
      %v1216 = vunpack.c.l.b16 %v829
      %v1217 = vunpack.c.h.b16 %v829
      %v1218 = vunpack.c.l.b16 %v830
      %v1219 = vunpack.c.h.b16 %v830
      %v1220 = vunpack.c.l.b16 %v831
      %v1221 = vunpack.c.h.b16 %v831
      %v1222 = vunpack.c.l.b16 %v832
      %v1223 = vunpack.c.h.b16 %v832
      %v1224 = vunpack.c.l.b16 %v833
      %v1225 = vunpack.c.h.b16 %v833
      %v1226 = vunpack.c.l.b16 %v834
      %v1227 = vunpack.c.h.b16 %v834
      %v1228 = vunpack.c.l.b16 %v835
      %v1229 = vunpack.c.h.b16 %v835
      %v1230 = vunpack.c.l.b16 %v836
      %v1231 = vunpack.c.h.b16 %v836
      %v1232 = vunpack.c.l.b16 %v837
      %v1233 = vunpack.c.h.b16 %v837
      %v1234 = vunpack.c.l.b16 %v838
      %v1235 = vunpack.c.h.b16 %v838
      %v1236 = vunpack.c.l.b16 %v839
      %v1237 = vunpack.c.h.b16 %v839
      %v1238 = vunpack.c.l.b16 %v840
      %v1239 = vunpack.c.h.b16 %v840
      %v1240 = vunpack.c.l.b16 %v841
      %v1241 = vunpack.c.h.b16 %v841
      %v1242 = vunpack.c.l.b16 %v842
      %v1243 = vunpack.c.h.b16 %v842
      %v1244 = vunpack.c.l.b16 %v843
      %v1245 = vunpack.c.h.b16 %v843
      %v1246 = vunpack.c.l.b16 %v844
      %v1247 = vunpack.c.h.b16 %v844
      %v1248 = vunpack.c.l.b16 %v845
      %v1249 = vunpack.c.h.b16 %v845
      %v1250 = vunpack.c.l.b16 %v846
      %v1251 = vunpack.c.h.b16 %v846
      %v1252 = vunpack.c.l.b16 %v847
      %v1253 = vunpack.c.h.b16 %v847
      %v1254 = vunpack.c.l.b16 %v848
      %v1255 = vunpack.c.h.b16 %v848
      %v1256 = vunpack.c.l.b16 %v849
      %v1257 = vunpack.c.h.b16 %v849
      %v1258 = vunpack.c.l.b16 %v850
      %v1259 = vunpack.c.h.b16 %v850
      %v1260 = vunpack.c.l.b16 %v851
      %v1261 = vunpack.c.h.b16 %v851
      %v1262 = vunpack.c.l.b16 %v852
      %v1263 = vunpack.c.h.b16 %v852
      %v1264 = vunpack.c.l.b16 %v853
      %v1265 = vunpack.c.h.b16 %v853
      %v1266 = vunpack.c.l.b16 %v854
      %v1267 = vunpack.c.h.b16 %v854
      %v1268 = vunpack.c.l.b16 %v855
      %v1269 = vunpack.c.h.b16 %v855
      %v1270 = vunpack.c.l.b16 %v856
      %v1271 = vunpack.c.h.b16 %v856
      %v1272 = vunpack.c.l.b16 %v857
      %v1273 = vunpack.c.h.b16 %v857
      %v1274 = vunpack.c.l.b16 %v858
      %v1275 = vunpack.c.h.b16 %v858
      %v1276 = vunpack.c.l.b16 %v859
      %v1277 = vunpack.c.h.b16 %v859
      %v1278 = vunpack.c.l.b16 %v860
      %v1279 = vunpack.c.h.b16 %v860
      %v1280 = vunpack.c.l.b16 %v861
      %v1281 = vunpack.c.h.b16 %v861
      %v1282 = vunpack.c.l.b16 %v862
      %v1283 = vunpack.c.h.b16 %v862
      %v1284 = vunpack.c.l.b16 %v863
      %v1285 = vunpack.c.h.b16 %v863
      %v1286 = vunpack.c.l.b16 %v864
      %v1287 = vunpack.c.h.b16 %v864
      %v1288 = vunpack.c.l.b16 %v865
      %v1289 = vunpack.c.h.b16 %v865
      %v1290 = vunpack.c.l.b16 %v866
      %v1291 = vunpack.c.h.b16 %v866
      %v1292 = vunpack.c.l.b16 %v867
      %v1293 = vunpack.c.h.b16 %v867
      %v1294 = vunpack.c.l.b16 %v868
      %v1295 = vunpack.c.h.b16 %v868
      %v1296 = vunpack.c.l.b16 %v869
      %v1297 = vunpack.c.h.b16 %v869
      %v1298 = vunpack.c.l.b16 %v870
      %v1299 = vunpack.c.h.b16 %v870
      %v1300 = vunpack.c.l.b16 %v871
      %v1301 = vunpack.c.h.b16 %v871
      %v1302 = vunpack.c.l.b16 %v872
      %v1303 = vunpack.c.h.b16 %v872
      %v1304 = vunpack.c.l.b16 %v873
      %v1305 = vunpack.c.h.b16 %v873
      %v1306 = vunpack.c.l.b16 %v874
      %v1307 = vunpack.c.h.b16 %v874
      %v1308 = vunpack.c.l.b16 %v875
      %v1309 = vunpack.c.h.b16 %v875
      %v1310 = vunpack.c.l.b16 %v876
      %v1311 = vunpack.c.h.b16 %v876
      %v1312 = vunpack.c.l.b16 %v877
      %v1313 = vunpack.c.h.b16 %v877
      %v1314 = vunpack.c.l.b16 %v878
      %v1315 = vunpack.c.h.b16 %v878
      %v1316 = vunpack.c.l.b16 %v879
      %v1317 = vunpack.c.h.b16 %v879
      %v1318 = vunpack.c.l.b16 %v880
      %v1319 = vunpack.c.h.b16 %v880
      %v1320 = vunpack.c.l.b16 %v881
      %v1321 = vunpack.c.h.b16 %v881
      %v1322 = vunpack.c.l.b16 %v882
      %v1323 = vunpack.c.h.b16 %v882
      %v1324 = vunpack.c.l.b16 %v883
      %v1325 = vunpack.c.h.b16 %v883
      %v1326 = vunpack.c.l.b16 %v884
      %v1327 = vunpack.c.h.b16 %v884
      %v1328 = vunpack.c.l.b16 %v885
      %v1329 = vunpack.c.h.b16 %v885
      %v1330 = vunpack.c.l.b16 %v886
      %v1331 = vunpack.c.h.b16 %v886
      %v1332 = vunpack.c.l.b16 %v887
      %v1333 = vunpack.c.h.b16 %v887
      %v1334 = vunpack.c.l.b16 %v888
      %v1335 = vunpack.c.h.b16 %v888
      %v1336 = vunpack.c.l.b16 %v889
      %v1337 = vunpack.c.h.b16 %v889
      %v1338 = vunpack.c.l.b16 %v890
      %v1339 = vunpack.c.h.b16 %v890
      %v1340 = vunpack.c.l.b16 %v891
      %v1341 = vunpack.c.h.b16 %v891
      %v1342 = vunpack.c.l.b16 %v892
      %v1343 = vunpack.c.h.b16 %v892
      %v1344 = vunpack.c.l.b16 %v893
      %v1345 = vunpack.c.h.b16 %v893
      %v1346 = vunpack.c.l.b16 %v894
      %v1347 = vunpack.c.h.b16 %v894
      %v1348 = vunpack.c.l.b16 %v895
      %v1349 = vunpack.c.h.b16 %v895
      %v1350 = vunpack.c.l.b16 %v896
      %v1351 = vunpack.c.h.b16 %v896
      %v1352 = vunpack.c.l.b16 %v897
      %v1353 = vunpack.c.h.b16 %v897
      %v1354 = vunpack.c.l.b16 %v898
      %v1355 = vunpack.c.h.b16 %v898
      %v1356 = vunpack.c.l.b16 %v899
      %v1357 = vunpack.c.h.b16 %v899
      %v1358 = vunpack.c.l.b16 %v900
      %v1359 = vunpack.c.h.b16 %v900
      %v1360 = vunpack.c.l.b16 %v901
      %v1361 = vunpack.c.h.b16 %v901
      %v1362 = vunpack.c.l.b16 %v902
      %v1363 = vunpack.c.h.b16 %v902
      %v1364 = vunpack.c.l.b16 %v903
      %v1365 = vunpack.c.h.b16 %v903
      %v1366 = vunpack.c.l.b16 %v904
      %v1367 = vunpack.c.h.b16 %v904
      %v1368 = vunpack.c.l.b16 %v905
      %v1369 = vunpack.c.h.b16 %v905
      %v1370 = vunpack.c.l.b16 %v906
      %v1371 = vunpack.c.h.b16 %v906
      %v1372 = vunpack.c.l.b16 %v907
      %v1373 = vunpack.c.h.b16 %v907
      %v1374 = vunpack.c.l.b16 %v908
      %v1375 = vunpack.c.h.b16 %v908
      %v1376 = vunpack.c.l.b16 %v909
      %v1377 = vunpack.c.h.b16 %v909
      %v1378 = vunpack.c.l.b16 %v910
      %v1379 = vunpack.c.h.b16 %v910
      %v1380 = vunpack.c.l.b16 %v911
      %v1381 = vunpack.c.h.b16 %v911
      %v1382 = vunpack.c.l.b16 %v912
      %v1383 = vunpack.c.h.b16 %v912
      %v1384 = vunpack.c.l.b16 %v913
      %v1385 = vunpack.c.h.b16 %v913
      %v1386 = vunpack.c.l.b16 %v914
      %v1387 = vunpack.c.h.b16 %v914
      %v1388 = vunpack.c.l.b16 %v915
      %v1389 = vunpack.c.h.b16 %v915
      %v1390 = vunpack.c.l.b16 %v916
      %v1391 = vunpack.c.h.b16 %v916
      %v1392 = vunpack.c.l.b16 %v917
      %v1393 = vunpack.c.h.b16 %v917
      %v1394 = vunpack.c.l.b16 %v918
      %v1395 = vunpack.c.h.b16 %v918
      %v1396 = vunpack.c.l.b16 %v919
      %v1397 = vunpack.c.h.b16 %v919
      %v1398 = vpack.c.b16 %v1098, %v1094
      %v1399 = vpack.c.b16 %v1099, %v1095
      %v1400 = vpack.c.b16 %v1100, %v1096
      %v1401 = vpack.c.b16 %v1101, %v1097
      %v1402 = vpack.c.b16 %v1106, %v1102
      %v1403 = vpack.c.b16 %v1107, %v1103
      %v1404 = vpack.c.b16 %v1108, %v1104
      %v1405 = vpack.c.b16 %v1109, %v1105
      %v1406 = vpack.c.b16 %v1114, %v1110
      %v1407 = vpack.c.b16 %v1115, %v1111
      %v1408 = vpack.c.b16 %v1116, %v1112
      %v1409 = vpack.c.b16 %v1117, %v1113
      %v1410 = vpack.c.b16 %v1122, %v1118
      %v1411 = vpack.c.b16 %v1123, %v1119
      %v1412 = vpack.c.b16 %v1124, %v1120
      %v1413 = vpack.c.b16 %v1125, %v1121
      %v1414 = vpack.c.b16 %v1130, %v1126
      %v1415 = vpack.c.b16 %v1131, %v1127
      %v1416 = vpack.c.b16 %v1132, %v1128
      %v1417 = vpack.c.b16 %v1133, %v1129
      %v1418 = vpack.c.b16 %v1138, %v1134
      %v1419 = vpack.c.b16 %v1139, %v1135
      %v1420 = vpack.c.b16 %v1140, %v1136
      %v1421 = vpack.c.b16 %v1141, %v1137
      %v1422 = vpack.c.b16 %v1146, %v1142
      %v1423 = vpack.c.b16 %v1147, %v1143
      %v1424 = vpack.c.b16 %v1148, %v1144
      %v1425 = vpack.c.b16 %v1149, %v1145
      %v1426 = vpack.c.b16 %v1154, %v1150
      %v1427 = vpack.c.b16 %v1155, %v1151
      %v1428 = vpack.c.b16 %v1156, %v1152
      %v1429 = vpack.c.b16 %v1157, %v1153
      %v1430 = vpack.c.b16 %v1162, %v1158
      %v1431 = vpack.c.b16 %v1163, %v1159
      %v1432 = vpack.c.b16 %v1164, %v1160
      %v1433 = vpack.c.b16 %v1165, %v1161
      %v1434 = vpack.c.b16 %v1170, %v1166
      %v1435 = vpack.c.b16 %v1171, %v1167
      %v1436 = vpack.c.b16 %v1172, %v1168
      %v1437 = vpack.c.b16 %v1173, %v1169
      %v1438 = vpack.c.b16 %v1178, %v1174
      %v1439 = vpack.c.b16 %v1179, %v1175
      %v1440 = vpack.c.b16 %v1180, %v1176
      %v1441 = vpack.c.b16 %v1181, %v1177
      %v1442 = vpack.c.b16 %v1186, %v1182
      %v1443 = vpack.c.b16 %v1187, %v1183
      %v1444 = vpack.c.b16 %v1188, %v1184
      %v1445 = vpack.c.b16 %v1189, %v1185
      %v1446 = vpack.c.b16 %v1194, %v1190
      %v1447 = vpack.c.b16 %v1195, %v1191
      %v1448 = vpack.c.b16 %v1196, %v1192
      %v1449 = vpack.c.b16 %v1197, %v1193
      %v1450 = vpack.c.b16 %v1202, %v1198
      %v1451 = vpack.c.b16 %v1203, %v1199
      %v1452 = vpack.c.b16 %v1204, %v1200
      %v1453 = vpack.c.b16 %v1205, %v1201
      %v1454 = vpack.c.b16 %v1210, %v1206
      %v1455 = vpack.c.b16 %v1211, %v1207
      %v1456 = vpack.c.b16 %v1212, %v1208
      %v1457 = vpack.c.b16 %v1213, %v1209
      %v1458 = vpack.c.b16 %v1218, %v1214
      %v1459 = vpack.c.b16 %v1219, %v1215
      %v1460 = vpack.c.b16 %v1220, %v1216
      %v1461 = vpack.c.b16 %v1221, %v1217
      %v1462 = vpack.c.b16 %v1226, %v1222
      %v1463 = vpack.c.b16 %v1227, %v1223
      %v1464 = vpack.c.b16 %v1228, %v1224
      %v1465 = vpack.c.b16 %v1229, %v1225
      %v1466 = vpack.c.b16 %v1234, %v1230
      %v1467 = vpack.c.b16 %v1235, %v1231
      %v1468 = vpack.c.b16 %v1236, %v1232
      %v1469 = vpack.c.b16 %v1237, %v1233
      %v1470 = vpack.c.b16 %v1242, %v1238
      %v1471 = vpack.c.b16 %v1243, %v1239
      %v1472 = vpack.c.b16 %v1244, %v1240
      %v1473 = vpack.c.b16 %v1245, %v1241
      %v1474 = vpack.c.b16 %v1250, %v1246
      %v1475 = vpack.c.b16 %v1251, %v1247
      %v1476 = vpack.c.b16 %v1252, %v1248
      %v1477 = vpack.c.b16 %v1253, %v1249
      %v1478 = vpack.c.b16 %v1258, %v1254
      %v1479 = vpack.c.b16 %v1259, %v1255
      %v1480 = vpack.c.b16 %v1260, %v1256
      %v1481 = vpack.c.b16 %v1261, %v1257
      %v1482 = vpack.c.b16 %v1266, %v1262
      %v1483 = vpack.c.b16 %v1267, %v1263
      %v1484 = vpack.c.b16 %v1268, %v1264
      %v1485 = vpack.c.b16 %v1269, %v1265
      %v1486 = vpack.c.b16 %v1274, %v1270
      %v1487 = vpack.c.b16 %v1275, %v1271
      %v1488 = vpack.c.b16 %v1276, %v1272
      %v1489 = vpack.c.b16 %v1277, %v1273
      %v1490 = vpack.c.b16 %v1282, %v1278
      %v1491 = vpack.c.b16 %v1283, %v1279
      %v1492 = vpack.c.b16 %v1284, %v1280
      %v1493 = vpack.c.b16 %v1285, %v1281
      %v1494 = vpack.c.b16 %v1290, %v1286
      %v1495 = vpack.c.b16 %v1291, %v1287
      %v1496 = vpack.c.b16 %v1292, %v1288
      %v1497 = vpack.c.b16 %v1293, %v1289
      %v1498 = vpack.c.b16 %v1298, %v1294
      %v1499 = vpack.c.b16 %v1299, %v1295
      %v1500 = vpack.c.b16 %v1300, %v1296
      %v1501 = vpack.c.b16 %v1301, %v1297
      %v1502 = vpack.c.b16 %v1306, %v1302
      %v1503 = vpack.c.b16 %v1307, %v1303
      %v1504 = vpack.c.b16 %v1308, %v1304
      %v1505 = vpack.c.b16 %v1309, %v1305
      %v1506 = vpack.c.b16 %v1314, %v1310
      %v1507 = vpack.c.b16 %v1315, %v1311
      %v1508 = vpack.c.b16 %v1316, %v1312
      %v1509 = vpack.c.b16 %v1317, %v1313
      %v1510 = vpack.c.b16 %v1322, %v1318
      %v1511 = vpack.c.b16 %v1323, %v1319
      %v1512 = vpack.c.b16 %v1324, %v1320
      %v1513 = vpack.c.b16 %v1325, %v1321
      %v1514 = vpack.c.b16 %v1330, %v1326
      %v1515 = vpack.c.b16 %v1331, %v1327
      %v1516 = vpack.c.b16 %v1332, %v1328
      %v1517 = vpack.c.b16 %v1333, %v1329
      %v1518 = vpack.c.b16 %v1338, %v1334
      %v1519 = vpack.c.b16 %v1339, %v1335
      %v1520 = vpack.c.b16 %v1340, %v1336
      %v1521 = vpack.c.b16 %v1341, %v1337
      %v1522 = vpack.c.b16 %v1346, %v1342
      %v1523 = vpack.c.b16 %v1347, %v1343
      %v1524 = vpack.c.b16 %v1348, %v1344
      %v1525 = vpack.c.b16 %v1349, %v1345
      %v1526 = vpack.c.b16 %v1354, %v1350
      %v1527 = vpack.c.b16 %v1355, %v1351
      %v1528 = vpack.c.b16 %v1356, %v1352
      %v1529 = vpack.c.b16 %v1357, %v1353
      %v1530 = vpack.c.b16 %v1362, %v1358
      %v1531 = vpack.c.b16 %v1363, %v1359
      %v1532 = vpack.c.b16 %v1364, %v1360
      %v1533 = vpack.c.b16 %v1365, %v1361
      %v1534 = vpack.c.b16 %v1370, %v1366
      %v1535 = vpack.c.b16 %v1371, %v1367
      %v1536 = vpack.c.b16 %v1372, %v1368
      %v1537 = vpack.c.b16 %v1373, %v1369
      %v1538 = vpack.c.b16 %v1378, %v1374
      %v1539 = vpack.c.b16 %v1379, %v1375
      %v1540 = vpack.c.b16 %v1380, %v1376
      %v1541 = vpack.c.b16 %v1381, %v1377
      %v1542 = vpack.c.b16 %v1386, %v1382
      %v1543 = vpack.c.b16 %v1387, %v1383
      %v1544 = vpack.c.b16 %v1388, %v1384
      %v1545 = vpack.c.b16 %v1389, %v1385
      %v1546 = vpack.c.b16 %v1394, %v1390
      %v1547 = vpack.c.b16 %v1395, %v1391
      %v1548 = vpack.c.b16 %v1396, %v1392
      %v1549 = vpack.c.b16 %v1397, %v1393
      %vm1698 = vcmask 769024
      %v1700 = vsel %vm1698, %v612, 0
      %v1703 = vsel %vm1698, %v617, 0
      %v1706 = vsel %vm1698, %v622, 0
      %v1709 = vsel %vm1698, %v627, 0
      %v1712 = vsel %vm1698, %v632, 0
      %v1715 = vsel %vm1698, %v637, 0
      %v1718 = vsel %vm1698, %v642, 0
      %v1721 = vsel %vm1698, %v647, 0
      %v1724 = vsel %vm1698, %v652, 0
      %v1727 = vsel %vm1698, %v657, 0
      %v1730 = vsel %vm1698, %v662, 0
      %v1733 = vsel %vm1698, %v667, 0
      %v1736 = vsel %vm1698, %v672, 0
      %v1739 = vsel %vm1698, %v677, 0
      %v1742 = vsel %vm1698, %v682, 0
      %v1745 = vsel %vm1698, %v687, 0
      %v1748 = vsel %vm1698, %v692, 0
      %v1751 = vsel %vm1698, %v697, 0
      %v1754 = vsel %vm1698, %v702, 0
      %v1757 = vsel %vm1698, %v707, 0
      %v1760 = vsel %vm1698, %v712, 0
      %v1763 = vsel %vm1698, %v717, 0
      %v1766 = vsel %vm1698, %v722, 0
      %v1769 = vsel %vm1698, %v727, 0
      %v1772 = vsel %vm1698, %v732, 0
      %v1775 = vsel %vm1698, %v737, 0
      %v1778 = vsel %vm1698, %v742, 0
      %v1781 = vsel %vm1698, %v747, 0
      %v1784 = vsel %vm1698, %v752, 0
      %v1787 = vsel %vm1698, %v757, 0
      %v1790 = vsel %vm1698, %v762, 0
      %v1793 = vsel %vm1698, %v767, 0
      %vm1795 = vcmask 1046528
      %v1797 = vsel %vm1795, %v1546, 0
      %v1800 = vsel %vm1795, %v1547, 0
      %v1803 = vsel %vm1795, %v1548, 0
      %v1806 = vsel %vm1795, %v1549, 0
      %1808 = vmatprep.subr.bf16.mxu0 %v1427
      %1809 = vmatpush1.bf16.msra.mxu0 %v1426
      %1810 = vmatprep.subr.bf16.mxu0 %v1423
      %1811 = vmatpush1.bf16.msra.mxu0 %v1422
      %1812 = vmatprep.subr.bf16.mxu0 %v1419
      %1813 = vmatpush1.bf16.msra.mxu0 %v1418
      %1814 = vmatprep.subr.bf16.mxu0 %v1415
      %1815 = vmatpush1.bf16.msra.mxu0 %v1414
      %1816 = vmatprep.subr.bf16.mxu0 %v1411
      %1817 = vmatpush1.bf16.msra.mxu0 %v1410
      %1818 = vmatprep.subr.bf16.mxu0 %v1407
      %1819 = vmatpush1.bf16.msra.mxu0 %v1406
      %1820 = vmatprep.subr.bf16.mxu0 %v1403
      %1821 = vmatpush1.bf16.msra.mxu0 %v1402
      %1822 = vmatprep.subr.bf16.mxu0 %v1399
      %1823 = vmatpush1.bf16.msra.mxu0 %v1398
      %1824 = vmatprep.subr.bf16.mxu0 %v1459
      %1825 = vmatpush2.bf16.msra.mxu0 %v1458
      %1826 = vmatprep.subr.bf16.mxu0 %v1455
      %1827 = vmatpush2.bf16.msra.mxu0 %v1454
      %1828 = vmatprep.subr.bf16.mxu0 %v1451
      %1829 = vmatpush2.bf16.msra.mxu0 %v1450
      %1830 = vmatprep.subr.bf16.mxu0 %v1447
      %1831 = vmatpush2.bf16.msra.mxu0 %v1446
      %1832 = vmatprep.subr.bf16.mxu0 %v1443
      %1833 = vmatpush2.bf16.msra.mxu0 %v1442
      %1834 = vmatprep.subr.bf16.mxu0 %v1439
      %1835 = vmatpush2.bf16.msra.mxu0 %v1438
      %1836 = vmatprep.subr.bf16.mxu0 %v1435
      %1837 = vmatpush2.bf16.msra.mxu0 %v1434
      %1838 = vmatprep.subr.bf16.mxu0 %v1431
      %1839 = vmatpush2.bf16.msra.mxu0 %v1430
      %1840 = vmatprep.mubr.bf16.mxu0 %v609
      %1841 = vmatmul.mubr.bf16.gmra.mxu0 %v608
      %v1842 = vpop.f32.mrf.mxu0
      %v1843 = vadd.f32 %v925, %v1842
      %v1844 = vpop.f32.mrf.mxu0
      %v1845 = vadd.f32 %v929, %v1844
      %v1846 = vpop.f32.mrf.mxu0
      %v1847 = vadd.f32 %v925, %v1846
      %v1848 = vpop.f32.mrf.mxu0
      %v1849 = vadd.f32 %v929, %v1848
      %1850 = vmatprep.mubr.bf16.mxu0 %v614
      %1851 = vmatmul.mubr.bf16.gmra.mxu0 %v613
      %v1852 = vpop.f32.mrf.mxu0
      %v1853 = vadd.f32 %v925, %v1852
      %v1854 = vpop.f32.mrf.mxu0
      %v1855 = vadd.f32 %v929, %v1854
      %v1856 = vpop.f32.mrf.mxu0
      %v1857 = vadd.f32 %v925, %v1856
      %v1858 = vpop.f32.mrf.mxu0
      %v1859 = vadd.f32 %v929, %v1858
      %1860 = vmatprep.mubr.bf16.mxu0 %v619
      %1861 = vmatmul.mubr.bf16.gmra.mxu0 %v618
      %v1862 = vpop.f32.mrf.mxu0
      %v1863 = vadd.f32 %v925, %v1862
      %v1864 = vpop.f32.mrf.mxu0
      %v1865 = vadd.f32 %v929, %v1864
      %v1866 = vpop.f32.mrf.mxu0
      %v1867 = vadd.f32 %v925, %v1866
      %v1868 = vpop.f32.mrf.mxu0
      %v1869 = vadd.f32 %v929, %v1868
      %1870 = vmatprep.mubr.bf16.mxu0 %v624
      %1871 = vmatmul.mubr.bf16.gmra.mxu0 %v623
      %v1872 = vpop.f32.mrf.mxu0
      %v1873 = vadd.f32 %v925, %v1872
      %v1874 = vpop.f32.mrf.mxu0
      %v1875 = vadd.f32 %v929, %v1874
      %v1876 = vpop.f32.mrf.mxu0
      %v1877 = vadd.f32 %v925, %v1876
      %v1878 = vpop.f32.mrf.mxu0
      %v1879 = vadd.f32 %v929, %v1878
      %1880 = vmatprep.mubr.bf16.mxu0 %v629
      %1881 = vmatmul.mubr.bf16.gmra.mxu0 %v628
      %v1882 = vpop.f32.mrf.mxu0
      %v1883 = vadd.f32 %v925, %v1882
      %v1884 = vpop.f32.mrf.mxu0
      %v1885 = vadd.f32 %v929, %v1884
      %v1886 = vpop.f32.mrf.mxu0
      %v1887 = vadd.f32 %v925, %v1886
      %v1888 = vpop.f32.mrf.mxu0
      %v1889 = vadd.f32 %v929, %v1888
      %1890 = vmatprep.mubr.bf16.mxu0 %v634
      %1891 = vmatmul.mubr.bf16.gmra.mxu0 %v633
      %v1892 = vpop.f32.mrf.mxu0
      %v1893 = vadd.f32 %v925, %v1892
      %v1894 = vpop.f32.mrf.mxu0
      %v1895 = vadd.f32 %v929, %v1894
      %v1896 = vpop.f32.mrf.mxu0
      %v1897 = vadd.f32 %v925, %v1896
      %v1898 = vpop.f32.mrf.mxu0
      %v1899 = vadd.f32 %v929, %v1898
      %1900 = vmatprep.mubr.bf16.mxu0 %v639
      %1901 = vmatmul.mubr.bf16.gmra.mxu0 %v638
      %v1902 = vpop.f32.mrf.mxu0
      %v1903 = vadd.f32 %v925, %v1902
      %v1904 = vpop.f32.mrf.mxu0
      %v1905 = vadd.f32 %v929, %v1904
      %v1906 = vpop.f32.mrf.mxu0
      %v1907 = vadd.f32 %v925, %v1906
      %v1908 = vpop.f32.mrf.mxu0
      %v1909 = vadd.f32 %v929, %v1908
      %1910 = vmatprep.mubr.bf16.mxu0 %v644
      %1911 = vmatmul.mubr.bf16.gmra.mxu0 %v643
      %v1912 = vpop.f32.mrf.mxu0
      %v1913 = vadd.f32 %v925, %v1912
      %v1914 = vpop.f32.mrf.mxu0
      %v1915 = vadd.f32 %v929, %v1914
      %v1916 = vpop.f32.mrf.mxu0
      %v1917 = vadd.f32 %v925, %v1916
      %v1918 = vpop.f32.mrf.mxu0
      %v1919 = vadd.f32 %v929, %v1918
      %1920 = vmatprep.mubr.bf16.mxu0 %v649
      %1921 = vmatmul.mubr.bf16.gmra.mxu0 %v648
      %v1922 = vpop.f32.mrf.mxu0
      %v1923 = vadd.f32 %v925, %v1922
      %v1924 = vpop.f32.mrf.mxu0
      %v1925 = vadd.f32 %v929, %v1924
      %v1926 = vpop.f32.mrf.mxu0
      %v1927 = vadd.f32 %v925, %v1926
      %v1928 = vpop.f32.mrf.mxu0
      %v1929 = vadd.f32 %v929, %v1928
      %1930 = vmatprep.mubr.bf16.mxu0 %v654
      %1931 = vmatmul.mubr.bf16.gmra.mxu0 %v653
      %v1932 = vpop.f32.mrf.mxu0
      %v1933 = vadd.f32 %v925, %v1932
      %v1934 = vpop.f32.mrf.mxu0
      %v1935 = vadd.f32 %v929, %v1934
      %v1936 = vpop.f32.mrf.mxu0
      %v1937 = vadd.f32 %v925, %v1936
      %v1938 = vpop.f32.mrf.mxu0
      %v1939 = vadd.f32 %v929, %v1938
      %1940 = vmatprep.mubr.bf16.mxu0 %v659
      %1941 = vmatmul.mubr.bf16.gmra.mxu0 %v658
      %v1942 = vpop.f32.mrf.mxu0
      %v1943 = vadd.f32 %v925, %v1942
      %v1944 = vpop.f32.mrf.mxu0
      %v1945 = vadd.f32 %v929, %v1944
      %v1946 = vpop.f32.mrf.mxu0
      %v1947 = vadd.f32 %v925, %v1946
      %v1948 = vpop.f32.mrf.mxu0
      %v1949 = vadd.f32 %v929, %v1948
      %1950 = vmatprep.mubr.bf16.mxu0 %v664
      %1951 = vmatmul.mubr.bf16.gmra.mxu0 %v663
      %v1952 = vpop.f32.mrf.mxu0
      %v1953 = vadd.f32 %v925, %v1952
      %v1954 = vpop.f32.mrf.mxu0
      %v1955 = vadd.f32 %v929, %v1954
      %v1956 = vpop.f32.mrf.mxu0
      %v1957 = vadd.f32 %v925, %v1956
      %v1958 = vpop.f32.mrf.mxu0
      %v1959 = vadd.f32 %v929, %v1958
      %1960 = vmatprep.mubr.bf16.mxu0 %v669
      %1961 = vmatmul.mubr.bf16.gmra.mxu0 %v668
      %v1962 = vpop.f32.mrf.mxu0
      %v1963 = vadd.f32 %v925, %v1962
      %v1964 = vpop.f32.mrf.mxu0
      %v1965 = vadd.f32 %v929, %v1964
      %v1966 = vpop.f32.mrf.mxu0
      %v1967 = vadd.f32 %v925, %v1966
      %v1968 = vpop.f32.mrf.mxu0
      %v1969 = vadd.f32 %v929, %v1968
      %1970 = vmatprep.mubr.bf16.mxu0 %v674
      %1971 = vmatmul.mubr.bf16.gmra.mxu0 %v673
      %v1972 = vpop.f32.mrf.mxu0
      %v1973 = vadd.f32 %v925, %v1972
      %v1974 = vpop.f32.mrf.mxu0
      %v1975 = vadd.f32 %v929, %v1974
      %v1976 = vpop.f32.mrf.mxu0
      %v1977 = vadd.f32 %v925, %v1976
      %v1978 = vpop.f32.mrf.mxu0
      %v1979 = vadd.f32 %v929, %v1978
      %1980 = vmatprep.mubr.bf16.mxu0 %v679
      %1981 = vmatmul.mubr.bf16.gmra.mxu0 %v678
      %v1982 = vpop.f32.mrf.mxu0
      %v1983 = vadd.f32 %v925, %v1982
      %v1984 = vpop.f32.mrf.mxu0
      %v1985 = vadd.f32 %v929, %v1984
      %v1986 = vpop.f32.mrf.mxu0
      %v1987 = vadd.f32 %v925, %v1986
      %v1988 = vpop.f32.mrf.mxu0
      %v1989 = vadd.f32 %v929, %v1988
      %1990 = vmatprep.mubr.bf16.mxu0 %v684
      %1991 = vmatmul.mubr.bf16.gmra.mxu0 %v683
      %v1992 = vpop.f32.mrf.mxu0
      %v1993 = vadd.f32 %v925, %v1992
      %v1994 = vpop.f32.mrf.mxu0
      %v1995 = vadd.f32 %v929, %v1994
      %v1996 = vpop.f32.mrf.mxu0
      %v1997 = vadd.f32 %v925, %v1996
      %v1998 = vpop.f32.mrf.mxu0
      %v1999 = vadd.f32 %v929, %v1998
      %2000 = vmatprep.mubr.bf16.mxu0 %v689
      %2001 = vmatmul.mubr.bf16.gmra.mxu0 %v688
      %v2002 = vpop.f32.mrf.mxu0
      %v2003 = vadd.f32 %v925, %v2002
      %v2004 = vpop.f32.mrf.mxu0
      %v2005 = vadd.f32 %v929, %v2004
      %v2006 = vpop.f32.mrf.mxu0
      %v2007 = vadd.f32 %v925, %v2006
      %v2008 = vpop.f32.mrf.mxu0
      %v2009 = vadd.f32 %v929, %v2008
      %2010 = vmatprep.mubr.bf16.mxu0 %v694
      %2011 = vmatmul.mubr.bf16.gmra.mxu0 %v693
      %v2012 = vpop.f32.mrf.mxu0
      %v2013 = vadd.f32 %v925, %v2012
      %v2014 = vpop.f32.mrf.mxu0
      %v2015 = vadd.f32 %v929, %v2014
      %v2016 = vpop.f32.mrf.mxu0
      %v2017 = vadd.f32 %v925, %v2016
      %v2018 = vpop.f32.mrf.mxu0
      %v2019 = vadd.f32 %v929, %v2018
      %2020 = vmatprep.mubr.bf16.mxu0 %v699
      %2021 = vmatmul.mubr.bf16.gmra.mxu0 %v698
      %v2022 = vpop.f32.mrf.mxu0
      %v2023 = vadd.f32 %v925, %v2022
      %v2024 = vpop.f32.mrf.mxu0
      %v2025 = vadd.f32 %v929, %v2024
      %v2026 = vpop.f32.mrf.mxu0
      %v2027 = vadd.f32 %v925, %v2026
      %v2028 = vpop.f32.mrf.mxu0
      %v2029 = vadd.f32 %v929, %v2028
      %2030 = vmatprep.mubr.bf16.mxu0 %v704
      %2031 = vmatmul.mubr.bf16.gmra.mxu0 %v703
      %v2032 = vpop.f32.mrf.mxu0
      %v2033 = vadd.f32 %v925, %v2032
      %v2034 = vpop.f32.mrf.mxu0
      %v2035 = vadd.f32 %v929, %v2034
      %v2036 = vpop.f32.mrf.mxu0
      %v2037 = vadd.f32 %v925, %v2036
      %v2038 = vpop.f32.mrf.mxu0
      %v2039 = vadd.f32 %v929, %v2038
      %2040 = vmatprep.mubr.bf16.mxu0 %v709
      %2041 = vmatmul.mubr.bf16.gmra.mxu0 %v708
      %v2042 = vpop.f32.mrf.mxu0
      %v2043 = vadd.f32 %v925, %v2042
      %v2044 = vpop.f32.mrf.mxu0
      %v2045 = vadd.f32 %v929, %v2044
      %v2046 = vpop.f32.mrf.mxu0
      %v2047 = vadd.f32 %v925, %v2046
      %v2048 = vpop.f32.mrf.mxu0
      %v2049 = vadd.f32 %v929, %v2048
      %2050 = vmatprep.mubr.bf16.mxu0 %v714
      %2051 = vmatmul.mubr.bf16.gmra.mxu0 %v713
      %v2052 = vpop.f32.mrf.mxu0
      %v2053 = vadd.f32 %v925, %v2052
      %v2054 = vpop.f32.mrf.mxu0
      %v2055 = vadd.f32 %v929, %v2054
      %v2056 = vpop.f32.mrf.mxu0
      %v2057 = vadd.f32 %v925, %v2056
      %v2058 = vpop.f32.mrf.mxu0
      %v2059 = vadd.f32 %v929, %v2058
      %2060 = vmatprep.mubr.bf16.mxu0 %v719
      %2061 = vmatmul.mubr.bf16.gmra.mxu0 %v718
      %v2062 = vpop.f32.mrf.mxu0
      %v2063 = vadd.f32 %v925, %v2062
      %v2064 = vpop.f32.mrf.mxu0
      %v2065 = vadd.f32 %v929, %v2064
      %v2066 = vpop.f32.mrf.mxu0
      %v2067 = vadd.f32 %v925, %v2066
      %v2068 = vpop.f32.mrf.mxu0
      %v2069 = vadd.f32 %v929, %v2068
      %2070 = vmatprep.mubr.bf16.mxu0 %v724
      %2071 = vmatmul.mubr.bf16.gmra.mxu0 %v723
      %v2072 = vpop.f32.mrf.mxu0
      %v2073 = vadd.f32 %v925, %v2072
      %v2074 = vpop.f32.mrf.mxu0
      %v2075 = vadd.f32 %v929, %v2074
      %v2076 = vpop.f32.mrf.mxu0
      %v2077 = vadd.f32 %v925, %v2076
      %v2078 = vpop.f32.mrf.mxu0
      %v2079 = vadd.f32 %v929, %v2078
      %2080 = vmatprep.mubr.bf16.mxu0 %v729
      %2081 = vmatmul.mubr.bf16.gmra.mxu0 %v728
      %v2082 = vpop.f32.mrf.mxu0
      %v2083 = vadd.f32 %v925, %v2082
      %v2084 = vpop.f32.mrf.mxu0
      %v2085 = vadd.f32 %v929, %v2084
      %v2086 = vpop.f32.mrf.mxu0
      %v2087 = vadd.f32 %v925, %v2086
      %v2088 = vpop.f32.mrf.mxu0
      %v2089 = vadd.f32 %v929, %v2088
      %2090 = vmatprep.mubr.bf16.mxu0 %v734
      %2091 = vmatmul.mubr.bf16.gmra.mxu0 %v733
      %v2092 = vpop.f32.mrf.mxu0
      %v2093 = vadd.f32 %v925, %v2092
      %v2094 = vpop.f32.mrf.mxu0
      %v2095 = vadd.f32 %v929, %v2094
      %v2096 = vpop.f32.mrf.mxu0
      %v2097 = vadd.f32 %v925, %v2096
      %v2098 = vpop.f32.mrf.mxu0
      %v2099 = vadd.f32 %v929, %v2098
      %2100 = vmatprep.mubr.bf16.mxu0 %v739
      %2101 = vmatmul.mubr.bf16.gmra.mxu0 %v738
      %v2102 = vpop.f32.mrf.mxu0
      %v2103 = vadd.f32 %v925, %v2102
      %v2104 = vpop.f32.mrf.mxu0
      %v2105 = vadd.f32 %v929, %v2104
      %v2106 = vpop.f32.mrf.mxu0
      %v2107 = vadd.f32 %v925, %v2106
      %v2108 = vpop.f32.mrf.mxu0
      %v2109 = vadd.f32 %v929, %v2108
      %2110 = vmatprep.mubr.bf16.mxu0 %v744
      %2111 = vmatmul.mubr.bf16.gmra.mxu0 %v743
      %v2112 = vpop.f32.mrf.mxu0
      %v2113 = vadd.f32 %v925, %v2112
      %v2114 = vpop.f32.mrf.mxu0
      %v2115 = vadd.f32 %v929, %v2114
      %v2116 = vpop.f32.mrf.mxu0
      %v2117 = vadd.f32 %v925, %v2116
      %v2118 = vpop.f32.mrf.mxu0
      %v2119 = vadd.f32 %v929, %v2118
      %2120 = vmatprep.mubr.bf16.mxu0 %v749
      %2121 = vmatmul.mubr.bf16.gmra.mxu0 %v748
      %v2122 = vpop.f32.mrf.mxu0
      %v2123 = vadd.f32 %v925, %v2122
      %v2124 = vpop.f32.mrf.mxu0
      %v2125 = vadd.f32 %v929, %v2124
      %v2126 = vpop.f32.mrf.mxu0
      %v2127 = vadd.f32 %v925, %v2126
      %v2128 = vpop.f32.mrf.mxu0
      %v2129 = vadd.f32 %v929, %v2128
      %2130 = vmatprep.mubr.bf16.mxu0 %v754
      %2131 = vmatmul.mubr.bf16.gmra.mxu0 %v753
      %v2132 = vpop.f32.mrf.mxu0
      %v2133 = vadd.f32 %v925, %v2132
      %v2134 = vpop.f32.mrf.mxu0
      %v2135 = vadd.f32 %v929, %v2134
      %v2136 = vpop.f32.mrf.mxu0
      %v2137 = vadd.f32 %v925, %v2136
      %v2138 = vpop.f32.mrf.mxu0
      %v2139 = vadd.f32 %v929, %v2138
      %2140 = vmatprep.mubr.bf16.mxu0 %v759
      %2141 = vmatmul.mubr.bf16.gmra.mxu0 %v758
      %v2142 = vpop.f32.mrf.mxu0
      %v2143 = vadd.f32 %v925, %v2142
      %v2144 = vpop.f32.mrf.mxu0
      %v2145 = vadd.f32 %v929, %v2144
      %v2146 = vpop.f32.mrf.mxu0
      %v2147 = vadd.f32 %v925, %v2146
      %v2148 = vpop.f32.mrf.mxu0
      %v2149 = vadd.f32 %v929, %v2148
      %2150 = vmatprep.mubr.bf16.mxu0 %v764
      %2151 = vmatmul.mubr.bf16.gmra.mxu0 %v763
      %v2152 = vpop.f32.mrf.mxu0
      %v2153 = vadd.f32 %v925, %v2152
      %v2154 = vpop.f32.mrf.mxu0
      %v2155 = vadd.f32 %v929, %v2154
      %v2156 = vpop.f32.mrf.mxu0
      %v2157 = vadd.f32 %v925, %v2156
      %v2158 = vpop.f32.mrf.mxu0
      %v2159 = vadd.f32 %v929, %v2158
      %2160 = vdwg.mxu0
      %2161 = vmatprep.subr.bf16.mxu0 %v1491
      %2162 = vmatpush1.bf16.msra.mxu0 %v1490
      %2163 = vmatprep.subr.bf16.mxu0 %v1487
      %2164 = vmatpush1.bf16.msra.mxu0 %v1486
      %2165 = vmatprep.subr.bf16.mxu0 %v1483
      %2166 = vmatpush1.bf16.msra.mxu0 %v1482
      %2167 = vmatprep.subr.bf16.mxu0 %v1479
      %2168 = vmatpush1.bf16.msra.mxu0 %v1478
      %2169 = vmatprep.subr.bf16.mxu0 %v1475
      %2170 = vmatpush1.bf16.msra.mxu0 %v1474
      %2171 = vmatprep.subr.bf16.mxu0 %v1471
      %2172 = vmatpush1.bf16.msra.mxu0 %v1470
      %2173 = vmatprep.subr.bf16.mxu0 %v1467
      %2174 = vmatpush1.bf16.msra.mxu0 %v1466
      %2175 = vmatprep.subr.bf16.mxu0 %v1463
      %2176 = vmatpush1.bf16.msra.mxu0 %v1462
      %2177 = vmatprep.subr.bf16.mxu0 %v1523
      %2178 = vmatpush2.bf16.msra.mxu0 %v1522
      %2179 = vmatprep.subr.bf16.mxu0 %v1519
      %2180 = vmatpush2.bf16.msra.mxu0 %v1518
      %2181 = vmatprep.subr.bf16.mxu0 %v1515
      %2182 = vmatpush2.bf16.msra.mxu0 %v1514
      %2183 = vmatprep.subr.bf16.mxu0 %v1511
      %2184 = vmatpush2.bf16.msra.mxu0 %v1510
      %2185 = vmatprep.subr.bf16.mxu0 %v1507
      %2186 = vmatpush2.bf16.msra.mxu0 %v1506
      %2187 = vmatprep.subr.bf16.mxu0 %v1503
      %2188 = vmatpush2.bf16.msra.mxu0 %v1502
      %2189 = vmatprep.subr.bf16.mxu0 %v1499
      %2190 = vmatpush2.bf16.msra.mxu0 %v1498
      %2191 = vmatprep.subr.bf16.mxu0 %v1495
      %2192 = vmatpush2.bf16.msra.mxu0 %v1494
      %2193 = vmatprep.mubr.bf16.mxu0 %v611
      %2194 = vmatmul.mubr.bf16.gmra.mxu0 %v610
      %v2195 = vpop.f32.mrf.mxu0
      %v2196 = vadd.f32 %v1843, %v2195
      %v2197 = vpop.f32.mrf.mxu0
      %v2198 = vadd.f32 %v1845, %v2197
      %v2199 = vpop.f32.mrf.mxu0
      %v2200 = vadd.f32 %v1847, %v2199
      %v2201 = vpop.f32.mrf.mxu0
      %v2202 = vadd.f32 %v1849, %v2201
      %2203 = vmatprep.mubr.bf16.mxu0 %v616
      %2204 = vmatmul.mubr.bf16.gmra.mxu0 %v615
      %v2205 = vpop.f32.mrf.mxu0
      %v2206 = vadd.f32 %v1853, %v2205
      %v2207 = vpop.f32.mrf.mxu0
      %v2208 = vadd.f32 %v1855, %v2207
      %v2209 = vpop.f32.mrf.mxu0
      %v2210 = vadd.f32 %v1857, %v2209
      %v2211 = vpop.f32.mrf.mxu0
      %v2212 = vadd.f32 %v1859, %v2211
      %2213 = vmatprep.mubr.bf16.mxu0 %v621
      %2214 = vmatmul.mubr.bf16.gmra.mxu0 %v620
      %v2215 = vpop.f32.mrf.mxu0
      %v2216 = vadd.f32 %v1863, %v2215
      %v2217 = vpop.f32.mrf.mxu0
      %v2218 = vadd.f32 %v1865, %v2217
      %v2219 = vpop.f32.mrf.mxu0
      %v2220 = vadd.f32 %v1867, %v2219
      %v2221 = vpop.f32.mrf.mxu0
      %v2222 = vadd.f32 %v1869, %v2221
      %2223 = vmatprep.mubr.bf16.mxu0 %v626
      %2224 = vmatmul.mubr.bf16.gmra.mxu0 %v625
      %v2225 = vpop.f32.mrf.mxu0
      %v2226 = vadd.f32 %v1873, %v2225
      %v2227 = vpop.f32.mrf.mxu0
      %v2228 = vadd.f32 %v1875, %v2227
      %v2229 = vpop.f32.mrf.mxu0
      %v2230 = vadd.f32 %v1877, %v2229
      %v2231 = vpop.f32.mrf.mxu0
      %v2232 = vadd.f32 %v1879, %v2231
      %2233 = vmatprep.mubr.bf16.mxu0 %v631
      %2234 = vmatmul.mubr.bf16.gmra.mxu0 %v630
      %v2235 = vpop.f32.mrf.mxu0
      %v2236 = vadd.f32 %v1883, %v2235
      %v2237 = vpop.f32.mrf.mxu0
      %v2238 = vadd.f32 %v1885, %v2237
      %v2239 = vpop.f32.mrf.mxu0
      %v2240 = vadd.f32 %v1887, %v2239
      %v2241 = vpop.f32.mrf.mxu0
      %v2242 = vadd.f32 %v1889, %v2241
      %2243 = vmatprep.mubr.bf16.mxu0 %v636
      %2244 = vmatmul.mubr.bf16.gmra.mxu0 %v635
      %v2245 = vpop.f32.mrf.mxu0
      %v2246 = vadd.f32 %v1893, %v2245
      %v2247 = vpop.f32.mrf.mxu0
      %v2248 = vadd.f32 %v1895, %v2247
      %v2249 = vpop.f32.mrf.mxu0
      %v2250 = vadd.f32 %v1897, %v2249
      %v2251 = vpop.f32.mrf.mxu0
      %v2252 = vadd.f32 %v1899, %v2251
      %2253 = vmatprep.mubr.bf16.mxu0 %v641
      %2254 = vmatmul.mubr.bf16.gmra.mxu0 %v640
      %v2255 = vpop.f32.mrf.mxu0
      %v2256 = vadd.f32 %v1903, %v2255
      %v2257 = vpop.f32.mrf.mxu0
      %v2258 = vadd.f32 %v1905, %v2257
      %v2259 = vpop.f32.mrf.mxu0
      %v2260 = vadd.f32 %v1907, %v2259
      %v2261 = vpop.f32.mrf.mxu0
      %v2262 = vadd.f32 %v1909, %v2261
      %2263 = vmatprep.mubr.bf16.mxu0 %v646
      %2264 = vmatmul.mubr.bf16.gmra.mxu0 %v645
      %v2265 = vpop.f32.mrf.mxu0
      %v2266 = vadd.f32 %v1913, %v2265
      %v2267 = vpop.f32.mrf.mxu0
      %v2268 = vadd.f32 %v1915, %v2267
      %v2269 = vpop.f32.mrf.mxu0
      %v2270 = vadd.f32 %v1917, %v2269
      %v2271 = vpop.f32.mrf.mxu0
      %v2272 = vadd.f32 %v1919, %v2271
      %2273 = vmatprep.mubr.bf16.mxu0 %v651
      %2274 = vmatmul.mubr.bf16.gmra.mxu0 %v650
      %v2275 = vpop.f32.mrf.mxu0
      %v2276 = vadd.f32 %v1923, %v2275
      %v2277 = vpop.f32.mrf.mxu0
      %v2278 = vadd.f32 %v1925, %v2277
      %v2279 = vpop.f32.mrf.mxu0
      %v2280 = vadd.f32 %v1927, %v2279
      %v2281 = vpop.f32.mrf.mxu0
      %v2282 = vadd.f32 %v1929, %v2281
      %2283 = vmatprep.mubr.bf16.mxu0 %v656
      %2284 = vmatmul.mubr.bf16.gmra.mxu0 %v655
      %v2285 = vpop.f32.mrf.mxu0
      %v2286 = vadd.f32 %v1933, %v2285
      %v2287 = vpop.f32.mrf.mxu0
      %v2288 = vadd.f32 %v1935, %v2287
      %v2289 = vpop.f32.mrf.mxu0
      %v2290 = vadd.f32 %v1937, %v2289
      %v2291 = vpop.f32.mrf.mxu0
      %v2292 = vadd.f32 %v1939, %v2291
      %2293 = vmatprep.mubr.bf16.mxu0 %v661
      %2294 = vmatmul.mubr.bf16.gmra.mxu0 %v660
      %v2295 = vpop.f32.mrf.mxu0
      %v2296 = vadd.f32 %v1943, %v2295
      %v2297 = vpop.f32.mrf.mxu0
      %v2298 = vadd.f32 %v1945, %v2297
      %v2299 = vpop.f32.mrf.mxu0
      %v2300 = vadd.f32 %v1947, %v2299
      %v2301 = vpop.f32.mrf.mxu0
      %v2302 = vadd.f32 %v1949, %v2301
      %2303 = vmatprep.mubr.bf16.mxu0 %v666
      %2304 = vmatmul.mubr.bf16.gmra.mxu0 %v665
      %v2305 = vpop.f32.mrf.mxu0
      %v2306 = vadd.f32 %v1953, %v2305
      %v2307 = vpop.f32.mrf.mxu0
      %v2308 = vadd.f32 %v1955, %v2307
      %v2309 = vpop.f32.mrf.mxu0
      %v2310 = vadd.f32 %v1957, %v2309
      %v2311 = vpop.f32.mrf.mxu0
      %v2312 = vadd.f32 %v1959, %v2311
      %2313 = vmatprep.mubr.bf16.mxu0 %v671
      %2314 = vmatmul.mubr.bf16.gmra.mxu0 %v670
      %v2315 = vpop.f32.mrf.mxu0
      %v2316 = vadd.f32 %v1963, %v2315
      %v2317 = vpop.f32.mrf.mxu0
      %v2318 = vadd.f32 %v1965, %v2317
      %v2319 = vpop.f32.mrf.mxu0
      %v2320 = vadd.f32 %v1967, %v2319
      %v2321 = vpop.f32.mrf.mxu0
      %v2322 = vadd.f32 %v1969, %v2321
      %2323 = vmatprep.mubr.bf16.mxu0 %v676
      %2324 = vmatmul.mubr.bf16.gmra.mxu0 %v675
      %v2325 = vpop.f32.mrf.mxu0
      %v2326 = vadd.f32 %v1973, %v2325
      %v2327 = vpop.f32.mrf.mxu0
      %v2328 = vadd.f32 %v1975, %v2327
      %v2329 = vpop.f32.mrf.mxu0
      %v2330 = vadd.f32 %v1977, %v2329
      %v2331 = vpop.f32.mrf.mxu0
      %v2332 = vadd.f32 %v1979, %v2331
      %2333 = vmatprep.mubr.bf16.mxu0 %v681
      %2334 = vmatmul.mubr.bf16.gmra.mxu0 %v680
      %v2335 = vpop.f32.mrf.mxu0
      %v2336 = vadd.f32 %v1983, %v2335
      %v2337 = vpop.f32.mrf.mxu0
      %v2338 = vadd.f32 %v1985, %v2337
      %v2339 = vpop.f32.mrf.mxu0
      %v2340 = vadd.f32 %v1987, %v2339
      %v2341 = vpop.f32.mrf.mxu0
      %v2342 = vadd.f32 %v1989, %v2341
      %2343 = vmatprep.mubr.bf16.mxu0 %v686
      %2344 = vmatmul.mubr.bf16.gmra.mxu0 %v685
      %v2345 = vpop.f32.mrf.mxu0
      %v2346 = vadd.f32 %v1993, %v2345
      %v2347 = vpop.f32.mrf.mxu0
      %v2348 = vadd.f32 %v1995, %v2347
      %v2349 = vpop.f32.mrf.mxu0
      %v2350 = vadd.f32 %v1997, %v2349
      %v2351 = vpop.f32.mrf.mxu0
      %v2352 = vadd.f32 %v1999, %v2351
      %2353 = vmatprep.mubr.bf16.mxu0 %v691
      %2354 = vmatmul.mubr.bf16.gmra.mxu0 %v690
      %v2355 = vpop.f32.mrf.mxu0
      %v2356 = vadd.f32 %v2003, %v2355
      %v2357 = vpop.f32.mrf.mxu0
      %v2358 = vadd.f32 %v2005, %v2357
      %v2359 = vpop.f32.mrf.mxu0
      %v2360 = vadd.f32 %v2007, %v2359
      %v2361 = vpop.f32.mrf.mxu0
      %v2362 = vadd.f32 %v2009, %v2361
      %2363 = vmatprep.mubr.bf16.mxu0 %v696
      %2364 = vmatmul.mubr.bf16.gmra.mxu0 %v695
      %v2365 = vpop.f32.mrf.mxu0
      %v2366 = vadd.f32 %v2013, %v2365
      %v2367 = vpop.f32.mrf.mxu0
      %v2368 = vadd.f32 %v2015, %v2367
      %v2369 = vpop.f32.mrf.mxu0
      %v2370 = vadd.f32 %v2017, %v2369
      %v2371 = vpop.f32.mrf.mxu0
      %v2372 = vadd.f32 %v2019, %v2371
      %2373 = vmatprep.mubr.bf16.mxu0 %v701
      %2374 = vmatmul.mubr.bf16.gmra.mxu0 %v700
      %v2375 = vpop.f32.mrf.mxu0
      %v2376 = vadd.f32 %v2023, %v2375
      %v2377 = vpop.f32.mrf.mxu0
      %v2378 = vadd.f32 %v2025, %v2377
      %v2379 = vpop.f32.mrf.mxu0
      %v2380 = vadd.f32 %v2027, %v2379
      %v2381 = vpop.f32.mrf.mxu0
      %v2382 = vadd.f32 %v2029, %v2381
      %2383 = vmatprep.mubr.bf16.mxu0 %v706
      %2384 = vmatmul.mubr.bf16.gmra.mxu0 %v705
      %v2385 = vpop.f32.mrf.mxu0
      %v2386 = vadd.f32 %v2033, %v2385
      %v2387 = vpop.f32.mrf.mxu0
      %v2388 = vadd.f32 %v2035, %v2387
      %v2389 = vpop.f32.mrf.mxu0
      %v2390 = vadd.f32 %v2037, %v2389
      %v2391 = vpop.f32.mrf.mxu0
      %v2392 = vadd.f32 %v2039, %v2391
      %2393 = vmatprep.mubr.bf16.mxu0 %v711
      %2394 = vmatmul.mubr.bf16.gmra.mxu0 %v710
      %v2395 = vpop.f32.mrf.mxu0
      %v2396 = vadd.f32 %v2043, %v2395
      %v2397 = vpop.f32.mrf.mxu0
      %v2398 = vadd.f32 %v2045, %v2397
      %v2399 = vpop.f32.mrf.mxu0
      %v2400 = vadd.f32 %v2047, %v2399
      %v2401 = vpop.f32.mrf.mxu0
      %v2402 = vadd.f32 %v2049, %v2401
      %2403 = vmatprep.mubr.bf16.mxu0 %v716
      %2404 = vmatmul.mubr.bf16.gmra.mxu0 %v715
      %v2405 = vpop.f32.mrf.mxu0
      %v2406 = vadd.f32 %v2053, %v2405
      %v2407 = vpop.f32.mrf.mxu0
      %v2408 = vadd.f32 %v2055, %v2407
      %v2409 = vpop.f32.mrf.mxu0
      %v2410 = vadd.f32 %v2057, %v2409
      %v2411 = vpop.f32.mrf.mxu0
      %v2412 = vadd.f32 %v2059, %v2411
      %2413 = vmatprep.mubr.bf16.mxu0 %v721
      %2414 = vmatmul.mubr.bf16.gmra.mxu0 %v720
      %v2415 = vpop.f32.mrf.mxu0
      %v2416 = vadd.f32 %v2063, %v2415
      %v2417 = vpop.f32.mrf.mxu0
      %v2418 = vadd.f32 %v2065, %v2417
      %v2419 = vpop.f32.mrf.mxu0
      %v2420 = vadd.f32 %v2067, %v2419
      %v2421 = vpop.f32.mrf.mxu0
      %v2422 = vadd.f32 %v2069, %v2421
      %2423 = vmatprep.mubr.bf16.mxu0 %v726
      %2424 = vmatmul.mubr.bf16.gmra.mxu0 %v725
      %v2425 = vpop.f32.mrf.mxu0
      %v2426 = vadd.f32 %v2073, %v2425
      %v2427 = vpop.f32.mrf.mxu0
      %v2428 = vadd.f32 %v2075, %v2427
      %v2429 = vpop.f32.mrf.mxu0
      %v2430 = vadd.f32 %v2077, %v2429
      %v2431 = vpop.f32.mrf.mxu0
      %v2432 = vadd.f32 %v2079, %v2431
      %2433 = vmatprep.mubr.bf16.mxu0 %v731
      %2434 = vmatmul.mubr.bf16.gmra.mxu0 %v730
      %v2435 = vpop.f32.mrf.mxu0
      %v2436 = vadd.f32 %v2083, %v2435
      %v2437 = vpop.f32.mrf.mxu0
      %v2438 = vadd.f32 %v2085, %v2437
      %v2439 = vpop.f32.mrf.mxu0
      %v2440 = vadd.f32 %v2087, %v2439
      %v2441 = vpop.f32.mrf.mxu0
      %v2442 = vadd.f32 %v2089, %v2441
      %2443 = vmatprep.mubr.bf16.mxu0 %v736
      %2444 = vmatmul.mubr.bf16.gmra.mxu0 %v735
      %v2445 = vpop.f32.mrf.mxu0
      %v2446 = vadd.f32 %v2093, %v2445
      %v2447 = vpop.f32.mrf.mxu0
      %v2448 = vadd.f32 %v2095, %v2447
      %v2449 = vpop.f32.mrf.mxu0
      %v2450 = vadd.f32 %v2097, %v2449
      %v2451 = vpop.f32.mrf.mxu0
      %v2452 = vadd.f32 %v2099, %v2451
      %2453 = vmatprep.mubr.bf16.mxu0 %v741
      %2454 = vmatmul.mubr.bf16.gmra.mxu0 %v740
      %v2455 = vpop.f32.mrf.mxu0
      %v2456 = vadd.f32 %v2103, %v2455
      %v2457 = vpop.f32.mrf.mxu0
      %v2458 = vadd.f32 %v2105, %v2457
      %v2459 = vpop.f32.mrf.mxu0
      %v2460 = vadd.f32 %v2107, %v2459
      %v2461 = vpop.f32.mrf.mxu0
      %v2462 = vadd.f32 %v2109, %v2461
      %2463 = vmatprep.mubr.bf16.mxu0 %v746
      %2464 = vmatmul.mubr.bf16.gmra.mxu0 %v745
      %v2465 = vpop.f32.mrf.mxu0
      %v2466 = vadd.f32 %v2113, %v2465
      %v2467 = vpop.f32.mrf.mxu0
      %v2468 = vadd.f32 %v2115, %v2467
      %v2469 = vpop.f32.mrf.mxu0
      %v2470 = vadd.f32 %v2117, %v2469
      %v2471 = vpop.f32.mrf.mxu0
      %v2472 = vadd.f32 %v2119, %v2471
      %2473 = vmatprep.mubr.bf16.mxu0 %v751
      %2474 = vmatmul.mubr.bf16.gmra.mxu0 %v750
      %v2475 = vpop.f32.mrf.mxu0
      %v2476 = vadd.f32 %v2123, %v2475
      %v2477 = vpop.f32.mrf.mxu0
      %v2478 = vadd.f32 %v2125, %v2477
      %v2479 = vpop.f32.mrf.mxu0
      %v2480 = vadd.f32 %v2127, %v2479
      %v2481 = vpop.f32.mrf.mxu0
      %v2482 = vadd.f32 %v2129, %v2481
      %2483 = vmatprep.mubr.bf16.mxu0 %v756
      %2484 = vmatmul.mubr.bf16.gmra.mxu0 %v755
      %v2485 = vpop.f32.mrf.mxu0
      %v2486 = vadd.f32 %v2133, %v2485
      %v2487 = vpop.f32.mrf.mxu0
      %v2488 = vadd.f32 %v2135, %v2487
      %v2489 = vpop.f32.mrf.mxu0
      %v2490 = vadd.f32 %v2137, %v2489
      %v2491 = vpop.f32.mrf.mxu0
      %v2492 = vadd.f32 %v2139, %v2491
      %2493 = vmatprep.mubr.bf16.mxu0 %v761
      %2494 = vmatmul.mubr.bf16.gmra.mxu0 %v760
      %v2495 = vpop.f32.mrf.mxu0
      %v2496 = vadd.f32 %v2143, %v2495
      %v2497 = vpop.f32.mrf.mxu0
      %v2498 = vadd.f32 %v2145, %v2497
      %v2499 = vpop.f32.mrf.mxu0
      %v2500 = vadd.f32 %v2147, %v2499
      %v2501 = vpop.f32.mrf.mxu0
      %v2502 = vadd.f32 %v2149, %v2501
      %2503 = vmatprep.mubr.bf16.mxu0 %v766
      %2504 = vmatmul.mubr.bf16.gmra.mxu0 %v765
      %v2505 = vpop.f32.mrf.mxu0
      %v2506 = vadd.f32 %v2153, %v2505
      %v2507 = vpop.f32.mrf.mxu0
      %v2508 = vadd.f32 %v2155, %v2507
      %v2509 = vpop.f32.mrf.mxu0
      %v2510 = vadd.f32 %v2157, %v2509
      %v2511 = vpop.f32.mrf.mxu0
      %v2512 = vadd.f32 %v2159, %v2511
      %2513 = vdwg.mxu0
      %2514 = vmatprep.subr.bf16.mxu0 0
      %2515 = vmatpush1.bf16.msra.mxu0 0
      %2516 = vmatprep.subr.bf16.mxu0 0
      %2517 = vmatpush1.bf16.msra.mxu0 0
      %2518 = vmatprep.subr.bf16.mxu0 %v1800
      %2519 = vmatpush1.bf16.msra.mxu0 %v1797
      %2520 = vmatprep.subr.bf16.mxu0 %v1543
      %2521 = vmatpush1.bf16.msra.mxu0 %v1542
      %2522 = vmatprep.subr.bf16.mxu0 %v1539
      %2523 = vmatpush1.bf16.msra.mxu0 %v1538
      %2524 = vmatprep.subr.bf16.mxu0 %v1535
      %2525 = vmatpush1.bf16.msra.mxu0 %v1534
      %2526 = vmatprep.subr.bf16.mxu0 %v1531
      %2527 = vmatpush1.bf16.msra.mxu0 %v1530
      %2528 = vmatprep.subr.bf16.mxu0 %v1527
      %2529 = vmatpush1.bf16.msra.mxu0 %v1526
      %2530 = vmatprep.subr.bf16.mxu0 0
      %2531 = vmatpush2.bf16.msra.mxu0 0
      %2532 = vmatprep.subr.bf16.mxu0 0
      %2533 = vmatpush2.bf16.msra.mxu0 0
      %2534 = vmatprep.subr.bf16.mxu0 0
      %2535 = vmatpush2.bf16.msra.mxu0 0
      %2536 = vmatprep.subr.bf16.mxu0 0
      %2537 = vmatpush2.bf16.msra.mxu0 0
      %2538 = vmatprep.subr.bf16.mxu0 0
      %2539 = vmatpush2.bf16.msra.mxu0 0
      %2540 = vmatprep.subr.bf16.mxu0 0
      %2541 = vmatpush2.bf16.msra.mxu0 0
      %2542 = vmatprep.subr.bf16.mxu0 0
      %2543 = vmatpush2.bf16.msra.mxu0 0
      %2544 = vmatprep.subr.bf16.mxu0 0
      %2545 = vmatpush2.bf16.msra.mxu0 0
      %2546 = vmatprep.mubr.bf16.mxu0 0
      %2547 = vmatmul.mubr.bf16.gmra.mxu0 %v1700
      %v2548 = vpop.f32.mrf.mxu0
      %v2549 = vadd.f32 %v2196, %v2548
      %v2550 = vpop.f32.mrf.mxu0
      %v2551 = vadd.f32 %v2198, %v2550
      %v2552 = vpop.f32.mrf.mxu0
      %v2553 = vadd.f32 %v2200, %v2552
      %v2554 = vpop.f32.mrf.mxu0
      %v2555 = vadd.f32 %v2202, %v2554
      %2556 = vmatprep.mubr.bf16.mxu0 0
      %2557 = vmatmul.mubr.bf16.gmra.mxu0 %v1703
      %v2558 = vpop.f32.mrf.mxu0
      %v2559 = vadd.f32 %v2206, %v2558
      %v2560 = vpop.f32.mrf.mxu0
      %v2561 = vadd.f32 %v2208, %v2560
      %v2562 = vpop.f32.mrf.mxu0
      %v2563 = vadd.f32 %v2210, %v2562
      %v2564 = vpop.f32.mrf.mxu0
      %v2565 = vadd.f32 %v2212, %v2564
      %2566 = vmatprep.mubr.bf16.mxu0 0
      %2567 = vmatmul.mubr.bf16.gmra.mxu0 %v1706
      %v2568 = vpop.f32.mrf.mxu0
      %v2569 = vadd.f32 %v2216, %v2568
      %v2570 = vpop.f32.mrf.mxu0
      %v2571 = vadd.f32 %v2218, %v2570
      %v2572 = vpop.f32.mrf.mxu0
      %v2573 = vadd.f32 %v2220, %v2572
      %v2574 = vpop.f32.mrf.mxu0
      %v2575 = vadd.f32 %v2222, %v2574
      %2576 = vmatprep.mubr.bf16.mxu0 0
      %2577 = vmatmul.mubr.bf16.gmra.mxu0 %v1709
      %v2578 = vpop.f32.mrf.mxu0
      %v2579 = vadd.f32 %v2226, %v2578
      %v2580 = vpop.f32.mrf.mxu0
      %v2581 = vadd.f32 %v2228, %v2580
      %v2582 = vpop.f32.mrf.mxu0
      %v2583 = vadd.f32 %v2230, %v2582
      %v2584 = vpop.f32.mrf.mxu0
      %v2585 = vadd.f32 %v2232, %v2584
      %2586 = vmatprep.mubr.bf16.mxu0 0
      %2587 = vmatmul.mubr.bf16.gmra.mxu0 %v1712
      %v2588 = vpop.f32.mrf.mxu0
      %v2589 = vadd.f32 %v2236, %v2588
      %v2590 = vpop.f32.mrf.mxu0
      %v2591 = vadd.f32 %v2238, %v2590
      %v2592 = vpop.f32.mrf.mxu0
      %v2593 = vadd.f32 %v2240, %v2592
      %v2594 = vpop.f32.mrf.mxu0
      %v2595 = vadd.f32 %v2242, %v2594
      %2596 = vmatprep.mubr.bf16.mxu0 0
      %2597 = vmatmul.mubr.bf16.gmra.mxu0 %v1715
      %v2598 = vpop.f32.mrf.mxu0
      %v2599 = vadd.f32 %v2246, %v2598
      %v2600 = vpop.f32.mrf.mxu0
      %v2601 = vadd.f32 %v2248, %v2600
      %v2602 = vpop.f32.mrf.mxu0
      %v2603 = vadd.f32 %v2250, %v2602
      %v2604 = vpop.f32.mrf.mxu0
      %v2605 = vadd.f32 %v2252, %v2604
      %2606 = vmatprep.mubr.bf16.mxu0 0
      %2607 = vmatmul.mubr.bf16.gmra.mxu0 %v1718
      %v2608 = vpop.f32.mrf.mxu0
      %v2609 = vadd.f32 %v2256, %v2608
      %v2610 = vpop.f32.mrf.mxu0
      %v2611 = vadd.f32 %v2258, %v2610
      %v2612 = vpop.f32.mrf.mxu0
      %v2613 = vadd.f32 %v2260, %v2612
      %v2614 = vpop.f32.mrf.mxu0
      %v2615 = vadd.f32 %v2262, %v2614
      %2616 = vmatprep.mubr.bf16.mxu0 0
      %2617 = vmatmul.mubr.bf16.gmra.mxu0 %v1721
      %v2618 = vpop.f32.mrf.mxu0
      %v2619 = vadd.f32 %v2266, %v2618
      %v2620 = vpop.f32.mrf.mxu0
      %v2621 = vadd.f32 %v2268, %v2620
      %v2622 = vpop.f32.mrf.mxu0
      %v2623 = vadd.f32 %v2270, %v2622
      %v2624 = vpop.f32.mrf.mxu0
      %v2625 = vadd.f32 %v2272, %v2624
      %2626 = vmatprep.mubr.bf16.mxu0 0
      %2627 = vmatmul.mubr.bf16.gmra.mxu0 %v1724
      %v2628 = vpop.f32.mrf.mxu0
      %v2629 = vadd.f32 %v2276, %v2628
      %v2630 = vpop.f32.mrf.mxu0
      %v2631 = vadd.f32 %v2278, %v2630
      %v2632 = vpop.f32.mrf.mxu0
      %v2633 = vadd.f32 %v2280, %v2632
      %v2634 = vpop.f32.mrf.mxu0
      %v2635 = vadd.f32 %v2282, %v2634
      %2636 = vmatprep.mubr.bf16.mxu0 0
      %2637 = vmatmul.mubr.bf16.gmra.mxu0 %v1727
      %v2638 = vpop.f32.mrf.mxu0
      %v2639 = vadd.f32 %v2286, %v2638
      %v2640 = vpop.f32.mrf.mxu0
      %v2641 = vadd.f32 %v2288, %v2640
      %v2642 = vpop.f32.mrf.mxu0
      %v2643 = vadd.f32 %v2290, %v2642
      %v2644 = vpop.f32.mrf.mxu0
      %v2645 = vadd.f32 %v2292, %v2644
      %2646 = vmatprep.mubr.bf16.mxu0 0
      %2647 = vmatmul.mubr.bf16.gmra.mxu0 %v1730
      %v2648 = vpop.f32.mrf.mxu0
      %v2649 = vadd.f32 %v2296, %v2648
      %v2650 = vpop.f32.mrf.mxu0
      %v2651 = vadd.f32 %v2298, %v2650
      %v2652 = vpop.f32.mrf.mxu0
      %v2653 = vadd.f32 %v2300, %v2652
      %v2654 = vpop.f32.mrf.mxu0
      %v2655 = vadd.f32 %v2302, %v2654
      %2656 = vmatprep.mubr.bf16.mxu0 0
      %2657 = vmatmul.mubr.bf16.gmra.mxu0 %v1733
      %v2658 = vpop.f32.mrf.mxu0
      %v2659 = vadd.f32 %v2306, %v2658
      %v2660 = vpop.f32.mrf.mxu0
      %v2661 = vadd.f32 %v2308, %v2660
      %v2662 = vpop.f32.mrf.mxu0
      %v2663 = vadd.f32 %v2310, %v2662
      %v2664 = vpop.f32.mrf.mxu0
      %v2665 = vadd.f32 %v2312, %v2664
      %2666 = vmatprep.mubr.bf16.mxu0 0
      %2667 = vmatmul.mubr.bf16.gmra.mxu0 %v1736
      %v2668 = vpop.f32.mrf.mxu0
      %v2669 = vadd.f32 %v2316, %v2668
      %v2670 = vpop.f32.mrf.mxu0
      %v2671 = vadd.f32 %v2318, %v2670
      %v2672 = vpop.f32.mrf.mxu0
      %v2673 = vadd.f32 %v2320, %v2672
      %v2674 = vpop.f32.mrf.mxu0
      %v2675 = vadd.f32 %v2322, %v2674
      %2676 = vmatprep.mubr.bf16.mxu0 0
      %2677 = vmatmul.mubr.bf16.gmra.mxu0 %v1739
      %v2678 = vpop.f32.mrf.mxu0
      %v2679 = vadd.f32 %v2326, %v2678
      %v2680 = vpop.f32.mrf.mxu0
      %v2681 = vadd.f32 %v2328, %v2680
      %v2682 = vpop.f32.mrf.mxu0
      %v2683 = vadd.f32 %v2330, %v2682
      %v2684 = vpop.f32.mrf.mxu0
      %v2685 = vadd.f32 %v2332, %v2684
      %2686 = vmatprep.mubr.bf16.mxu0 0
      %2687 = vmatmul.mubr.bf16.gmra.mxu0 %v1742
      %v2688 = vpop.f32.mrf.mxu0
      %v2689 = vadd.f32 %v2336, %v2688
      %v2690 = vpop.f32.mrf.mxu0
      %v2691 = vadd.f32 %v2338, %v2690
      %v2692 = vpop.f32.mrf.mxu0
      %v2693 = vadd.f32 %v2340, %v2692
      %v2694 = vpop.f32.mrf.mxu0
      %v2695 = vadd.f32 %v2342, %v2694
      %2696 = vmatprep.mubr.bf16.mxu0 0
      %2697 = vmatmul.mubr.bf16.gmra.mxu0 %v1745
      %v2698 = vpop.f32.mrf.mxu0
      %v2699 = vadd.f32 %v2346, %v2698
      %v2700 = vpop.f32.mrf.mxu0
      %v2701 = vadd.f32 %v2348, %v2700
      %v2702 = vpop.f32.mrf.mxu0
      %v2703 = vadd.f32 %v2350, %v2702
      %v2704 = vpop.f32.mrf.mxu0
      %v2705 = vadd.f32 %v2352, %v2704
      %2706 = vmatprep.mubr.bf16.mxu0 0
      %2707 = vmatmul.mubr.bf16.gmra.mxu0 %v1748
      %v2708 = vpop.f32.mrf.mxu0
      %v2709 = vadd.f32 %v2356, %v2708
      %v2710 = vpop.f32.mrf.mxu0
      %v2711 = vadd.f32 %v2358, %v2710
      %v2712 = vpop.f32.mrf.mxu0
      %v2713 = vadd.f32 %v2360, %v2712
      %v2714 = vpop.f32.mrf.mxu0
      %v2715 = vadd.f32 %v2362, %v2714
      %2716 = vmatprep.mubr.bf16.mxu0 0
      %2717 = vmatmul.mubr.bf16.gmra.mxu0 %v1751
      %v2718 = vpop.f32.mrf.mxu0
      %v2719 = vadd.f32 %v2366, %v2718
      %v2720 = vpop.f32.mrf.mxu0
      %v2721 = vadd.f32 %v2368, %v2720
      %v2722 = vpop.f32.mrf.mxu0
      %v2723 = vadd.f32 %v2370, %v2722
      %v2724 = vpop.f32.mrf.mxu0
      %v2725 = vadd.f32 %v2372, %v2724
      %2726 = vmatprep.mubr.bf16.mxu0 0
      %2727 = vmatmul.mubr.bf16.gmra.mxu0 %v1754
      %v2728 = vpop.f32.mrf.mxu0
      %v2729 = vadd.f32 %v2376, %v2728
      %v2730 = vpop.f32.mrf.mxu0
      %v2731 = vadd.f32 %v2378, %v2730
      %v2732 = vpop.f32.mrf.mxu0
      %v2733 = vadd.f32 %v2380, %v2732
      %v2734 = vpop.f32.mrf.mxu0
      %v2735 = vadd.f32 %v2382, %v2734
      %2736 = vmatprep.mubr.bf16.mxu0 0
      %2737 = vmatmul.mubr.bf16.gmra.mxu0 %v1757
      %v2738 = vpop.f32.mrf.mxu0
      %v2739 = vadd.f32 %v2386, %v2738
      %v2740 = vpop.f32.mrf.mxu0
      %v2741 = vadd.f32 %v2388, %v2740
      %v2742 = vpop.f32.mrf.mxu0
      %v2743 = vadd.f32 %v2390, %v2742
      %v2744 = vpop.f32.mrf.mxu0
      %v2745 = vadd.f32 %v2392, %v2744
      %2746 = vmatprep.mubr.bf16.mxu0 0
      %2747 = vmatmul.mubr.bf16.gmra.mxu0 %v1760
      %v2748 = vpop.f32.mrf.mxu0
      %v2749 = vadd.f32 %v2396, %v2748
      %v2750 = vpop.f32.mrf.mxu0
      %v2751 = vadd.f32 %v2398, %v2750
      %v2752 = vpop.f32.mrf.mxu0
      %v2753 = vadd.f32 %v2400, %v2752
      %v2754 = vpop.f32.mrf.mxu0
      %v2755 = vadd.f32 %v2402, %v2754
      %2756 = vmatprep.mubr.bf16.mxu0 0
      %2757 = vmatmul.mubr.bf16.gmra.mxu0 %v1763
      %v2758 = vpop.f32.mrf.mxu0
      %v2759 = vadd.f32 %v2406, %v2758
      %v2760 = vpop.f32.mrf.mxu0
      %v2761 = vadd.f32 %v2408, %v2760
      %v2762 = vpop.f32.mrf.mxu0
      %v2763 = vadd.f32 %v2410, %v2762
      %v2764 = vpop.f32.mrf.mxu0
      %v2765 = vadd.f32 %v2412, %v2764
      %2766 = vmatprep.mubr.bf16.mxu0 0
      %2767 = vmatmul.mubr.bf16.gmra.mxu0 %v1766
      %v2768 = vpop.f32.mrf.mxu0
      %v2769 = vadd.f32 %v2416, %v2768
      %v2770 = vpop.f32.mrf.mxu0
      %v2771 = vadd.f32 %v2418, %v2770
      %v2772 = vpop.f32.mrf.mxu0
      %v2773 = vadd.f32 %v2420, %v2772
      %v2774 = vpop.f32.mrf.mxu0
      %v2775 = vadd.f32 %v2422, %v2774
      %2776 = vmatprep.mubr.bf16.mxu0 0
      %2777 = vmatmul.mubr.bf16.gmra.mxu0 %v1769
      %v2778 = vpop.f32.mrf.mxu0
      %v2779 = vadd.f32 %v2426, %v2778
      %v2780 = vpop.f32.mrf.mxu0
      %v2781 = vadd.f32 %v2428, %v2780
      %v2782 = vpop.f32.mrf.mxu0
      %v2783 = vadd.f32 %v2430, %v2782
      %v2784 = vpop.f32.mrf.mxu0
      %v2785 = vadd.f32 %v2432, %v2784
      %2786 = vmatprep.mubr.bf16.mxu0 0
      %2787 = vmatmul.mubr.bf16.gmra.mxu0 %v1772
      %v2788 = vpop.f32.mrf.mxu0
      %v2789 = vadd.f32 %v2436, %v2788
      %v2790 = vpop.f32.mrf.mxu0
      %v2791 = vadd.f32 %v2438, %v2790
      %v2792 = vpop.f32.mrf.mxu0
      %v2793 = vadd.f32 %v2440, %v2792
      %v2794 = vpop.f32.mrf.mxu0
      %v2795 = vadd.f32 %v2442, %v2794
      %2796 = vmatprep.mubr.bf16.mxu0 0
      %2797 = vmatmul.mubr.bf16.gmra.mxu0 %v1775
      %v2798 = vpop.f32.mrf.mxu0
      %v2799 = vadd.f32 %v2446, %v2798
      %v2800 = vpop.f32.mrf.mxu0
      %v2801 = vadd.f32 %v2448, %v2800
      %v2802 = vpop.f32.mrf.mxu0
      %v2803 = vadd.f32 %v2450, %v2802
      %v2804 = vpop.f32.mrf.mxu0
      %v2805 = vadd.f32 %v2452, %v2804
      %2806 = vmatprep.mubr.bf16.mxu0 0
      %2807 = vmatmul.mubr.bf16.gmra.mxu0 %v1778
      %v2808 = vpop.f32.mrf.mxu0
      %v2809 = vadd.f32 %v2456, %v2808
      %v2810 = vpop.f32.mrf.mxu0
      %v2811 = vadd.f32 %v2458, %v2810
      %v2812 = vpop.f32.mrf.mxu0
      %v2813 = vadd.f32 %v2460, %v2812
      %v2814 = vpop.f32.mrf.mxu0
      %v2815 = vadd.f32 %v2462, %v2814
      %2816 = vmatprep.mubr.bf16.mxu0 0
      %2817 = vmatmul.mubr.bf16.gmra.mxu0 %v1781
      %v2818 = vpop.f32.mrf.mxu0
      %v2819 = vadd.f32 %v2466, %v2818
      %v2820 = vpop.f32.mrf.mxu0
      %v2821 = vadd.f32 %v2468, %v2820
      %v2822 = vpop.f32.mrf.mxu0
      %v2823 = vadd.f32 %v2470, %v2822
      %v2824 = vpop.f32.mrf.mxu0
      %v2825 = vadd.f32 %v2472, %v2824
      %2826 = vmatprep.mubr.bf16.mxu0 0
      %2827 = vmatmul.mubr.bf16.gmra.mxu0 %v1784
      %v2828 = vpop.f32.mrf.mxu0
      %v2829 = vadd.f32 %v2476, %v2828
      %v2830 = vpop.f32.mrf.mxu0
      %v2831 = vadd.f32 %v2478, %v2830
      %v2832 = vpop.f32.mrf.mxu0
      %v2833 = vadd.f32 %v2480, %v2832
      %v2834 = vpop.f32.mrf.mxu0
      %v2835 = vadd.f32 %v2482, %v2834
      %2836 = vmatprep.mubr.bf16.mxu0 0
      %2837 = vmatmul.mubr.bf16.gmra.mxu0 %v1787
      %v2838 = vpop.f32.mrf.mxu0
      %v2839 = vadd.f32 %v2486, %v2838
      %v2840 = vpop.f32.mrf.mxu0
      %v2841 = vadd.f32 %v2488, %v2840
      %v2842 = vpop.f32.mrf.mxu0
      %v2843 = vadd.f32 %v2490, %v2842
      %v2844 = vpop.f32.mrf.mxu0
      %v2845 = vadd.f32 %v2492, %v2844
      %2846 = vmatprep.mubr.bf16.mxu0 0
      %2847 = vmatmul.mubr.bf16.gmra.mxu0 %v1790
      %v2848 = vpop.f32.mrf.mxu0
      %v2849 = vadd.f32 %v2496, %v2848
      %v2850 = vpop.f32.mrf.mxu0
      %v2851 = vadd.f32 %v2498, %v2850
      %v2852 = vpop.f32.mrf.mxu0
      %v2853 = vadd.f32 %v2500, %v2852
      %v2854 = vpop.f32.mrf.mxu0
      %v2855 = vadd.f32 %v2502, %v2854
      %2856 = vmatprep.mubr.bf16.mxu0 0
      %2857 = vmatmul.mubr.bf16.gmra.mxu0 %v1793
      %v2858 = vpop.f32.mrf.mxu0
      %v2859 = vadd.f32 %v2506, %v2858
      %v2860 = vpop.f32.mrf.mxu0
      %v2861 = vadd.f32 %v2508, %v2860
      %v2862 = vpop.f32.mrf.mxu0
      %v2863 = vadd.f32 %v2510, %v2862
      %v2864 = vpop.f32.mrf.mxu0
      %v2865 = vadd.f32 %v2512, %v2864
      %2866 = vdwg.mxu0
      %2867 = vmatprep.subr.bf16.mxu0 %v1429
      %2868 = vmatpush1.bf16.msra.mxu0 %v1428
      %2869 = vmatprep.subr.bf16.mxu0 %v1425
      %2870 = vmatpush1.bf16.msra.mxu0 %v1424
      %2871 = vmatprep.subr.bf16.mxu0 %v1421
      %2872 = vmatpush1.bf16.msra.mxu0 %v1420
      %2873 = vmatprep.subr.bf16.mxu0 %v1417
      %2874 = vmatpush1.bf16.msra.mxu0 %v1416
      %2875 = vmatprep.subr.bf16.mxu0 %v1413
      %2876 = vmatpush1.bf16.msra.mxu0 %v1412
      %2877 = vmatprep.subr.bf16.mxu0 %v1409
      %2878 = vmatpush1.bf16.msra.mxu0 %v1408
      %2879 = vmatprep.subr.bf16.mxu0 %v1405
      %2880 = vmatpush1.bf16.msra.mxu0 %v1404
      %2881 = vmatprep.subr.bf16.mxu0 %v1401
      %2882 = vmatpush1.bf16.msra.mxu0 %v1400
      %2883 = vmatprep.subr.bf16.mxu0 %v1461
      %2884 = vmatpush2.bf16.msra.mxu0 %v1460
      %2885 = vmatprep.subr.bf16.mxu0 %v1457
      %2886 = vmatpush2.bf16.msra.mxu0 %v1456
      %2887 = vmatprep.subr.bf16.mxu0 %v1453
      %2888 = vmatpush2.bf16.msra.mxu0 %v1452
      %2889 = vmatprep.subr.bf16.mxu0 %v1449
      %2890 = vmatpush2.bf16.msra.mxu0 %v1448
      %2891 = vmatprep.subr.bf16.mxu0 %v1445
      %2892 = vmatpush2.bf16.msra.mxu0 %v1444
      %2893 = vmatprep.subr.bf16.mxu0 %v1441
      %2894 = vmatpush2.bf16.msra.mxu0 %v1440
      %2895 = vmatprep.subr.bf16.mxu0 %v1437
      %2896 = vmatpush2.bf16.msra.mxu0 %v1436
      %2897 = vmatprep.subr.bf16.mxu0 %v1433
      %2898 = vmatpush2.bf16.msra.mxu0 %v1432
      %2899 = vmatprep.mubr.bf16.mxu0 %v609
      %2900 = vmatmul.mubr.bf16.gmra.mxu0 %v608
      %v2901 = vpop.f32.mrf.mxu0
      %v2902 = vadd.f32 %v933, %v2901
      %v2903 = vpop.f32.mrf.mxu0
      %v2904 = vadd.f32 %v937, %v2903
      %v2905 = vpop.f32.mrf.mxu0
      %v2906 = vadd.f32 %v933, %v2905
      %v2907 = vpop.f32.mrf.mxu0
      %v2908 = vadd.f32 %v937, %v2907
      %2909 = vmatprep.mubr.bf16.mxu0 %v614
      %2910 = vmatmul.mubr.bf16.gmra.mxu0 %v613
      %v2911 = vpop.f32.mrf.mxu0
      %v2912 = vadd.f32 %v933, %v2911
      %v2913 = vpop.f32.mrf.mxu0
      %v2914 = vadd.f32 %v937, %v2913
      %v2915 = vpop.f32.mrf.mxu0
      %v2916 = vadd.f32 %v933, %v2915
      %v2917 = vpop.f32.mrf.mxu0
      %v2918 = vadd.f32 %v937, %v2917
      %2919 = vmatprep.mubr.bf16.mxu0 %v619
      %2920 = vmatmul.mubr.bf16.gmra.mxu0 %v618
      %v2921 = vpop.f32.mrf.mxu0
      %v2922 = vadd.f32 %v933, %v2921
      %v2923 = vpop.f32.mrf.mxu0
      %v2924 = vadd.f32 %v937, %v2923
      %v2925 = vpop.f32.mrf.mxu0
      %v2926 = vadd.f32 %v933, %v2925
      %v2927 = vpop.f32.mrf.mxu0
      %v2928 = vadd.f32 %v937, %v2927
      %2929 = vmatprep.mubr.bf16.mxu0 %v624
      %2930 = vmatmul.mubr.bf16.gmra.mxu0 %v623
      %v2931 = vpop.f32.mrf.mxu0
      %v2932 = vadd.f32 %v933, %v2931
      %v2933 = vpop.f32.mrf.mxu0
      %v2934 = vadd.f32 %v937, %v2933
      %v2935 = vpop.f32.mrf.mxu0
      %v2936 = vadd.f32 %v933, %v2935
      %v2937 = vpop.f32.mrf.mxu0
      %v2938 = vadd.f32 %v937, %v2937
      %2939 = vmatprep.mubr.bf16.mxu0 %v629
      %2940 = vmatmul.mubr.bf16.gmra.mxu0 %v628
      %v2941 = vpop.f32.mrf.mxu0
      %v2942 = vadd.f32 %v933, %v2941
      %v2943 = vpop.f32.mrf.mxu0
      %v2944 = vadd.f32 %v937, %v2943
      %v2945 = vpop.f32.mrf.mxu0
      %v2946 = vadd.f32 %v933, %v2945
      %v2947 = vpop.f32.mrf.mxu0
      %v2948 = vadd.f32 %v937, %v2947
      %2949 = vmatprep.mubr.bf16.mxu0 %v634
      %2950 = vmatmul.mubr.bf16.gmra.mxu0 %v633
      %v2951 = vpop.f32.mrf.mxu0
      %v2952 = vadd.f32 %v933, %v2951
      %v2953 = vpop.f32.mrf.mxu0
      %v2954 = vadd.f32 %v937, %v2953
      %v2955 = vpop.f32.mrf.mxu0
      %v2956 = vadd.f32 %v933, %v2955
      %v2957 = vpop.f32.mrf.mxu0
      %v2958 = vadd.f32 %v937, %v2957
      %2959 = vmatprep.mubr.bf16.mxu0 %v639
      %2960 = vmatmul.mubr.bf16.gmra.mxu0 %v638
      %v2961 = vpop.f32.mrf.mxu0
      %v2962 = vadd.f32 %v933, %v2961
      %v2963 = vpop.f32.mrf.mxu0
      %v2964 = vadd.f32 %v937, %v2963
      %v2965 = vpop.f32.mrf.mxu0
      %v2966 = vadd.f32 %v933, %v2965
      %v2967 = vpop.f32.mrf.mxu0
      %v2968 = vadd.f32 %v937, %v2967
      %2969 = vmatprep.mubr.bf16.mxu0 %v644
      %2970 = vmatmul.mubr.bf16.gmra.mxu0 %v643
      %v2971 = vpop.f32.mrf.mxu0
      %v2972 = vadd.f32 %v933, %v2971
      %v2973 = vpop.f32.mrf.mxu0
      %v2974 = vadd.f32 %v937, %v2973
      %v2975 = vpop.f32.mrf.mxu0
      %v2976 = vadd.f32 %v933, %v2975
      %v2977 = vpop.f32.mrf.mxu0
      %v2978 = vadd.f32 %v937, %v2977
      %2979 = vmatprep.mubr.bf16.mxu0 %v649
      %2980 = vmatmul.mubr.bf16.gmra.mxu0 %v648
      %v2981 = vpop.f32.mrf.mxu0
      %v2982 = vadd.f32 %v933, %v2981
      %v2983 = vpop.f32.mrf.mxu0
      %v2984 = vadd.f32 %v937, %v2983
      %v2985 = vpop.f32.mrf.mxu0
      %v2986 = vadd.f32 %v933, %v2985
      %v2987 = vpop.f32.mrf.mxu0
      %v2988 = vadd.f32 %v937, %v2987
      %2989 = vmatprep.mubr.bf16.mxu0 %v654
      %2990 = vmatmul.mubr.bf16.gmra.mxu0 %v653
      %v2991 = vpop.f32.mrf.mxu0
      %v2992 = vadd.f32 %v933, %v2991
      %v2993 = vpop.f32.mrf.mxu0
      %v2994 = vadd.f32 %v937, %v2993
      %v2995 = vpop.f32.mrf.mxu0
      %v2996 = vadd.f32 %v933, %v2995
      %v2997 = vpop.f32.mrf.mxu0
      %v2998 = vadd.f32 %v937, %v2997
      %2999 = vmatprep.mubr.bf16.mxu0 %v659
      %3000 = vmatmul.mubr.bf16.gmra.mxu0 %v658
      %v3001 = vpop.f32.mrf.mxu0
      %v3002 = vadd.f32 %v933, %v3001
      %v3003 = vpop.f32.mrf.mxu0
      %v3004 = vadd.f32 %v937, %v3003
      %v3005 = vpop.f32.mrf.mxu0
      %v3006 = vadd.f32 %v933, %v3005
      %v3007 = vpop.f32.mrf.mxu0
      %v3008 = vadd.f32 %v937, %v3007
      %3009 = vmatprep.mubr.bf16.mxu0 %v664
      %3010 = vmatmul.mubr.bf16.gmra.mxu0 %v663
      %v3011 = vpop.f32.mrf.mxu0
      %v3012 = vadd.f32 %v933, %v3011
      %v3013 = vpop.f32.mrf.mxu0
      %v3014 = vadd.f32 %v937, %v3013
      %v3015 = vpop.f32.mrf.mxu0
      %v3016 = vadd.f32 %v933, %v3015
      %v3017 = vpop.f32.mrf.mxu0
      %v3018 = vadd.f32 %v937, %v3017
      %3019 = vmatprep.mubr.bf16.mxu0 %v669
      %3020 = vmatmul.mubr.bf16.gmra.mxu0 %v668
      %v3021 = vpop.f32.mrf.mxu0
      %v3022 = vadd.f32 %v933, %v3021
      %v3023 = vpop.f32.mrf.mxu0
      %v3024 = vadd.f32 %v937, %v3023
      %v3025 = vpop.f32.mrf.mxu0
      %v3026 = vadd.f32 %v933, %v3025
      %v3027 = vpop.f32.mrf.mxu0
      %v3028 = vadd.f32 %v937, %v3027
      %3029 = vmatprep.mubr.bf16.mxu0 %v674
      %3030 = vmatmul.mubr.bf16.gmra.mxu0 %v673
      %v3031 = vpop.f32.mrf.mxu0
      %v3032 = vadd.f32 %v933, %v3031
      %v3033 = vpop.f32.mrf.mxu0
      %v3034 = vadd.f32 %v937, %v3033
      %v3035 = vpop.f32.mrf.mxu0
      %v3036 = vadd.f32 %v933, %v3035
      %v3037 = vpop.f32.mrf.mxu0
      %v3038 = vadd.f32 %v937, %v3037
      %3039 = vmatprep.mubr.bf16.mxu0 %v679
      %3040 = vmatmul.mubr.bf16.gmra.mxu0 %v678
      %v3041 = vpop.f32.mrf.mxu0
      %v3042 = vadd.f32 %v933, %v3041
      %v3043 = vpop.f32.mrf.mxu0
      %v3044 = vadd.f32 %v937, %v3043
      %v3045 = vpop.f32.mrf.mxu0
      %v3046 = vadd.f32 %v933, %v3045
      %v3047 = vpop.f32.mrf.mxu0
      %v3048 = vadd.f32 %v937, %v3047
      %3049 = vmatprep.mubr.bf16.mxu0 %v684
      %3050 = vmatmul.mubr.bf16.gmra.mxu0 %v683
      %v3051 = vpop.f32.mrf.mxu0
      %v3052 = vadd.f32 %v933, %v3051
      %v3053 = vpop.f32.mrf.mxu0
      %v3054 = vadd.f32 %v937, %v3053
      %v3055 = vpop.f32.mrf.mxu0
      %v3056 = vadd.f32 %v933, %v3055
      %v3057 = vpop.f32.mrf.mxu0
      %v3058 = vadd.f32 %v937, %v3057
      %3059 = vmatprep.mubr.bf16.mxu0 %v689
      %3060 = vmatmul.mubr.bf16.gmra.mxu0 %v688
      %v3061 = vpop.f32.mrf.mxu0
      %v3062 = vadd.f32 %v933, %v3061
      %v3063 = vpop.f32.mrf.mxu0
      %v3064 = vadd.f32 %v937, %v3063
      %v3065 = vpop.f32.mrf.mxu0
      %v3066 = vadd.f32 %v933, %v3065
      %v3067 = vpop.f32.mrf.mxu0
      %v3068 = vadd.f32 %v937, %v3067
      %3069 = vmatprep.mubr.bf16.mxu0 %v694
      %3070 = vmatmul.mubr.bf16.gmra.mxu0 %v693
      %v3071 = vpop.f32.mrf.mxu0
      %v3072 = vadd.f32 %v933, %v3071
      %v3073 = vpop.f32.mrf.mxu0
      %v3074 = vadd.f32 %v937, %v3073
      %v3075 = vpop.f32.mrf.mxu0
      %v3076 = vadd.f32 %v933, %v3075
      %v3077 = vpop.f32.mrf.mxu0
      %v3078 = vadd.f32 %v937, %v3077
      %3079 = vmatprep.mubr.bf16.mxu0 %v699
      %3080 = vmatmul.mubr.bf16.gmra.mxu0 %v698
      %v3081 = vpop.f32.mrf.mxu0
      %v3082 = vadd.f32 %v933, %v3081
      %v3083 = vpop.f32.mrf.mxu0
      %v3084 = vadd.f32 %v937, %v3083
      %v3085 = vpop.f32.mrf.mxu0
      %v3086 = vadd.f32 %v933, %v3085
      %v3087 = vpop.f32.mrf.mxu0
      %v3088 = vadd.f32 %v937, %v3087
      %3089 = vmatprep.mubr.bf16.mxu0 %v704
      %3090 = vmatmul.mubr.bf16.gmra.mxu0 %v703
      %v3091 = vpop.f32.mrf.mxu0
      %v3092 = vadd.f32 %v933, %v3091
      %v3093 = vpop.f32.mrf.mxu0
      %v3094 = vadd.f32 %v937, %v3093
      %v3095 = vpop.f32.mrf.mxu0
      %v3096 = vadd.f32 %v933, %v3095
      %v3097 = vpop.f32.mrf.mxu0
      %v3098 = vadd.f32 %v937, %v3097
      %3099 = vmatprep.mubr.bf16.mxu0 %v709
      %3100 = vmatmul.mubr.bf16.gmra.mxu0 %v708
      %v3101 = vpop.f32.mrf.mxu0
      %v3102 = vadd.f32 %v933, %v3101
      %v3103 = vpop.f32.mrf.mxu0
      %v3104 = vadd.f32 %v937, %v3103
      %v3105 = vpop.f32.mrf.mxu0
      %v3106 = vadd.f32 %v933, %v3105
      %v3107 = vpop.f32.mrf.mxu0
      %v3108 = vadd.f32 %v937, %v3107
      %3109 = vmatprep.mubr.bf16.mxu0 %v714
      %3110 = vmatmul.mubr.bf16.gmra.mxu0 %v713
      %v3111 = vpop.f32.mrf.mxu0
      %v3112 = vadd.f32 %v933, %v3111
      %v3113 = vpop.f32.mrf.mxu0
      %v3114 = vadd.f32 %v937, %v3113
      %v3115 = vpop.f32.mrf.mxu0
      %v3116 = vadd.f32 %v933, %v3115
      %v3117 = vpop.f32.mrf.mxu0
      %v3118 = vadd.f32 %v937, %v3117
      %3119 = vmatprep.mubr.bf16.mxu0 %v719
      %3120 = vmatmul.mubr.bf16.gmra.mxu0 %v718
      %v3121 = vpop.f32.mrf.mxu0
      %v3122 = vadd.f32 %v933, %v3121
      %v3123 = vpop.f32.mrf.mxu0
      %v3124 = vadd.f32 %v937, %v3123
      %v3125 = vpop.f32.mrf.mxu0
      %v3126 = vadd.f32 %v933, %v3125
      %v3127 = vpop.f32.mrf.mxu0
      %v3128 = vadd.f32 %v937, %v3127
      %3129 = vmatprep.mubr.bf16.mxu0 %v724
      %3130 = vmatmul.mubr.bf16.gmra.mxu0 %v723
      %v3131 = vpop.f32.mrf.mxu0
      %v3132 = vadd.f32 %v933, %v3131
      %v3133 = vpop.f32.mrf.mxu0
      %v3134 = vadd.f32 %v937, %v3133
      %v3135 = vpop.f32.mrf.mxu0
      %v3136 = vadd.f32 %v933, %v3135
      %v3137 = vpop.f32.mrf.mxu0
      %v3138 = vadd.f32 %v937, %v3137
      %3139 = vmatprep.mubr.bf16.mxu0 %v729
      %3140 = vmatmul.mubr.bf16.gmra.mxu0 %v728
      %v3141 = vpop.f32.mrf.mxu0
      %v3142 = vadd.f32 %v933, %v3141
      %v3143 = vpop.f32.mrf.mxu0
      %v3144 = vadd.f32 %v937, %v3143
      %v3145 = vpop.f32.mrf.mxu0
      %v3146 = vadd.f32 %v933, %v3145
      %v3147 = vpop.f32.mrf.mxu0
      %v3148 = vadd.f32 %v937, %v3147
      %3149 = vmatprep.mubr.bf16.mxu0 %v734
      %3150 = vmatmul.mubr.bf16.gmra.mxu0 %v733
      %v3151 = vpop.f32.mrf.mxu0
      %v3152 = vadd.f32 %v933, %v3151
      %v3153 = vpop.f32.mrf.mxu0
      %v3154 = vadd.f32 %v937, %v3153
      %v3155 = vpop.f32.mrf.mxu0
      %v3156 = vadd.f32 %v933, %v3155
      %v3157 = vpop.f32.mrf.mxu0
      %v3158 = vadd.f32 %v937, %v3157
      %3159 = vmatprep.mubr.bf16.mxu0 %v739
      %3160 = vmatmul.mubr.bf16.gmra.mxu0 %v738
      %v3161 = vpop.f32.mrf.mxu0
      %v3162 = vadd.f32 %v933, %v3161
      %v3163 = vpop.f32.mrf.mxu0
      %v3164 = vadd.f32 %v937, %v3163
      %v3165 = vpop.f32.mrf.mxu0
      %v3166 = vadd.f32 %v933, %v3165
      %v3167 = vpop.f32.mrf.mxu0
      %v3168 = vadd.f32 %v937, %v3167
      %3169 = vmatprep.mubr.bf16.mxu0 %v744
      %3170 = vmatmul.mubr.bf16.gmra.mxu0 %v743
      %v3171 = vpop.f32.mrf.mxu0
      %v3172 = vadd.f32 %v933, %v3171
      %v3173 = vpop.f32.mrf.mxu0
      %v3174 = vadd.f32 %v937, %v3173
      %v3175 = vpop.f32.mrf.mxu0
      %v3176 = vadd.f32 %v933, %v3175
      %v3177 = vpop.f32.mrf.mxu0
      %v3178 = vadd.f32 %v937, %v3177
      %3179 = vmatprep.mubr.bf16.mxu0 %v749
      %3180 = vmatmul.mubr.bf16.gmra.mxu0 %v748
      %v3181 = vpop.f32.mrf.mxu0
      %v3182 = vadd.f32 %v933, %v3181
      %v3183 = vpop.f32.mrf.mxu0
      %v3184 = vadd.f32 %v937, %v3183
      %v3185 = vpop.f32.mrf.mxu0
      %v3186 = vadd.f32 %v933, %v3185
      %v3187 = vpop.f32.mrf.mxu0
      %v3188 = vadd.f32 %v937, %v3187
      %3189 = vmatprep.mubr.bf16.mxu0 %v754
      %3190 = vmatmul.mubr.bf16.gmra.mxu0 %v753
      %v3191 = vpop.f32.mrf.mxu0
      %v3192 = vadd.f32 %v933, %v3191
      %v3193 = vpop.f32.mrf.mxu0
      %v3194 = vadd.f32 %v937, %v3193
      %v3195 = vpop.f32.mrf.mxu0
      %v3196 = vadd.f32 %v933, %v3195
      %v3197 = vpop.f32.mrf.mxu0
      %v3198 = vadd.f32 %v937, %v3197
      %3199 = vmatprep.mubr.bf16.mxu0 %v759
      %3200 = vmatmul.mubr.bf16.gmra.mxu0 %v758
      %v3201 = vpop.f32.mrf.mxu0
      %v3202 = vadd.f32 %v933, %v3201
      %v3203 = vpop.f32.mrf.mxu0
      %v3204 = vadd.f32 %v937, %v3203
      %v3205 = vpop.f32.mrf.mxu0
      %v3206 = vadd.f32 %v933, %v3205
      %v3207 = vpop.f32.mrf.mxu0
      %v3208 = vadd.f32 %v937, %v3207
      %3209 = vmatprep.mubr.bf16.mxu0 %v764
      %3210 = vmatmul.mubr.bf16.gmra.mxu0 %v763
      %v3211 = vpop.f32.mrf.mxu0
      %v3212 = vadd.f32 %v933, %v3211
      %v3213 = vpop.f32.mrf.mxu0
      %v3214 = vadd.f32 %v937, %v3213
      %v3215 = vpop.f32.mrf.mxu0
      %v3216 = vadd.f32 %v933, %v3215
      %v3217 = vpop.f32.mrf.mxu0
      %v3218 = vadd.f32 %v937, %v3217
      %3219 = vdwg.mxu0
      %3220 = vmatprep.subr.bf16.mxu0 %v1493
      %3221 = vmatpush1.bf16.msra.mxu0 %v1492
      %3222 = vmatprep.subr.bf16.mxu0 %v1489
      %3223 = vmatpush1.bf16.msra.mxu0 %v1488
      %3224 = vmatprep.subr.bf16.mxu0 %v1485
      %3225 = vmatpush1.bf16.msra.mxu0 %v1484
      %3226 = vmatprep.subr.bf16.mxu0 %v1481
      %3227 = vmatpush1.bf16.msra.mxu0 %v1480
      %3228 = vmatprep.subr.bf16.mxu0 %v1477
      %3229 = vmatpush1.bf16.msra.mxu0 %v1476
      %3230 = vmatprep.subr.bf16.mxu0 %v1473
      %3231 = vmatpush1.bf16.msra.mxu0 %v1472
      %3232 = vmatprep.subr.bf16.mxu0 %v1469
      %3233 = vmatpush1.bf16.msra.mxu0 %v1468
      %3234 = vmatprep.subr.bf16.mxu0 %v1465
      %3235 = vmatpush1.bf16.msra.mxu0 %v1464
      %3236 = vmatprep.subr.bf16.mxu0 %v1525
      %3237 = vmatpush2.bf16.msra.mxu0 %v1524
      %3238 = vmatprep.subr.bf16.mxu0 %v1521
      %3239 = vmatpush2.bf16.msra.mxu0 %v1520
      %3240 = vmatprep.subr.bf16.mxu0 %v1517
      %3241 = vmatpush2.bf16.msra.mxu0 %v1516
      %3242 = vmatprep.subr.bf16.mxu0 %v1513
      %3243 = vmatpush2.bf16.msra.mxu0 %v1512
      %3244 = vmatprep.subr.bf16.mxu0 %v1509
      %3245 = vmatpush2.bf16.msra.mxu0 %v1508
      %3246 = vmatprep.subr.bf16.mxu0 %v1505
      %3247 = vmatpush2.bf16.msra.mxu0 %v1504
      %3248 = vmatprep.subr.bf16.mxu0 %v1501
      %3249 = vmatpush2.bf16.msra.mxu0 %v1500
      %3250 = vmatprep.subr.bf16.mxu0 %v1497
      %3251 = vmatpush2.bf16.msra.mxu0 %v1496
      %3252 = vmatprep.mubr.bf16.mxu0 %v611
      %3253 = vmatmul.mubr.bf16.gmra.mxu0 %v610
      %v3254 = vpop.f32.mrf.mxu0
      %v3255 = vadd.f32 %v2902, %v3254
      %v3256 = vpop.f32.mrf.mxu0
      %v3257 = vadd.f32 %v2904, %v3256
      %v3258 = vpop.f32.mrf.mxu0
      %v3259 = vadd.f32 %v2906, %v3258
      %v3260 = vpop.f32.mrf.mxu0
      %v3261 = vadd.f32 %v2908, %v3260
      %3262 = vmatprep.mubr.bf16.mxu0 %v616
      %3263 = vmatmul.mubr.bf16.gmra.mxu0 %v615
      %v3264 = vpop.f32.mrf.mxu0
      %v3265 = vadd.f32 %v2912, %v3264
      %v3266 = vpop.f32.mrf.mxu0
      %v3267 = vadd.f32 %v2914, %v3266
      %v3268 = vpop.f32.mrf.mxu0
      %v3269 = vadd.f32 %v2916, %v3268
      %v3270 = vpop.f32.mrf.mxu0
      %v3271 = vadd.f32 %v2918, %v3270
      %3272 = vmatprep.mubr.bf16.mxu0 %v621
      %3273 = vmatmul.mubr.bf16.gmra.mxu0 %v620
      %v3274 = vpop.f32.mrf.mxu0
      %v3275 = vadd.f32 %v2922, %v3274
      %v3276 = vpop.f32.mrf.mxu0
      %v3277 = vadd.f32 %v2924, %v3276
      %v3278 = vpop.f32.mrf.mxu0
      %v3279 = vadd.f32 %v2926, %v3278
      %v3280 = vpop.f32.mrf.mxu0
      %v3281 = vadd.f32 %v2928, %v3280
      %3282 = vmatprep.mubr.bf16.mxu0 %v626
      %3283 = vmatmul.mubr.bf16.gmra.mxu0 %v625
      %v3284 = vpop.f32.mrf.mxu0
      %v3285 = vadd.f32 %v2932, %v3284
      %v3286 = vpop.f32.mrf.mxu0
      %v3287 = vadd.f32 %v2934, %v3286
      %v3288 = vpop.f32.mrf.mxu0
      %v3289 = vadd.f32 %v2936, %v3288
      %v3290 = vpop.f32.mrf.mxu0
      %v3291 = vadd.f32 %v2938, %v3290
      %3292 = vmatprep.mubr.bf16.mxu0 %v631
      %3293 = vmatmul.mubr.bf16.gmra.mxu0 %v630
      %v3294 = vpop.f32.mrf.mxu0
      %v3295 = vadd.f32 %v2942, %v3294
      %v3296 = vpop.f32.mrf.mxu0
      %v3297 = vadd.f32 %v2944, %v3296
      %v3298 = vpop.f32.mrf.mxu0
      %v3299 = vadd.f32 %v2946, %v3298
      %v3300 = vpop.f32.mrf.mxu0
      %v3301 = vadd.f32 %v2948, %v3300
      %3302 = vmatprep.mubr.bf16.mxu0 %v636
      %3303 = vmatmul.mubr.bf16.gmra.mxu0 %v635
      %v3304 = vpop.f32.mrf.mxu0
      %v3305 = vadd.f32 %v2952, %v3304
      %v3306 = vpop.f32.mrf.mxu0
      %v3307 = vadd.f32 %v2954, %v3306
      %v3308 = vpop.f32.mrf.mxu0
      %v3309 = vadd.f32 %v2956, %v3308
      %v3310 = vpop.f32.mrf.mxu0
      %v3311 = vadd.f32 %v2958, %v3310
      %3312 = vmatprep.mubr.bf16.mxu0 %v641
      %3313 = vmatmul.mubr.bf16.gmra.mxu0 %v640
      %v3314 = vpop.f32.mrf.mxu0
      %v3315 = vadd.f32 %v2962, %v3314
      %v3316 = vpop.f32.mrf.mxu0
      %v3317 = vadd.f32 %v2964, %v3316
      %v3318 = vpop.f32.mrf.mxu0
      %v3319 = vadd.f32 %v2966, %v3318
      %v3320 = vpop.f32.mrf.mxu0
      %v3321 = vadd.f32 %v2968, %v3320
      %3322 = vmatprep.mubr.bf16.mxu0 %v646
      %3323 = vmatmul.mubr.bf16.gmra.mxu0 %v645
      %v3324 = vpop.f32.mrf.mxu0
      %v3325 = vadd.f32 %v2972, %v3324
      %v3326 = vpop.f32.mrf.mxu0
      %v3327 = vadd.f32 %v2974, %v3326
      %v3328 = vpop.f32.mrf.mxu0
      %v3329 = vadd.f32 %v2976, %v3328
      %v3330 = vpop.f32.mrf.mxu0
      %v3331 = vadd.f32 %v2978, %v3330
      %3332 = vmatprep.mubr.bf16.mxu0 %v651
      %3333 = vmatmul.mubr.bf16.gmra.mxu0 %v650
      %v3334 = vpop.f32.mrf.mxu0
      %v3335 = vadd.f32 %v2982, %v3334
      %v3336 = vpop.f32.mrf.mxu0
      %v3337 = vadd.f32 %v2984, %v3336
      %v3338 = vpop.f32.mrf.mxu0
      %v3339 = vadd.f32 %v2986, %v3338
      %v3340 = vpop.f32.mrf.mxu0
      %v3341 = vadd.f32 %v2988, %v3340
      %3342 = vmatprep.mubr.bf16.mxu0 %v656
      %3343 = vmatmul.mubr.bf16.gmra.mxu0 %v655
      %v3344 = vpop.f32.mrf.mxu0
      %v3345 = vadd.f32 %v2992, %v3344
      %v3346 = vpop.f32.mrf.mxu0
      %v3347 = vadd.f32 %v2994, %v3346
      %v3348 = vpop.f32.mrf.mxu0
      %v3349 = vadd.f32 %v2996, %v3348
      %v3350 = vpop.f32.mrf.mxu0
      %v3351 = vadd.f32 %v2998, %v3350
      %3352 = vmatprep.mubr.bf16.mxu0 %v661
      %3353 = vmatmul.mubr.bf16.gmra.mxu0 %v660
      %v3354 = vpop.f32.mrf.mxu0
      %v3355 = vadd.f32 %v3002, %v3354
      %v3356 = vpop.f32.mrf.mxu0
      %v3357 = vadd.f32 %v3004, %v3356
      %v3358 = vpop.f32.mrf.mxu0
      %v3359 = vadd.f32 %v3006, %v3358
      %v3360 = vpop.f32.mrf.mxu0
      %v3361 = vadd.f32 %v3008, %v3360
      %3362 = vmatprep.mubr.bf16.mxu0 %v666
      %3363 = vmatmul.mubr.bf16.gmra.mxu0 %v665
      %v3364 = vpop.f32.mrf.mxu0
      %v3365 = vadd.f32 %v3012, %v3364
      %v3366 = vpop.f32.mrf.mxu0
      %v3367 = vadd.f32 %v3014, %v3366
      %v3368 = vpop.f32.mrf.mxu0
      %v3369 = vadd.f32 %v3016, %v3368
      %v3370 = vpop.f32.mrf.mxu0
      %v3371 = vadd.f32 %v3018, %v3370
      %3372 = vmatprep.mubr.bf16.mxu0 %v671
      %3373 = vmatmul.mubr.bf16.gmra.mxu0 %v670
      %v3374 = vpop.f32.mrf.mxu0
      %v3375 = vadd.f32 %v3022, %v3374
      %v3376 = vpop.f32.mrf.mxu0
      %v3377 = vadd.f32 %v3024, %v3376
      %v3378 = vpop.f32.mrf.mxu0
      %v3379 = vadd.f32 %v3026, %v3378
      %v3380 = vpop.f32.mrf.mxu0
      %v3381 = vadd.f32 %v3028, %v3380
      %3382 = vmatprep.mubr.bf16.mxu0 %v676
      %3383 = vmatmul.mubr.bf16.gmra.mxu0 %v675
      %v3384 = vpop.f32.mrf.mxu0
      %v3385 = vadd.f32 %v3032, %v3384
      %v3386 = vpop.f32.mrf.mxu0
      %v3387 = vadd.f32 %v3034, %v3386
      %v3388 = vpop.f32.mrf.mxu0
      %v3389 = vadd.f32 %v3036, %v3388
      %v3390 = vpop.f32.mrf.mxu0
      %v3391 = vadd.f32 %v3038, %v3390
      %3392 = vmatprep.mubr.bf16.mxu0 %v681
      %3393 = vmatmul.mubr.bf16.gmra.mxu0 %v680
      %v3394 = vpop.f32.mrf.mxu0
      %v3395 = vadd.f32 %v3042, %v3394
      %v3396 = vpop.f32.mrf.mxu0
      %v3397 = vadd.f32 %v3044, %v3396
      %v3398 = vpop.f32.mrf.mxu0
      %v3399 = vadd.f32 %v3046, %v3398
      %v3400 = vpop.f32.mrf.mxu0
      %v3401 = vadd.f32 %v3048, %v3400
      %3402 = vmatprep.mubr.bf16.mxu0 %v686
      %3403 = vmatmul.mubr.bf16.gmra.mxu0 %v685
      %v3404 = vpop.f32.mrf.mxu0
      %v3405 = vadd.f32 %v3052, %v3404
      %v3406 = vpop.f32.mrf.mxu0
      %v3407 = vadd.f32 %v3054, %v3406
      %v3408 = vpop.f32.mrf.mxu0
      %v3409 = vadd.f32 %v3056, %v3408
      %v3410 = vpop.f32.mrf.mxu0
      %v3411 = vadd.f32 %v3058, %v3410
      %3412 = vmatprep.mubr.bf16.mxu0 %v691
      %3413 = vmatmul.mubr.bf16.gmra.mxu0 %v690
      %v3414 = vpop.f32.mrf.mxu0
      %v3415 = vadd.f32 %v3062, %v3414
      %v3416 = vpop.f32.mrf.mxu0
      %v3417 = vadd.f32 %v3064, %v3416
      %v3418 = vpop.f32.mrf.mxu0
      %v3419 = vadd.f32 %v3066, %v3418
      %v3420 = vpop.f32.mrf.mxu0
      %v3421 = vadd.f32 %v3068, %v3420
      %3422 = vmatprep.mubr.bf16.mxu0 %v696
      %3423 = vmatmul.mubr.bf16.gmra.mxu0 %v695
      %v3424 = vpop.f32.mrf.mxu0
      %v3425 = vadd.f32 %v3072, %v3424
      %v3426 = vpop.f32.mrf.mxu0
      %v3427 = vadd.f32 %v3074, %v3426
      %v3428 = vpop.f32.mrf.mxu0
      %v3429 = vadd.f32 %v3076, %v3428
      %v3430 = vpop.f32.mrf.mxu0
      %v3431 = vadd.f32 %v3078, %v3430
      %3432 = vmatprep.mubr.bf16.mxu0 %v701
      %3433 = vmatmul.mubr.bf16.gmra.mxu0 %v700
      %v3434 = vpop.f32.mrf.mxu0
      %v3435 = vadd.f32 %v3082, %v3434
      %v3436 = vpop.f32.mrf.mxu0
      %v3437 = vadd.f32 %v3084, %v3436
      %v3438 = vpop.f32.mrf.mxu0
      %v3439 = vadd.f32 %v3086, %v3438
      %v3440 = vpop.f32.mrf.mxu0
      %v3441 = vadd.f32 %v3088, %v3440
      %3442 = vmatprep.mubr.bf16.mxu0 %v706
      %3443 = vmatmul.mubr.bf16.gmra.mxu0 %v705
      %v3444 = vpop.f32.mrf.mxu0
      %v3445 = vadd.f32 %v3092, %v3444
      %v3446 = vpop.f32.mrf.mxu0
      %v3447 = vadd.f32 %v3094, %v3446
      %v3448 = vpop.f32.mrf.mxu0
      %v3449 = vadd.f32 %v3096, %v3448
      %v3450 = vpop.f32.mrf.mxu0
      %v3451 = vadd.f32 %v3098, %v3450
      %3452 = vmatprep.mubr.bf16.mxu0 %v711
      %3453 = vmatmul.mubr.bf16.gmra.mxu0 %v710
      %v3454 = vpop.f32.mrf.mxu0
      %v3455 = vadd.f32 %v3102, %v3454
      %v3456 = vpop.f32.mrf.mxu0
      %v3457 = vadd.f32 %v3104, %v3456
      %v3458 = vpop.f32.mrf.mxu0
      %v3459 = vadd.f32 %v3106, %v3458
      %v3460 = vpop.f32.mrf.mxu0
      %v3461 = vadd.f32 %v3108, %v3460
      %3462 = vmatprep.mubr.bf16.mxu0 %v716
      %3463 = vmatmul.mubr.bf16.gmra.mxu0 %v715
      %v3464 = vpop.f32.mrf.mxu0
      %v3465 = vadd.f32 %v3112, %v3464
      %v3466 = vpop.f32.mrf.mxu0
      %v3467 = vadd.f32 %v3114, %v3466
      %v3468 = vpop.f32.mrf.mxu0
      %v3469 = vadd.f32 %v3116, %v3468
      %v3470 = vpop.f32.mrf.mxu0
      %v3471 = vadd.f32 %v3118, %v3470
      %3472 = vmatprep.mubr.bf16.mxu0 %v721
      %3473 = vmatmul.mubr.bf16.gmra.mxu0 %v720
      %v3474 = vpop.f32.mrf.mxu0
      %v3475 = vadd.f32 %v3122, %v3474
      %v3476 = vpop.f32.mrf.mxu0
      %v3477 = vadd.f32 %v3124, %v3476
      %v3478 = vpop.f32.mrf.mxu0
      %v3479 = vadd.f32 %v3126, %v3478
      %v3480 = vpop.f32.mrf.mxu0
      %v3481 = vadd.f32 %v3128, %v3480
      %3482 = vmatprep.mubr.bf16.mxu0 %v726
      %3483 = vmatmul.mubr.bf16.gmra.mxu0 %v725
      %v3484 = vpop.f32.mrf.mxu0
      %v3485 = vadd.f32 %v3132, %v3484
      %v3486 = vpop.f32.mrf.mxu0
      %v3487 = vadd.f32 %v3134, %v3486
      %v3488 = vpop.f32.mrf.mxu0
      %v3489 = vadd.f32 %v3136, %v3488
      %v3490 = vpop.f32.mrf.mxu0
      %v3491 = vadd.f32 %v3138, %v3490
      %3492 = vmatprep.mubr.bf16.mxu0 %v731
      %3493 = vmatmul.mubr.bf16.gmra.mxu0 %v730
      %v3494 = vpop.f32.mrf.mxu0
      %v3495 = vadd.f32 %v3142, %v3494
      %v3496 = vpop.f32.mrf.mxu0
      %v3497 = vadd.f32 %v3144, %v3496
      %v3498 = vpop.f32.mrf.mxu0
      %v3499 = vadd.f32 %v3146, %v3498
      %v3500 = vpop.f32.mrf.mxu0
      %v3501 = vadd.f32 %v3148, %v3500
      %3502 = vmatprep.mubr.bf16.mxu0 %v736
      %3503 = vmatmul.mubr.bf16.gmra.mxu0 %v735
      %v3504 = vpop.f32.mrf.mxu0
      %v3505 = vadd.f32 %v3152, %v3504
      %v3506 = vpop.f32.mrf.mxu0
      %v3507 = vadd.f32 %v3154, %v3506
      %v3508 = vpop.f32.mrf.mxu0
      %v3509 = vadd.f32 %v3156, %v3508
      %v3510 = vpop.f32.mrf.mxu0
      %v3511 = vadd.f32 %v3158, %v3510
      %3512 = vmatprep.mubr.bf16.mxu0 %v741
      %3513 = vmatmul.mubr.bf16.gmra.mxu0 %v740
      %v3514 = vpop.f32.mrf.mxu0
      %v3515 = vadd.f32 %v3162, %v3514
      %v3516 = vpop.f32.mrf.mxu0
      %v3517 = vadd.f32 %v3164, %v3516
      %v3518 = vpop.f32.mrf.mxu0
      %v3519 = vadd.f32 %v3166, %v3518
      %v3520 = vpop.f32.mrf.mxu0
      %v3521 = vadd.f32 %v3168, %v3520
      %3522 = vmatprep.mubr.bf16.mxu0 %v746
      %3523 = vmatmul.mubr.bf16.gmra.mxu0 %v745
      %v3524 = vpop.f32.mrf.mxu0
      %v3525 = vadd.f32 %v3172, %v3524
      %v3526 = vpop.f32.mrf.mxu0
      %v3527 = vadd.f32 %v3174, %v3526
      %v3528 = vpop.f32.mrf.mxu0
      %v3529 = vadd.f32 %v3176, %v3528
      %v3530 = vpop.f32.mrf.mxu0
      %v3531 = vadd.f32 %v3178, %v3530
      %3532 = vmatprep.mubr.bf16.mxu0 %v751
      %3533 = vmatmul.mubr.bf16.gmra.mxu0 %v750
      %v3534 = vpop.f32.mrf.mxu0
      %v3535 = vadd.f32 %v3182, %v3534
      %v3536 = vpop.f32.mrf.mxu0
      %v3537 = vadd.f32 %v3184, %v3536
      %v3538 = vpop.f32.mrf.mxu0
      %v3539 = vadd.f32 %v3186, %v3538
      %v3540 = vpop.f32.mrf.mxu0
      %v3541 = vadd.f32 %v3188, %v3540
      %3542 = vmatprep.mubr.bf16.mxu0 %v756
      %3543 = vmatmul.mubr.bf16.gmra.mxu0 %v755
      %v3544 = vpop.f32.mrf.mxu0
      %v3545 = vadd.f32 %v3192, %v3544
      %v3546 = vpop.f32.mrf.mxu0
      %v3547 = vadd.f32 %v3194, %v3546
      %v3548 = vpop.f32.mrf.mxu0
      %v3549 = vadd.f32 %v3196, %v3548
      %v3550 = vpop.f32.mrf.mxu0
      %v3551 = vadd.f32 %v3198, %v3550
      %3552 = vmatprep.mubr.bf16.mxu0 %v761
      %3553 = vmatmul.mubr.bf16.gmra.mxu0 %v760
      %v3554 = vpop.f32.mrf.mxu0
      %v3555 = vadd.f32 %v3202, %v3554
      %v3556 = vpop.f32.mrf.mxu0
      %v3557 = vadd.f32 %v3204, %v3556
      %v3558 = vpop.f32.mrf.mxu0
      %v3559 = vadd.f32 %v3206, %v3558
      %v3560 = vpop.f32.mrf.mxu0
      %v3561 = vadd.f32 %v3208, %v3560
      %3562 = vmatprep.mubr.bf16.mxu0 %v766
      %3563 = vmatmul.mubr.bf16.gmra.mxu0 %v765
      %v3564 = vpop.f32.mrf.mxu0
      %v3565 = vadd.f32 %v3212, %v3564
      %v3566 = vpop.f32.mrf.mxu0
      %v3567 = vadd.f32 %v3214, %v3566
      %v3568 = vpop.f32.mrf.mxu0
      %v3569 = vadd.f32 %v3216, %v3568
      %v3570 = vpop.f32.mrf.mxu0
      %v3571 = vadd.f32 %v3218, %v3570
      %3572 = vdwg.mxu0
      %3573 = vmatprep.subr.bf16.mxu0 0
      %3574 = vmatpush1.bf16.msra.mxu0 0
      %3575 = vmatprep.subr.bf16.mxu0 0
      %3576 = vmatpush1.bf16.msra.mxu0 0
      %3577 = vmatprep.subr.bf16.mxu0 %v1806
      %3578 = vmatpush1.bf16.msra.mxu0 %v1803
      %3579 = vmatprep.subr.bf16.mxu0 %v1545
      %3580 = vmatpush1.bf16.msra.mxu0 %v1544
      %3581 = vmatprep.subr.bf16.mxu0 %v1541
      %3582 = vmatpush1.bf16.msra.mxu0 %v1540
      %3583 = vmatprep.subr.bf16.mxu0 %v1537
      %3584 = vmatpush1.bf16.msra.mxu0 %v1536
      %3585 = vmatprep.subr.bf16.mxu0 %v1533
      %3586 = vmatpush1.bf16.msra.mxu0 %v1532
      %3587 = vmatprep.subr.bf16.mxu0 %v1529
      %3588 = vmatpush1.bf16.msra.mxu0 %v1528
      %3589 = vmatprep.subr.bf16.mxu0 0
      %3590 = vmatpush2.bf16.msra.mxu0 0
      %3591 = vmatprep.subr.bf16.mxu0 0
      %3592 = vmatpush2.bf16.msra.mxu0 0
      %3593 = vmatprep.subr.bf16.mxu0 0
      %3594 = vmatpush2.bf16.msra.mxu0 0
      %3595 = vmatprep.subr.bf16.mxu0 0
      %3596 = vmatpush2.bf16.msra.mxu0 0
      %3597 = vmatprep.subr.bf16.mxu0 0
      %3598 = vmatpush2.bf16.msra.mxu0 0
      %3599 = vmatprep.subr.bf16.mxu0 0
      %3600 = vmatpush2.bf16.msra.mxu0 0
      %3601 = vmatprep.subr.bf16.mxu0 0
      %3602 = vmatpush2.bf16.msra.mxu0 0
      %3603 = vmatprep.subr.bf16.mxu0 0
      %3604 = vmatpush2.bf16.msra.mxu0 0
      %3605 = vmatprep.mubr.bf16.mxu0 0
      %3606 = vmatmul.mubr.bf16.gmra.mxu0 %v1700
      %v3607 = vpop.f32.mrf.mxu0
      %v3608 = vadd.f32 %v3255, %v3607
      %v3609 = vpop.f32.mrf.mxu0
      %v3610 = vadd.f32 %v3257, %v3609
      %v3611 = vpop.f32.mrf.mxu0
      %v3612 = vadd.f32 %v3259, %v3611
      %v3613 = vpop.f32.mrf.mxu0
      %v3614 = vadd.f32 %v3261, %v3613
      %3615 = vmatprep.mubr.bf16.mxu0 0
      %3616 = vmatmul.mubr.bf16.gmra.mxu0 %v1703
      %v3617 = vpop.f32.mrf.mxu0
      %v3618 = vadd.f32 %v3265, %v3617
      %v3619 = vpop.f32.mrf.mxu0
      %v3620 = vadd.f32 %v3267, %v3619
      %v3621 = vpop.f32.mrf.mxu0
      %v3622 = vadd.f32 %v3269, %v3621
      %v3623 = vpop.f32.mrf.mxu0
      %v3624 = vadd.f32 %v3271, %v3623
      %3625 = vmatprep.mubr.bf16.mxu0 0
      %3626 = vmatmul.mubr.bf16.gmra.mxu0 %v1706
      %v3627 = vpop.f32.mrf.mxu0
      %v3628 = vadd.f32 %v3275, %v3627
      %v3629 = vpop.f32.mrf.mxu0
      %v3630 = vadd.f32 %v3277, %v3629
      %v3631 = vpop.f32.mrf.mxu0
      %v3632 = vadd.f32 %v3279, %v3631
      %v3633 = vpop.f32.mrf.mxu0
      %v3634 = vadd.f32 %v3281, %v3633
      %3635 = vmatprep.mubr.bf16.mxu0 0
      %3636 = vmatmul.mubr.bf16.gmra.mxu0 %v1709
      %v3637 = vpop.f32.mrf.mxu0
      %v3638 = vadd.f32 %v3285, %v3637
      %v3639 = vpop.f32.mrf.mxu0
      %v3640 = vadd.f32 %v3287, %v3639
      %v3641 = vpop.f32.mrf.mxu0
      %v3642 = vadd.f32 %v3289, %v3641
      %v3643 = vpop.f32.mrf.mxu0
      %v3644 = vadd.f32 %v3291, %v3643
      %3645 = vmatprep.mubr.bf16.mxu0 0
      %3646 = vmatmul.mubr.bf16.gmra.mxu0 %v1712
      %v3647 = vpop.f32.mrf.mxu0
      %v3648 = vadd.f32 %v3295, %v3647
      %v3649 = vpop.f32.mrf.mxu0
      %v3650 = vadd.f32 %v3297, %v3649
      %v3651 = vpop.f32.mrf.mxu0
      %v3652 = vadd.f32 %v3299, %v3651
      %v3653 = vpop.f32.mrf.mxu0
      %v3654 = vadd.f32 %v3301, %v3653
      %3655 = vmatprep.mubr.bf16.mxu0 0
      %3656 = vmatmul.mubr.bf16.gmra.mxu0 %v1715
      %v3657 = vpop.f32.mrf.mxu0
      %v3658 = vadd.f32 %v3305, %v3657
      %v3659 = vpop.f32.mrf.mxu0
      %v3660 = vadd.f32 %v3307, %v3659
      %v3661 = vpop.f32.mrf.mxu0
      %v3662 = vadd.f32 %v3309, %v3661
      %v3663 = vpop.f32.mrf.mxu0
      %v3664 = vadd.f32 %v3311, %v3663
      %3665 = vmatprep.mubr.bf16.mxu0 0
      %3666 = vmatmul.mubr.bf16.gmra.mxu0 %v1718
      %v3667 = vpop.f32.mrf.mxu0
      %v3668 = vadd.f32 %v3315, %v3667
      %v3669 = vpop.f32.mrf.mxu0
      %v3670 = vadd.f32 %v3317, %v3669
      %v3671 = vpop.f32.mrf.mxu0
      %v3672 = vadd.f32 %v3319, %v3671
      %v3673 = vpop.f32.mrf.mxu0
      %v3674 = vadd.f32 %v3321, %v3673
      %3675 = vmatprep.mubr.bf16.mxu0 0
      %3676 = vmatmul.mubr.bf16.gmra.mxu0 %v1721
      %v3677 = vpop.f32.mrf.mxu0
      %v3678 = vadd.f32 %v3325, %v3677
      %v3679 = vpop.f32.mrf.mxu0
      %v3680 = vadd.f32 %v3327, %v3679
      %v3681 = vpop.f32.mrf.mxu0
      %v3682 = vadd.f32 %v3329, %v3681
      %v3683 = vpop.f32.mrf.mxu0
      %v3684 = vadd.f32 %v3331, %v3683
      %3685 = vmatprep.mubr.bf16.mxu0 0
      %3686 = vmatmul.mubr.bf16.gmra.mxu0 %v1724
      %v3687 = vpop.f32.mrf.mxu0
      %v3688 = vadd.f32 %v3335, %v3687
      %v3689 = vpop.f32.mrf.mxu0
      %v3690 = vadd.f32 %v3337, %v3689
      %v3691 = vpop.f32.mrf.mxu0
      %v3692 = vadd.f32 %v3339, %v3691
      %v3693 = vpop.f32.mrf.mxu0
      %v3694 = vadd.f32 %v3341, %v3693
      %3695 = vmatprep.mubr.bf16.mxu0 0
      %3696 = vmatmul.mubr.bf16.gmra.mxu0 %v1727
      %v3697 = vpop.f32.mrf.mxu0
      %v3698 = vadd.f32 %v3345, %v3697
      %v3699 = vpop.f32.mrf.mxu0
      %v3700 = vadd.f32 %v3347, %v3699
      %v3701 = vpop.f32.mrf.mxu0
      %v3702 = vadd.f32 %v3349, %v3701
      %v3703 = vpop.f32.mrf.mxu0
      %v3704 = vadd.f32 %v3351, %v3703
      %3705 = vmatprep.mubr.bf16.mxu0 0
      %3706 = vmatmul.mubr.bf16.gmra.mxu0 %v1730
      %v3707 = vpop.f32.mrf.mxu0
      %v3708 = vadd.f32 %v3355, %v3707
      %v3709 = vpop.f32.mrf.mxu0
      %v3710 = vadd.f32 %v3357, %v3709
      %v3711 = vpop.f32.mrf.mxu0
      %v3712 = vadd.f32 %v3359, %v3711
      %v3713 = vpop.f32.mrf.mxu0
      %v3714 = vadd.f32 %v3361, %v3713
      %3715 = vmatprep.mubr.bf16.mxu0 0
      %3716 = vmatmul.mubr.bf16.gmra.mxu0 %v1733
      %v3717 = vpop.f32.mrf.mxu0
      %v3718 = vadd.f32 %v3365, %v3717
      %v3719 = vpop.f32.mrf.mxu0
      %v3720 = vadd.f32 %v3367, %v3719
      %v3721 = vpop.f32.mrf.mxu0
      %v3722 = vadd.f32 %v3369, %v3721
      %v3723 = vpop.f32.mrf.mxu0
      %v3724 = vadd.f32 %v3371, %v3723
      %3725 = vmatprep.mubr.bf16.mxu0 0
      %3726 = vmatmul.mubr.bf16.gmra.mxu0 %v1736
      %v3727 = vpop.f32.mrf.mxu0
      %v3728 = vadd.f32 %v3375, %v3727
      %v3729 = vpop.f32.mrf.mxu0
      %v3730 = vadd.f32 %v3377, %v3729
      %v3731 = vpop.f32.mrf.mxu0
      %v3732 = vadd.f32 %v3379, %v3731
      %v3733 = vpop.f32.mrf.mxu0
      %v3734 = vadd.f32 %v3381, %v3733
      %3735 = vmatprep.mubr.bf16.mxu0 0
      %3736 = vmatmul.mubr.bf16.gmra.mxu0 %v1739
      %v3737 = vpop.f32.mrf.mxu0
      %v3738 = vadd.f32 %v3385, %v3737
      %v3739 = vpop.f32.mrf.mxu0
      %v3740 = vadd.f32 %v3387, %v3739
      %v3741 = vpop.f32.mrf.mxu0
      %v3742 = vadd.f32 %v3389, %v3741
      %v3743 = vpop.f32.mrf.mxu0
      %v3744 = vadd.f32 %v3391, %v3743
      %3745 = vmatprep.mubr.bf16.mxu0 0
      %3746 = vmatmul.mubr.bf16.gmra.mxu0 %v1742
      %v3747 = vpop.f32.mrf.mxu0
      %v3748 = vadd.f32 %v3395, %v3747
      %v3749 = vpop.f32.mrf.mxu0
      %v3750 = vadd.f32 %v3397, %v3749
      %v3751 = vpop.f32.mrf.mxu0
      %v3752 = vadd.f32 %v3399, %v3751
      %v3753 = vpop.f32.mrf.mxu0
      %v3754 = vadd.f32 %v3401, %v3753
      %3755 = vmatprep.mubr.bf16.mxu0 0
      %3756 = vmatmul.mubr.bf16.gmra.mxu0 %v1745
      %v3757 = vpop.f32.mrf.mxu0
      %v3758 = vadd.f32 %v3405, %v3757
      %v3759 = vpop.f32.mrf.mxu0
      %v3760 = vadd.f32 %v3407, %v3759
      %v3761 = vpop.f32.mrf.mxu0
      %v3762 = vadd.f32 %v3409, %v3761
      %v3763 = vpop.f32.mrf.mxu0
      %v3764 = vadd.f32 %v3411, %v3763
      %3765 = vmatprep.mubr.bf16.mxu0 0
      %3766 = vmatmul.mubr.bf16.gmra.mxu0 %v1748
      %v3767 = vpop.f32.mrf.mxu0
      %v3768 = vadd.f32 %v3415, %v3767
      %v3769 = vpop.f32.mrf.mxu0
      %v3770 = vadd.f32 %v3417, %v3769
      %v3771 = vpop.f32.mrf.mxu0
      %v3772 = vadd.f32 %v3419, %v3771
      %v3773 = vpop.f32.mrf.mxu0
      %v3774 = vadd.f32 %v3421, %v3773
      %3775 = vmatprep.mubr.bf16.mxu0 0
      %3776 = vmatmul.mubr.bf16.gmra.mxu0 %v1751
      %v3777 = vpop.f32.mrf.mxu0
      %v3778 = vadd.f32 %v3425, %v3777
      %v3779 = vpop.f32.mrf.mxu0
      %v3780 = vadd.f32 %v3427, %v3779
      %v3781 = vpop.f32.mrf.mxu0
      %v3782 = vadd.f32 %v3429, %v3781
      %v3783 = vpop.f32.mrf.mxu0
      %v3784 = vadd.f32 %v3431, %v3783
      %3785 = vmatprep.mubr.bf16.mxu0 0
      %3786 = vmatmul.mubr.bf16.gmra.mxu0 %v1754
      %v3787 = vpop.f32.mrf.mxu0
      %v3788 = vadd.f32 %v3435, %v3787
      %v3789 = vpop.f32.mrf.mxu0
      %v3790 = vadd.f32 %v3437, %v3789
      %v3791 = vpop.f32.mrf.mxu0
      %v3792 = vadd.f32 %v3439, %v3791
      %v3793 = vpop.f32.mrf.mxu0
      %v3794 = vadd.f32 %v3441, %v3793
      %3795 = vmatprep.mubr.bf16.mxu0 0
      %3796 = vmatmul.mubr.bf16.gmra.mxu0 %v1757
      %v3797 = vpop.f32.mrf.mxu0
      %v3798 = vadd.f32 %v3445, %v3797
      %v3799 = vpop.f32.mrf.mxu0
      %v3800 = vadd.f32 %v3447, %v3799
      %v3801 = vpop.f32.mrf.mxu0
      %v3802 = vadd.f32 %v3449, %v3801
      %v3803 = vpop.f32.mrf.mxu0
      %v3804 = vadd.f32 %v3451, %v3803
      %3805 = vmatprep.mubr.bf16.mxu0 0
      %3806 = vmatmul.mubr.bf16.gmra.mxu0 %v1760
      %v3807 = vpop.f32.mrf.mxu0
      %v3808 = vadd.f32 %v3455, %v3807
      %v3809 = vpop.f32.mrf.mxu0
      %v3810 = vadd.f32 %v3457, %v3809
      %v3811 = vpop.f32.mrf.mxu0
      %v3812 = vadd.f32 %v3459, %v3811
      %v3813 = vpop.f32.mrf.mxu0
      %v3814 = vadd.f32 %v3461, %v3813
      %3815 = vmatprep.mubr.bf16.mxu0 0
      %3816 = vmatmul.mubr.bf16.gmra.mxu0 %v1763
      %v3817 = vpop.f32.mrf.mxu0
      %v3818 = vadd.f32 %v3465, %v3817
      %v3819 = vpop.f32.mrf.mxu0
      %v3820 = vadd.f32 %v3467, %v3819
      %v3821 = vpop.f32.mrf.mxu0
      %v3822 = vadd.f32 %v3469, %v3821
      %v3823 = vpop.f32.mrf.mxu0
      %v3824 = vadd.f32 %v3471, %v3823
      %3825 = vmatprep.mubr.bf16.mxu0 0
      %3826 = vmatmul.mubr.bf16.gmra.mxu0 %v1766
      %v3827 = vpop.f32.mrf.mxu0
      %v3828 = vadd.f32 %v3475, %v3827
      %v3829 = vpop.f32.mrf.mxu0
      %v3830 = vadd.f32 %v3477, %v3829
      %v3831 = vpop.f32.mrf.mxu0
      %v3832 = vadd.f32 %v3479, %v3831
      %v3833 = vpop.f32.mrf.mxu0
      %v3834 = vadd.f32 %v3481, %v3833
      %3835 = vmatprep.mubr.bf16.mxu0 0
      %3836 = vmatmul.mubr.bf16.gmra.mxu0 %v1769
      %v3837 = vpop.f32.mrf.mxu0
      %v3838 = vadd.f32 %v3485, %v3837
      %v3839 = vpop.f32.mrf.mxu0
      %v3840 = vadd.f32 %v3487, %v3839
      %v3841 = vpop.f32.mrf.mxu0
      %v3842 = vadd.f32 %v3489, %v3841
      %v3843 = vpop.f32.mrf.mxu0
      %v3844 = vadd.f32 %v3491, %v3843
      %3845 = vmatprep.mubr.bf16.mxu0 0
      %3846 = vmatmul.mubr.bf16.gmra.mxu0 %v1772
      %v3847 = vpop.f32.mrf.mxu0
      %v3848 = vadd.f32 %v3495, %v3847
      %v3849 = vpop.f32.mrf.mxu0
      %v3850 = vadd.f32 %v3497, %v3849
      %v3851 = vpop.f32.mrf.mxu0
      %v3852 = vadd.f32 %v3499, %v3851
      %v3853 = vpop.f32.mrf.mxu0
      %v3854 = vadd.f32 %v3501, %v3853
      %3855 = vmatprep.mubr.bf16.mxu0 0
      %3856 = vmatmul.mubr.bf16.gmra.mxu0 %v1775
      %v3857 = vpop.f32.mrf.mxu0
      %v3858 = vadd.f32 %v3505, %v3857
      %v3859 = vpop.f32.mrf.mxu0
      %v3860 = vadd.f32 %v3507, %v3859
      %v3861 = vpop.f32.mrf.mxu0
      %v3862 = vadd.f32 %v3509, %v3861
      %v3863 = vpop.f32.mrf.mxu0
      %v3864 = vadd.f32 %v3511, %v3863
      %3865 = vmatprep.mubr.bf16.mxu0 0
      %3866 = vmatmul.mubr.bf16.gmra.mxu0 %v1778
      %v3867 = vpop.f32.mrf.mxu0
      %v3868 = vadd.f32 %v3515, %v3867
      %v3869 = vpop.f32.mrf.mxu0
      %v3870 = vadd.f32 %v3517, %v3869
      %v3871 = vpop.f32.mrf.mxu0
      %v3872 = vadd.f32 %v3519, %v3871
      %v3873 = vpop.f32.mrf.mxu0
      %v3874 = vadd.f32 %v3521, %v3873
      %3875 = vmatprep.mubr.bf16.mxu0 0
      %3876 = vmatmul.mubr.bf16.gmra.mxu0 %v1781
      %v3877 = vpop.f32.mrf.mxu0
      %v3878 = vadd.f32 %v3525, %v3877
      %v3879 = vpop.f32.mrf.mxu0
      %v3880 = vadd.f32 %v3527, %v3879
      %v3881 = vpop.f32.mrf.mxu0
      %v3882 = vadd.f32 %v3529, %v3881
      %v3883 = vpop.f32.mrf.mxu0
      %v3884 = vadd.f32 %v3531, %v3883
      %3885 = vmatprep.mubr.bf16.mxu0 0
      %3886 = vmatmul.mubr.bf16.gmra.mxu0 %v1784
      %v3887 = vpop.f32.mrf.mxu0
      %v3888 = vadd.f32 %v3535, %v3887
      %v3889 = vpop.f32.mrf.mxu0
      %v3890 = vadd.f32 %v3537, %v3889
      %v3891 = vpop.f32.mrf.mxu0
      %v3892 = vadd.f32 %v3539, %v3891
      %v3893 = vpop.f32.mrf.mxu0
      %v3894 = vadd.f32 %v3541, %v3893
      %3895 = vmatprep.mubr.bf16.mxu0 0
      %3896 = vmatmul.mubr.bf16.gmra.mxu0 %v1787
      %v3897 = vpop.f32.mrf.mxu0
      %v3898 = vadd.f32 %v3545, %v3897
      %v3899 = vpop.f32.mrf.mxu0
      %v3900 = vadd.f32 %v3547, %v3899
      %v3901 = vpop.f32.mrf.mxu0
      %v3902 = vadd.f32 %v3549, %v3901
      %v3903 = vpop.f32.mrf.mxu0
      %v3904 = vadd.f32 %v3551, %v3903
      %3905 = vmatprep.mubr.bf16.mxu0 0
      %3906 = vmatmul.mubr.bf16.gmra.mxu0 %v1790
      %v3907 = vpop.f32.mrf.mxu0
      %v3908 = vadd.f32 %v3555, %v3907
      %v3909 = vpop.f32.mrf.mxu0
      %v3910 = vadd.f32 %v3557, %v3909
      %v3911 = vpop.f32.mrf.mxu0
      %v3912 = vadd.f32 %v3559, %v3911
      %v3913 = vpop.f32.mrf.mxu0
      %v3914 = vadd.f32 %v3561, %v3913
      %3915 = vmatprep.mubr.bf16.mxu0 0
      %3916 = vmatmul.mubr.bf16.gmra.mxu0 %v1793
      %v3917 = vpop.f32.mrf.mxu0
      %v3918 = vadd.f32 %v3565, %v3917
      %v3919 = vpop.f32.mrf.mxu0
      %v3920 = vadd.f32 %v3567, %v3919
      %v3921 = vpop.f32.mrf.mxu0
      %v3922 = vadd.f32 %v3569, %v3921
      %v3923 = vpop.f32.mrf.mxu0
      %v3924 = vadd.f32 %v3571, %v3923
      %3925 = vdwg.mxu0
      %v3926 = vmax.f32 %v2549, 0.0
      %v3927 = vmax.f32 %v2551, 0.0
      %v3928 = vmax.f32 %v3608, 0.0
      %v3929 = vmax.f32 %v3610, 0.0
      %v3930 = vmax.f32 %v2553, 0.0
      %v3931 = vmax.f32 %v2555, 0.0
      %v3932 = vmax.f32 %v3612, 0.0
      %v3933 = vmax.f32 %v3614, 0.0
      %v3934 = vmax.f32 %v2559, 0.0
      %v3935 = vmax.f32 %v2561, 0.0
      %v3936 = vmax.f32 %v3618, 0.0
      %v3937 = vmax.f32 %v3620, 0.0
      %v3938 = vmax.f32 %v2563, 0.0
      %v3939 = vmax.f32 %v2565, 0.0
      %v3940 = vmax.f32 %v3622, 0.0
      %v3941 = vmax.f32 %v3624, 0.0
      %v3942 = vmax.f32 %v2569, 0.0
      %v3943 = vmax.f32 %v2571, 0.0
      %v3944 = vmax.f32 %v3628, 0.0
      %v3945 = vmax.f32 %v3630, 0.0
      %v3946 = vmax.f32 %v2573, 0.0
      %v3947 = vmax.f32 %v2575, 0.0
      %v3948 = vmax.f32 %v3632, 0.0
      %v3949 = vmax.f32 %v3634, 0.0
      %v3950 = vmax.f32 %v2579, 0.0
      %v3951 = vmax.f32 %v2581, 0.0
      %v3952 = vmax.f32 %v3638, 0.0
      %v3953 = vmax.f32 %v3640, 0.0
      %v3954 = vmax.f32 %v2583, 0.0
      %v3955 = vmax.f32 %v2585, 0.0
      %v3956 = vmax.f32 %v3642, 0.0
      %v3957 = vmax.f32 %v3644, 0.0
      %v3958 = vmax.f32 %v2589, 0.0
      %v3959 = vmax.f32 %v2591, 0.0
      %v3960 = vmax.f32 %v3648, 0.0
      %v3961 = vmax.f32 %v3650, 0.0
      %v3962 = vmax.f32 %v2593, 0.0
      %v3963 = vmax.f32 %v2595, 0.0
      %v3964 = vmax.f32 %v3652, 0.0
      %v3965 = vmax.f32 %v3654, 0.0
      %v3966 = vmax.f32 %v2599, 0.0
      %v3967 = vmax.f32 %v2601, 0.0
      %v3968 = vmax.f32 %v3658, 0.0
      %v3969 = vmax.f32 %v3660, 0.0
      %v3970 = vmax.f32 %v2603, 0.0
      %v3971 = vmax.f32 %v2605, 0.0
      %v3972 = vmax.f32 %v3662, 0.0
      %v3973 = vmax.f32 %v3664, 0.0
      %v3974 = vmax.f32 %v2609, 0.0
      %v3975 = vmax.f32 %v2611, 0.0
      %v3976 = vmax.f32 %v3668, 0.0
      %v3977 = vmax.f32 %v3670, 0.0
      %v3978 = vmax.f32 %v2613, 0.0
      %v3979 = vmax.f32 %v2615, 0.0
      %v3980 = vmax.f32 %v3672, 0.0
      %v3981 = vmax.f32 %v3674, 0.0
      %v3982 = vmax.f32 %v2619, 0.0
      %v3983 = vmax.f32 %v2621, 0.0
      %v3984 = vmax.f32 %v3678, 0.0
      %v3985 = vmax.f32 %v3680, 0.0
      %v3986 = vmax.f32 %v2623, 0.0
      %v3987 = vmax.f32 %v2625, 0.0
      %v3988 = vmax.f32 %v3682, 0.0
      %v3989 = vmax.f32 %v3684, 0.0
      %v3990 = vmax.f32 %v2629, 0.0
      %v3991 = vmax.f32 %v2631, 0.0
      %v3992 = vmax.f32 %v3688, 0.0
      %v3993 = vmax.f32 %v3690, 0.0
      %v3994 = vmax.f32 %v2633, 0.0
      %v3995 = vmax.f32 %v2635, 0.0
      %v3996 = vmax.f32 %v3692, 0.0
      %v3997 = vmax.f32 %v3694, 0.0
      %v3998 = vmax.f32 %v2639, 0.0
      %v3999 = vmax.f32 %v2641, 0.0
      %v4000 = vmax.f32 %v3698, 0.0
      %v4001 = vmax.f32 %v3700, 0.0
      %v4002 = vmax.f32 %v2643, 0.0
      %v4003 = vmax.f32 %v2645, 0.0
      %v4004 = vmax.f32 %v3702, 0.0
      %v4005 = vmax.f32 %v3704, 0.0
      %v4006 = vmax.f32 %v2649, 0.0
      %v4007 = vmax.f32 %v2651, 0.0
      %v4008 = vmax.f32 %v3708, 0.0
      %v4009 = vmax.f32 %v3710, 0.0
      %v4010 = vmax.f32 %v2653, 0.0
      %v4011 = vmax.f32 %v2655, 0.0
      %v4012 = vmax.f32 %v3712, 0.0
      %v4013 = vmax.f32 %v3714, 0.0
      %v4014 = vmax.f32 %v2659, 0.0
      %v4015 = vmax.f32 %v2661, 0.0
      %v4016 = vmax.f32 %v3718, 0.0
      %v4017 = vmax.f32 %v3720, 0.0
      %v4018 = vmax.f32 %v2663, 0.0
      %v4019 = vmax.f32 %v2665, 0.0
      %v4020 = vmax.f32 %v3722, 0.0
      %v4021 = vmax.f32 %v3724, 0.0
      %v4022 = vmax.f32 %v2669, 0.0
      %v4023 = vmax.f32 %v2671, 0.0
      %v4024 = vmax.f32 %v3728, 0.0
      %v4025 = vmax.f32 %v3730, 0.0
      %v4026 = vmax.f32 %v2673, 0.0
      %v4027 = vmax.f32 %v2675, 0.0
      %v4028 = vmax.f32 %v3732, 0.0
      %v4029 = vmax.f32 %v3734, 0.0
      %v4030 = vmax.f32 %v2679, 0.0
      %v4031 = vmax.f32 %v2681, 0.0
      %v4032 = vmax.f32 %v3738, 0.0
      %v4033 = vmax.f32 %v3740, 0.0
      %v4034 = vmax.f32 %v2683, 0.0
      %v4035 = vmax.f32 %v2685, 0.0
      %v4036 = vmax.f32 %v3742, 0.0
      %v4037 = vmax.f32 %v3744, 0.0
      %v4038 = vmax.f32 %v2689, 0.0
      %v4039 = vmax.f32 %v2691, 0.0
      %v4040 = vmax.f32 %v3748, 0.0
      %v4041 = vmax.f32 %v3750, 0.0
      %v4042 = vmax.f32 %v2693, 0.0
      %v4043 = vmax.f32 %v2695, 0.0
      %v4044 = vmax.f32 %v3752, 0.0
      %v4045 = vmax.f32 %v3754, 0.0
      %v4046 = vmax.f32 %v2699, 0.0
      %v4047 = vmax.f32 %v2701, 0.0
      %v4048 = vmax.f32 %v3758, 0.0
      %v4049 = vmax.f32 %v3760, 0.0
      %v4050 = vmax.f32 %v2703, 0.0
      %v4051 = vmax.f32 %v2705, 0.0
      %v4052 = vmax.f32 %v3762, 0.0
      %v4053 = vmax.f32 %v3764, 0.0
      %v4054 = vmax.f32 %v2709, 0.0
      %v4055 = vmax.f32 %v2711, 0.0
      %v4056 = vmax.f32 %v3768, 0.0
      %v4057 = vmax.f32 %v3770, 0.0
      %v4058 = vmax.f32 %v2713, 0.0
      %v4059 = vmax.f32 %v2715, 0.0
      %v4060 = vmax.f32 %v3772, 0.0
      %v4061 = vmax.f32 %v3774, 0.0
      %v4062 = vmax.f32 %v2719, 0.0
      %v4063 = vmax.f32 %v2721, 0.0
      %v4064 = vmax.f32 %v3778, 0.0
      %v4065 = vmax.f32 %v3780, 0.0
      %v4066 = vmax.f32 %v2723, 0.0
      %v4067 = vmax.f32 %v2725, 0.0
      %v4068 = vmax.f32 %v3782, 0.0
      %v4069 = vmax.f32 %v3784, 0.0
      %v4070 = vmax.f32 %v2729, 0.0
      %v4071 = vmax.f32 %v2731, 0.0
      %v4072 = vmax.f32 %v3788, 0.0
      %v4073 = vmax.f32 %v3790, 0.0
      %v4074 = vmax.f32 %v2733, 0.0
      %v4075 = vmax.f32 %v2735, 0.0
      %v4076 = vmax.f32 %v3792, 0.0
      %v4077 = vmax.f32 %v3794, 0.0
      %v4078 = vmax.f32 %v2739, 0.0
      %v4079 = vmax.f32 %v2741, 0.0
      %v4080 = vmax.f32 %v3798, 0.0
      %v4081 = vmax.f32 %v3800, 0.0
      %v4082 = vmax.f32 %v2743, 0.0
      %v4083 = vmax.f32 %v2745, 0.0
      %v4084 = vmax.f32 %v3802, 0.0
      %v4085 = vmax.f32 %v3804, 0.0
      %v4086 = vmax.f32 %v2749, 0.0
      %v4087 = vmax.f32 %v2751, 0.0
      %v4088 = vmax.f32 %v3808, 0.0
      %v4089 = vmax.f32 %v3810, 0.0
      %v4090 = vmax.f32 %v2753, 0.0
      %v4091 = vmax.f32 %v2755, 0.0
      %v4092 = vmax.f32 %v3812, 0.0
      %v4093 = vmax.f32 %v3814, 0.0
      %v4094 = vmax.f32 %v2759, 0.0
      %v4095 = vmax.f32 %v2761, 0.0
      %v4096 = vmax.f32 %v3818, 0.0
      %v4097 = vmax.f32 %v3820, 0.0
      %v4098 = vmax.f32 %v2763, 0.0
      %v4099 = vmax.f32 %v2765, 0.0
      %v4100 = vmax.f32 %v3822, 0.0
      %v4101 = vmax.f32 %v3824, 0.0
      %v4102 = vmax.f32 %v2769, 0.0
      %v4103 = vmax.f32 %v2771, 0.0
      %v4104 = vmax.f32 %v3828, 0.0
      %v4105 = vmax.f32 %v3830, 0.0
      %v4106 = vmax.f32 %v2773, 0.0
      %v4107 = vmax.f32 %v2775, 0.0
      %v4108 = vmax.f32 %v3832, 0.0
      %v4109 = vmax.f32 %v3834, 0.0
      %v4110 = vmax.f32 %v2779, 0.0
      %v4111 = vmax.f32 %v2781, 0.0
      %v4112 = vmax.f32 %v3838, 0.0
      %v4113 = vmax.f32 %v3840, 0.0
      %v4114 = vmax.f32 %v2783, 0.0
      %v4115 = vmax.f32 %v2785, 0.0
      %v4116 = vmax.f32 %v3842, 0.0
      %v4117 = vmax.f32 %v3844, 0.0
      %v4118 = vmax.f32 %v2789, 0.0
      %v4119 = vmax.f32 %v2791, 0.0
      %v4120 = vmax.f32 %v3848, 0.0
      %v4121 = vmax.f32 %v3850, 0.0
      %v4122 = vmax.f32 %v2793, 0.0
      %v4123 = vmax.f32 %v2795, 0.0
      %v4124 = vmax.f32 %v3852, 0.0
      %v4125 = vmax.f32 %v3854, 0.0
      %v4126 = vmax.f32 %v2799, 0.0
      %v4127 = vmax.f32 %v2801, 0.0
      %v4128 = vmax.f32 %v3858, 0.0
      %v4129 = vmax.f32 %v3860, 0.0
      %v4130 = vmax.f32 %v2803, 0.0
      %v4131 = vmax.f32 %v2805, 0.0
      %v4132 = vmax.f32 %v3862, 0.0
      %v4133 = vmax.f32 %v3864, 0.0
      %v4134 = vmax.f32 %v2809, 0.0
      %v4135 = vmax.f32 %v2811, 0.0
      %v4136 = vmax.f32 %v3868, 0.0
      %v4137 = vmax.f32 %v3870, 0.0
      %v4138 = vmax.f32 %v2813, 0.0
      %v4139 = vmax.f32 %v2815, 0.0
      %v4140 = vmax.f32 %v3872, 0.0
      %v4141 = vmax.f32 %v3874, 0.0
      %v4142 = vmax.f32 %v2819, 0.0
      %v4143 = vmax.f32 %v2821, 0.0
      %v4144 = vmax.f32 %v3878, 0.0
      %v4145 = vmax.f32 %v3880, 0.0
      %v4146 = vmax.f32 %v2823, 0.0
      %v4147 = vmax.f32 %v2825, 0.0
      %v4148 = vmax.f32 %v3882, 0.0
      %v4149 = vmax.f32 %v3884, 0.0
      %v4150 = vmax.f32 %v2829, 0.0
      %v4151 = vmax.f32 %v2831, 0.0
      %v4152 = vmax.f32 %v3888, 0.0
      %v4153 = vmax.f32 %v3890, 0.0
      %v4154 = vmax.f32 %v2833, 0.0
      %v4155 = vmax.f32 %v2835, 0.0
      %v4156 = vmax.f32 %v3892, 0.0
      %v4157 = vmax.f32 %v3894, 0.0
      %v4158 = vmax.f32 %v2839, 0.0
      %v4159 = vmax.f32 %v2841, 0.0
      %v4160 = vmax.f32 %v3898, 0.0
      %v4161 = vmax.f32 %v3900, 0.0
      %v4162 = vmax.f32 %v2843, 0.0
      %v4163 = vmax.f32 %v2845, 0.0
      %v4164 = vmax.f32 %v3902, 0.0
      %v4165 = vmax.f32 %v3904, 0.0
      %v4166 = vmax.f32 %v2849, 0.0
      %v4167 = vmax.f32 %v2851, 0.0
      %v4168 = vmax.f32 %v3908, 0.0
      %v4169 = vmax.f32 %v3910, 0.0
      %v4170 = vmax.f32 %v2853, 0.0
      %v4171 = vmax.f32 %v2855, 0.0
      %v4172 = vmax.f32 %v3912, 0.0
      %v4173 = vmax.f32 %v3914, 0.0
      %v4174 = vmax.f32 %v2859, 0.0
      %v4175 = vmax.f32 %v2861, 0.0
      %v4176 = vmax.f32 %v3918, 0.0
      %v4177 = vmax.f32 %v3920, 0.0
      %v4178 = vmax.f32 %v2863, 0.0
      %v4179 = vmax.f32 %v2865, 0.0
      %v4180 = vmax.f32 %v3922, 0.0
      %v4181 = vmax.f32 %v3924, 0.0
      %v4182 = vpack.c.bf16 %v3930, %v3926
      %v4183 = vpack.c.bf16 %v3931, %v3927
      %v4184 = vpack.c.bf16 %v3932, %v3928
      %v4185 = vpack.c.bf16 %v3933, %v3929
      %v4186 = vpack.c.bf16 %v3938, %v3934
      %v4187 = vpack.c.bf16 %v3939, %v3935
      %v4188 = vpack.c.bf16 %v3940, %v3936
      %v4189 = vpack.c.bf16 %v3941, %v3937
      %v4190 = vpack.c.bf16 %v3946, %v3942
      %v4191 = vpack.c.bf16 %v3947, %v3943
      %v4192 = vpack.c.bf16 %v3948, %v3944
      %v4193 = vpack.c.bf16 %v3949, %v3945
      %v4194 = vpack.c.bf16 %v3954, %v3950
      %v4195 = vpack.c.bf16 %v3955, %v3951
      %v4196 = vpack.c.bf16 %v3956, %v3952
      %v4197 = vpack.c.bf16 %v3957, %v3953
      %v4198 = vpack.c.bf16 %v3962, %v3958
      %v4199 = vpack.c.bf16 %v3963, %v3959
      %v4200 = vpack.c.bf16 %v3964, %v3960
      %v4201 = vpack.c.bf16 %v3965, %v3961
      %v4202 = vpack.c.bf16 %v3970, %v3966
      %v4203 = vpack.c.bf16 %v3971, %v3967
      %v4204 = vpack.c.bf16 %v3972, %v3968
      %v4205 = vpack.c.bf16 %v3973, %v3969
      %v4206 = vpack.c.bf16 %v3978, %v3974
      %v4207 = vpack.c.bf16 %v3979, %v3975
      %v4208 = vpack.c.bf16 %v3980, %v3976
      %v4209 = vpack.c.bf16 %v3981, %v3977
      %v4210 = vpack.c.bf16 %v3986, %v3982
      %v4211 = vpack.c.bf16 %v3987, %v3983
      %v4212 = vpack.c.bf16 %v3988, %v3984
      %v4213 = vpack.c.bf16 %v3989, %v3985
      %v4214 = vpack.c.bf16 %v3994, %v3990
      %v4215 = vpack.c.bf16 %v3995, %v3991
      %v4216 = vpack.c.bf16 %v3996, %v3992
      %v4217 = vpack.c.bf16 %v3997, %v3993
      %v4218 = vpack.c.bf16 %v4002, %v3998
      %v4219 = vpack.c.bf16 %v4003, %v3999
      %v4220 = vpack.c.bf16 %v4004, %v4000
      %v4221 = vpack.c.bf16 %v4005, %v4001
      %v4222 = vpack.c.bf16 %v4010, %v4006
      %v4223 = vpack.c.bf16 %v4011, %v4007
      %v4224 = vpack.c.bf16 %v4012, %v4008
      %v4225 = vpack.c.bf16 %v4013, %v4009
      %v4226 = vpack.c.bf16 %v4018, %v4014
      %v4227 = vpack.c.bf16 %v4019, %v4015
      %v4228 = vpack.c.bf16 %v4020, %v4016
      %v4229 = vpack.c.bf16 %v4021, %v4017
      %v4230 = vpack.c.bf16 %v4026, %v4022
      %v4231 = vpack.c.bf16 %v4027, %v4023
      %v4232 = vpack.c.bf16 %v4028, %v4024
      %v4233 = vpack.c.bf16 %v4029, %v4025
      %v4234 = vpack.c.bf16 %v4034, %v4030
      %v4235 = vpack.c.bf16 %v4035, %v4031
      %v4236 = vpack.c.bf16 %v4036, %v4032
      %v4237 = vpack.c.bf16 %v4037, %v4033
      %v4238 = vpack.c.bf16 %v4042, %v4038
      %v4239 = vpack.c.bf16 %v4043, %v4039
      %v4240 = vpack.c.bf16 %v4044, %v4040
      %v4241 = vpack.c.bf16 %v4045, %v4041
      %v4242 = vpack.c.bf16 %v4050, %v4046
      %v4243 = vpack.c.bf16 %v4051, %v4047
      %v4244 = vpack.c.bf16 %v4052, %v4048
      %v4245 = vpack.c.bf16 %v4053, %v4049
      %v4246 = vpack.c.bf16 %v4058, %v4054
      %v4247 = vpack.c.bf16 %v4059, %v4055
      %v4248 = vpack.c.bf16 %v4060, %v4056
      %v4249 = vpack.c.bf16 %v4061, %v4057
      %v4250 = vpack.c.bf16 %v4066, %v4062
      %v4251 = vpack.c.bf16 %v4067, %v4063
      %v4252 = vpack.c.bf16 %v4068, %v4064
      %v4253 = vpack.c.bf16 %v4069, %v4065
      %v4254 = vpack.c.bf16 %v4074, %v4070
      %v4255 = vpack.c.bf16 %v4075, %v4071
      %v4256 = vpack.c.bf16 %v4076, %v4072
      %v4257 = vpack.c.bf16 %v4077, %v4073
      %v4258 = vpack.c.bf16 %v4082, %v4078
      %v4259 = vpack.c.bf16 %v4083, %v4079
      %v4260 = vpack.c.bf16 %v4084, %v4080
      %v4261 = vpack.c.bf16 %v4085, %v4081
      %v4262 = vpack.c.bf16 %v4090, %v4086
      %v4263 = vpack.c.bf16 %v4091, %v4087
      %v4264 = vpack.c.bf16 %v4092, %v4088
      %v4265 = vpack.c.bf16 %v4093, %v4089
      %v4266 = vpack.c.bf16 %v4098, %v4094
      %v4267 = vpack.c.bf16 %v4099, %v4095
      %v4268 = vpack.c.bf16 %v4100, %v4096
      %v4269 = vpack.c.bf16 %v4101, %v4097
      %v4270 = vpack.c.bf16 %v4106, %v4102
      %v4271 = vpack.c.bf16 %v4107, %v4103
      %v4272 = vpack.c.bf16 %v4108, %v4104
      %v4273 = vpack.c.bf16 %v4109, %v4105
      %v4274 = vpack.c.bf16 %v4114, %v4110
      %v4275 = vpack.c.bf16 %v4115, %v4111
      %v4276 = vpack.c.bf16 %v4116, %v4112
      %v4277 = vpack.c.bf16 %v4117, %v4113
      %v4278 = vpack.c.bf16 %v4122, %v4118
      %v4279 = vpack.c.bf16 %v4123, %v4119
      %v4280 = vpack.c.bf16 %v4124, %v4120
      %v4281 = vpack.c.bf16 %v4125, %v4121
      %v4282 = vpack.c.bf16 %v4130, %v4126
      %v4283 = vpack.c.bf16 %v4131, %v4127
      %v4284 = vpack.c.bf16 %v4132, %v4128
      %v4285 = vpack.c.bf16 %v4133, %v4129
      %v4286 = vpack.c.bf16 %v4138, %v4134
      %v4287 = vpack.c.bf16 %v4139, %v4135
      %v4288 = vpack.c.bf16 %v4140, %v4136
      %v4289 = vpack.c.bf16 %v4141, %v4137
      %v4290 = vpack.c.bf16 %v4146, %v4142
      %v4291 = vpack.c.bf16 %v4147, %v4143
      %v4292 = vpack.c.bf16 %v4148, %v4144
      %v4293 = vpack.c.bf16 %v4149, %v4145
      %v4294 = vpack.c.bf16 %v4154, %v4150
      %v4295 = vpack.c.bf16 %v4155, %v4151
      %v4296 = vpack.c.bf16 %v4156, %v4152
      %v4297 = vpack.c.bf16 %v4157, %v4153
      %v4298 = vpack.c.bf16 %v4162, %v4158
      %v4299 = vpack.c.bf16 %v4163, %v4159
      %v4300 = vpack.c.bf16 %v4164, %v4160
      %v4301 = vpack.c.bf16 %v4165, %v4161
      %v4302 = vpack.c.bf16 %v4170, %v4166
      %v4303 = vpack.c.bf16 %v4171, %v4167
      %v4304 = vpack.c.bf16 %v4172, %v4168
      %v4305 = vpack.c.bf16 %v4173, %v4169
      %v4306 = vpack.c.bf16 %v4178, %v4174
      %v4307 = vpack.c.bf16 %v4179, %v4175
      %v4308 = vpack.c.bf16 %v4180, %v4176
      %v4309 = vpack.c.bf16 %v4181, %v4177
      %v4310 = vld [vmem:[%s3] sm:$0xff]
      %v4311 = vld [vmem:[%s3 + $0x8] sm:$0xff]
      %v4312 = vld [vmem:[%s3 + $0x10] sm:$0xff]
      %v4313 = vld [vmem:[%s3 + $0x18] sm:$0xff]
      %v4314 = vld [vmem:[%s3 + $0x20] sm:$0xff]
      %v4315 = vld [vmem:[%s3 + $0x28] sm:$0xff]
      %v4316 = vld [vmem:[%s3 + $0x30] sm:$0xff]
      %v4317 = vld [vmem:[%s3 + $0x38] sm:$0xff]
      %v4318 = vld [vmem:[%s3 + $0x40] sm:$0xff]
      %v4319 = vld [vmem:[%s3 + $0x48] sm:$0xff]
      %v4320 = vld [vmem:[%s3 + $0x50] sm:$0xff]
      %v4321 = vld [vmem:[%s3 + $0x58] sm:$0xff]
      %v4322 = vld [vmem:[%s3 + $0x60] sm:$0xff]
      %v4323 = vld [vmem:[%s3 + $0x68] sm:$0xff]
      %v4324 = vld [vmem:[%s3 + $0x70] sm:$0xff]
      %v4325 = vld [vmem:[%s3 + $0x78] sm:$0xff]
      %v4326 = vld [vmem:[%s3 + $0x80] sm:$0xff]
      %v4327 = vld [vmem:[%s3 + $0x88] sm:$0xff]
      %v4328 = vld [vmem:[%s3 + $0x90] sm:$0xff]
      %v4329 = vld [vmem:[%s3 + $0x98] sm:$0xff]
      %v4330 = vld [vmem:[%s3 + $0xa0] sm:$0xff]
      %v4331 = vld [vmem:[%s3 + $0xa8] sm:$0xff]
      %v4332 = vld [vmem:[%s3 + $0xb0] sm:$0xff]
      %v4333 = vld [vmem:[%s3 + $0xb8] sm:$0xff]
      %v4334 = vld [vmem:[%s3 + $0xc0] sm:$0xff]
      %v4335 = vld [vmem:[%s3 + $0xc8] sm:$0xff]
      %v4336 = vld [vmem:[%s3 + $0xd0] sm:$0xff]
      %v4337 = vld [vmem:[%s3 + $0xd8] sm:$0xff]
      %v4338 = vld [vmem:[%s3 + $0xe0] sm:$0xff]
      %v4339 = vld [vmem:[%s3 + $0xe8] sm:$0xff]
      %v4340 = vld [vmem:[%s3 + $0xf0] sm:$0xff]
      %v4341 = vld [vmem:[%s3 + $0xf8] sm:$0xff]
      %v4342 = vld [vmem:[%s3 + $0x100] sm:$0xff]
      %v4343 = vld [vmem:[%s3 + $0x108] sm:$0xff]
      %v4344 = vld [vmem:[%s3 + $0x110] sm:$0xff]
      %v4345 = vld [vmem:[%s3 + $0x118] sm:$0xff]
      %v4346 = vld [vmem:[%s3 + $0x120] sm:$0xff]
      %v4347 = vld [vmem:[%s3 + $0x128] sm:$0xff]
      %v4348 = vld [vmem:[%s3 + $0x130] sm:$0xff]
      %v4349 = vld [vmem:[%s3 + $0x138] sm:$0xff]
      %v4350 = vld [vmem:[%s3 + $0x140] sm:$0xff]
      %v4351 = vld [vmem:[%s3 + $0x148] sm:$0xff]
      %v4352 = vld [vmem:[%s3 + $0x150] sm:$0xff]
      %v4353 = vld [vmem:[%s3 + $0x158] sm:$0xff]
      %v4354 = vld [vmem:[%s3 + $0x160] sm:$0xff]
      %v4355 = vld [vmem:[%s3 + $0x168] sm:$0xff]
      %v4356 = vld [vmem:[%s3 + $0x170] sm:$0xff]
      %v4357 = vld [vmem:[%s3 + $0x178] sm:$0xff]
      %v4358 = vld [vmem:[%s3 + $0x180] sm:$0xff]
      %v4359 = vld [vmem:[%s3 + $0x188] sm:$0xff]
      %v4360 = vld [vmem:[%s3 + $0x190] sm:$0xff]
      %v4361 = vld [vmem:[%s3 + $0x198] sm:$0xff]
      %v4362 = vld [vmem:[%s3 + $0x1a0] sm:$0xff]
      %v4363 = vld [vmem:[%s3 + $0x1a8] sm:$0xff]
      %v4364 = vld [vmem:[%s3 + $0x1b0] sm:$0xff]
      %v4365 = vld [vmem:[%s3 + $0x1b8] sm:$0xff]
      %v4366 = vld [vmem:[%s3 + $0x1c0] sm:$0xff]
      %v4367 = vld [vmem:[%s3 + $0x1c8] sm:$0xff]
      %v4368 = vld [vmem:[%s3 + $0x1d0] sm:$0xff]
      %v4369 = vld [vmem:[%s3 + $0x1d8] sm:$0xff]
      %v4370 = vld [vmem:[%s3 + $0x1e0] sm:$0xff]
      %v4371 = vld [vmem:[%s3 + $0x1e8] sm:$0xff]
      %v4372 = vld [vmem:[%s3 + $0x1f0] sm:$0xff]
      %v4373 = vld [vmem:[%s3 + $0x1f8] sm:$0xff]
      %v4374 = vld [vmem:[%s4] sm:$0x3]
      %v4376 = vlaneseq
      %v4377 = vshrl.u32 %v4376, 7
      %v4378 = vsub.s32 0, %v4377
      %v4379 = vrot.slane %v4374, %v4378
      %v4380 = vlaneseq
      %v4381 = vshrl.u32 %v4380, 7
      %v4382 = vsub.s32 1, %v4381
      %v4383 = vrot.slane %v4374, %v4382
      %v4450 = vunpack.c.l.b16 %v4310
      %v4451 = vunpack.c.h.b16 %v4310
      %v4452 = vunpack.c.l.b16 %v4311
      %v4453 = vunpack.c.h.b16 %v4311
      %v4454 = vunpack.c.l.b16 %v4312
      %v4455 = vunpack.c.h.b16 %v4312
      %v4456 = vunpack.c.l.b16 %v4313
      %v4457 = vunpack.c.h.b16 %v4313
      %v4458 = vunpack.c.l.b16 %v4314
      %v4459 = vunpack.c.h.b16 %v4314
      %v4460 = vunpack.c.l.b16 %v4315
      %v4461 = vunpack.c.h.b16 %v4315
      %v4462 = vunpack.c.l.b16 %v4316
      %v4463 = vunpack.c.h.b16 %v4316
      %v4464 = vunpack.c.l.b16 %v4317
      %v4465 = vunpack.c.h.b16 %v4317
      %v4466 = vunpack.c.l.b16 %v4318
      %v4467 = vunpack.c.h.b16 %v4318
      %v4468 = vunpack.c.l.b16 %v4319
      %v4469 = vunpack.c.h.b16 %v4319
      %v4470 = vunpack.c.l.b16 %v4320
      %v4471 = vunpack.c.h.b16 %v4320
      %v4472 = vunpack.c.l.b16 %v4321
      %v4473 = vunpack.c.h.b16 %v4321
      %v4474 = vunpack.c.l.b16 %v4322
      %v4475 = vunpack.c.h.b16 %v4322
      %v4476 = vunpack.c.l.b16 %v4323
      %v4477 = vunpack.c.h.b16 %v4323
      %v4478 = vunpack.c.l.b16 %v4324
      %v4479 = vunpack.c.h.b16 %v4324
      %v4480 = vunpack.c.l.b16 %v4325
      %v4481 = vunpack.c.h.b16 %v4325
      %v4482 = vunpack.c.l.b16 %v4326
      %v4483 = vunpack.c.h.b16 %v4326
      %v4484 = vunpack.c.l.b16 %v4327
      %v4485 = vunpack.c.h.b16 %v4327
      %v4486 = vunpack.c.l.b16 %v4328
      %v4487 = vunpack.c.h.b16 %v4328
      %v4488 = vunpack.c.l.b16 %v4329
      %v4489 = vunpack.c.h.b16 %v4329
      %v4490 = vunpack.c.l.b16 %v4330
      %v4491 = vunpack.c.h.b16 %v4330
      %v4492 = vunpack.c.l.b16 %v4331
      %v4493 = vunpack.c.h.b16 %v4331
      %v4494 = vunpack.c.l.b16 %v4332
      %v4495 = vunpack.c.h.b16 %v4332
      %v4496 = vunpack.c.l.b16 %v4333
      %v4497 = vunpack.c.h.b16 %v4333
      %v4498 = vunpack.c.l.b16 %v4334
      %v4499 = vunpack.c.h.b16 %v4334
      %v4500 = vunpack.c.l.b16 %v4335
      %v4501 = vunpack.c.h.b16 %v4335
      %v4502 = vunpack.c.l.b16 %v4336
      %v4503 = vunpack.c.h.b16 %v4336
      %v4504 = vunpack.c.l.b16 %v4337
      %v4505 = vunpack.c.h.b16 %v4337
      %v4506 = vunpack.c.l.b16 %v4338
      %v4507 = vunpack.c.h.b16 %v4338
      %v4508 = vunpack.c.l.b16 %v4339
      %v4509 = vunpack.c.h.b16 %v4339
      %v4510 = vunpack.c.l.b16 %v4340
      %v4511 = vunpack.c.h.b16 %v4340
      %v4512 = vunpack.c.l.b16 %v4341
      %v4513 = vunpack.c.h.b16 %v4341
      %v4514 = vunpack.c.l.b16 %v4342
      %v4515 = vunpack.c.h.b16 %v4342
      %v4516 = vunpack.c.l.b16 %v4343
      %v4517 = vunpack.c.h.b16 %v4343
      %v4518 = vunpack.c.l.b16 %v4344
      %v4519 = vunpack.c.h.b16 %v4344
      %v4520 = vunpack.c.l.b16 %v4345
      %v4521 = vunpack.c.h.b16 %v4345
      %v4522 = vunpack.c.l.b16 %v4346
      %v4523 = vunpack.c.h.b16 %v4346
      %v4524 = vunpack.c.l.b16 %v4347
      %v4525 = vunpack.c.h.b16 %v4347
      %v4526 = vunpack.c.l.b16 %v4348
      %v4527 = vunpack.c.h.b16 %v4348
      %v4528 = vunpack.c.l.b16 %v4349
      %v4529 = vunpack.c.h.b16 %v4349
      %v4530 = vunpack.c.l.b16 %v4350
      %v4531 = vunpack.c.h.b16 %v4350
      %v4532 = vunpack.c.l.b16 %v4351
      %v4533 = vunpack.c.h.b16 %v4351
      %v4534 = vunpack.c.l.b16 %v4352
      %v4535 = vunpack.c.h.b16 %v4352
      %v4536 = vunpack.c.l.b16 %v4353
      %v4537 = vunpack.c.h.b16 %v4353
      %v4538 = vunpack.c.l.b16 %v4354
      %v4539 = vunpack.c.h.b16 %v4354
      %v4540 = vunpack.c.l.b16 %v4355
      %v4541 = vunpack.c.h.b16 %v4355
      %v4542 = vunpack.c.l.b16 %v4356
      %v4543 = vunpack.c.h.b16 %v4356
      %v4544 = vunpack.c.l.b16 %v4357
      %v4545 = vunpack.c.h.b16 %v4357
      %v4546 = vunpack.c.l.b16 %v4358
      %v4547 = vunpack.c.h.b16 %v4358
      %v4548 = vunpack.c.l.b16 %v4359
      %v4549 = vunpack.c.h.b16 %v4359
      %v4550 = vunpack.c.l.b16 %v4360
      %v4551 = vunpack.c.h.b16 %v4360
      %v4552 = vunpack.c.l.b16 %v4361
      %v4553 = vunpack.c.h.b16 %v4361
      %v4554 = vunpack.c.l.b16 %v4362
      %v4555 = vunpack.c.h.b16 %v4362
      %v4556 = vunpack.c.l.b16 %v4363
      %v4557 = vunpack.c.h.b16 %v4363
      %v4558 = vunpack.c.l.b16 %v4364
      %v4559 = vunpack.c.h.b16 %v4364
      %v4560 = vunpack.c.l.b16 %v4365
      %v4561 = vunpack.c.h.b16 %v4365
      %v4562 = vunpack.c.l.b16 %v4366
      %v4563 = vunpack.c.h.b16 %v4366
      %v4564 = vunpack.c.l.b16 %v4367
      %v4565 = vunpack.c.h.b16 %v4367
      %v4566 = vunpack.c.l.b16 %v4368
      %v4567 = vunpack.c.h.b16 %v4368
      %v4568 = vunpack.c.l.b16 %v4369
      %v4569 = vunpack.c.h.b16 %v4369
      %v4570 = vunpack.c.l.b16 %v4370
      %v4571 = vunpack.c.h.b16 %v4370
      %v4572 = vunpack.c.l.b16 %v4371
      %v4573 = vunpack.c.h.b16 %v4371
      %v4574 = vunpack.c.l.b16 %v4372
      %v4575 = vunpack.c.h.b16 %v4372
      %v4576 = vunpack.c.l.b16 %v4373
      %v4577 = vunpack.c.h.b16 %v4373
      %v4578 = vpack.c.b16 %v4452, %v4450
      %v4579 = vpack.c.b16 %v4453, %v4451
      %v4580 = vpack.c.b16 %v4456, %v4454
      %v4581 = vpack.c.b16 %v4457, %v4455
      %v4582 = vpack.c.b16 %v4460, %v4458
      %v4583 = vpack.c.b16 %v4461, %v4459
      %v4584 = vpack.c.b16 %v4464, %v4462
      %v4585 = vpack.c.b16 %v4465, %v4463
      %v4586 = vpack.c.b16 %v4468, %v4466
      %v4587 = vpack.c.b16 %v4469, %v4467
      %v4588 = vpack.c.b16 %v4472, %v4470
      %v4589 = vpack.c.b16 %v4473, %v4471
      %v4590 = vpack.c.b16 %v4476, %v4474
      %v4591 = vpack.c.b16 %v4477, %v4475
      %v4592 = vpack.c.b16 %v4480, %v4478
      %v4593 = vpack.c.b16 %v4481, %v4479
      %v4594 = vpack.c.b16 %v4484, %v4482
      %v4595 = vpack.c.b16 %v4485, %v4483
      %v4596 = vpack.c.b16 %v4488, %v4486
      %v4597 = vpack.c.b16 %v4489, %v4487
      %v4598 = vpack.c.b16 %v4492, %v4490
      %v4599 = vpack.c.b16 %v4493, %v4491
      %v4600 = vpack.c.b16 %v4496, %v4494
      %v4601 = vpack.c.b16 %v4497, %v4495
      %v4602 = vpack.c.b16 %v4500, %v4498
      %v4603 = vpack.c.b16 %v4501, %v4499
      %v4604 = vpack.c.b16 %v4504, %v4502
      %v4605 = vpack.c.b16 %v4505, %v4503
      %v4606 = vpack.c.b16 %v4508, %v4506
      %v4607 = vpack.c.b16 %v4509, %v4507
      %v4608 = vpack.c.b16 %v4512, %v4510
      %v4609 = vpack.c.b16 %v4513, %v4511
      %v4610 = vpack.c.b16 %v4516, %v4514
      %v4611 = vpack.c.b16 %v4517, %v4515
      %v4612 = vpack.c.b16 %v4520, %v4518
      %v4613 = vpack.c.b16 %v4521, %v4519
      %v4614 = vpack.c.b16 %v4524, %v4522
      %v4615 = vpack.c.b16 %v4525, %v4523
      %v4616 = vpack.c.b16 %v4528, %v4526
      %v4617 = vpack.c.b16 %v4529, %v4527
      %v4618 = vpack.c.b16 %v4532, %v4530
      %v4619 = vpack.c.b16 %v4533, %v4531
      %v4620 = vpack.c.b16 %v4536, %v4534
      %v4621 = vpack.c.b16 %v4537, %v4535
      %v4622 = vpack.c.b16 %v4540, %v4538
      %v4623 = vpack.c.b16 %v4541, %v4539
      %v4624 = vpack.c.b16 %v4544, %v4542
      %v4625 = vpack.c.b16 %v4545, %v4543
      %v4626 = vpack.c.b16 %v4548, %v4546
      %v4627 = vpack.c.b16 %v4549, %v4547
      %v4628 = vpack.c.b16 %v4552, %v4550
      %v4629 = vpack.c.b16 %v4553, %v4551
      %v4630 = vpack.c.b16 %v4556, %v4554
      %v4631 = vpack.c.b16 %v4557, %v4555
      %v4632 = vpack.c.b16 %v4560, %v4558
      %v4633 = vpack.c.b16 %v4561, %v4559
      %v4634 = vpack.c.b16 %v4564, %v4562
      %v4635 = vpack.c.b16 %v4565, %v4563
      %v4636 = vpack.c.b16 %v4568, %v4566
      %v4637 = vpack.c.b16 %v4569, %v4567
      %v4638 = vpack.c.b16 %v4572, %v4570
      %v4639 = vpack.c.b16 %v4573, %v4571
      %v4640 = vpack.c.b16 %v4576, %v4574
      %v4641 = vpack.c.b16 %v4577, %v4575
      %4706 = vmatprep.subr.bf16.mxu0 %v4593
      %4707 = vmatpush1.bf16.msra.mxu0 %v4592
      %4708 = vmatprep.subr.bf16.mxu0 %v4591
      %4709 = vmatpush1.bf16.msra.mxu0 %v4590
      %4710 = vmatprep.subr.bf16.mxu0 %v4589
      %4711 = vmatpush1.bf16.msra.mxu0 %v4588
      %4712 = vmatprep.subr.bf16.mxu0 %v4587
      %4713 = vmatpush1.bf16.msra.mxu0 %v4586
      %4714 = vmatprep.subr.bf16.mxu0 %v4585
      %4715 = vmatpush1.bf16.msra.mxu0 %v4584
      %4716 = vmatprep.subr.bf16.mxu0 %v4583
      %4717 = vmatpush1.bf16.msra.mxu0 %v4582
      %4718 = vmatprep.subr.bf16.mxu0 %v4581
      %4719 = vmatpush1.bf16.msra.mxu0 %v4580
      %4720 = vmatprep.subr.bf16.mxu0 %v4579
      %4721 = vmatpush1.bf16.msra.mxu0 %v4578
      %4722 = vmatprep.subr.bf16.mxu0 %v4609
      %4723 = vmatpush2.bf16.msra.mxu0 %v4608
      %4724 = vmatprep.subr.bf16.mxu0 %v4607
      %4725 = vmatpush2.bf16.msra.mxu0 %v4606
      %4726 = vmatprep.subr.bf16.mxu0 %v4605
      %4727 = vmatpush2.bf16.msra.mxu0 %v4604
      %4728 = vmatprep.subr.bf16.mxu0 %v4603
      %4729 = vmatpush2.bf16.msra.mxu0 %v4602
      %4730 = vmatprep.subr.bf16.mxu0 %v4601
      %4731 = vmatpush2.bf16.msra.mxu0 %v4600
      %4732 = vmatprep.subr.bf16.mxu0 %v4599
      %4733 = vmatpush2.bf16.msra.mxu0 %v4598
      %4734 = vmatprep.subr.bf16.mxu0 %v4597
      %4735 = vmatpush2.bf16.msra.mxu0 %v4596
      %4736 = vmatprep.subr.bf16.mxu0 %v4595
      %4737 = vmatpush2.bf16.msra.mxu0 %v4594
      %4738 = vmatprep.mubr.bf16.mxu0 %v4183
      %4739 = vmatmul.mubr.bf16.gmra.mxu0 %v4182
      %v4740 = vpop.f32.mrf.mxu0
      %v4741 = vadd.f32 %v4379, %v4740
      %v4742 = vpop.f32.mrf.mxu0
      %v4743 = vadd.f32 %v4383, %v4742
      %v4744 = vpop.f32.mrf.mxu0
      %v4745 = vadd.f32 %v4379, %v4744
      %v4746 = vpop.f32.mrf.mxu0
      %v4747 = vadd.f32 %v4383, %v4746
      %4748 = vmatprep.mubr.bf16.mxu0 %v4187
      %4749 = vmatmul.mubr.bf16.gmra.mxu0 %v4186
      %v4750 = vpop.f32.mrf.mxu0
      %v4751 = vadd.f32 %v4379, %v4750
      %v4752 = vpop.f32.mrf.mxu0
      %v4753 = vadd.f32 %v4383, %v4752
      %v4754 = vpop.f32.mrf.mxu0
      %v4755 = vadd.f32 %v4379, %v4754
      %v4756 = vpop.f32.mrf.mxu0
      %v4757 = vadd.f32 %v4383, %v4756
      %4758 = vmatprep.mubr.bf16.mxu0 %v4191
      %4759 = vmatmul.mubr.bf16.gmra.mxu0 %v4190
      %v4760 = vpop.f32.mrf.mxu0
      %v4761 = vadd.f32 %v4379, %v4760
      %v4762 = vpop.f32.mrf.mxu0
      %v4763 = vadd.f32 %v4383, %v4762
      %v4764 = vpop.f32.mrf.mxu0
      %v4765 = vadd.f32 %v4379, %v4764
      %v4766 = vpop.f32.mrf.mxu0
      %v4767 = vadd.f32 %v4383, %v4766
      %4768 = vmatprep.mubr.bf16.mxu0 %v4195
      %4769 = vmatmul.mubr.bf16.gmra.mxu0 %v4194
      %v4770 = vpop.f32.mrf.mxu0
      %v4771 = vadd.f32 %v4379, %v4770
      %v4772 = vpop.f32.mrf.mxu0
      %v4773 = vadd.f32 %v4383, %v4772
      %v4774 = vpop.f32.mrf.mxu0
      %v4775 = vadd.f32 %v4379, %v4774
      %v4776 = vpop.f32.mrf.mxu0
      %v4777 = vadd.f32 %v4383, %v4776
      %4778 = vmatprep.mubr.bf16.mxu0 %v4199
      %4779 = vmatmul.mubr.bf16.gmra.mxu0 %v4198
      %v4780 = vpop.f32.mrf.mxu0
      %v4781 = vadd.f32 %v4379, %v4780
      %v4782 = vpop.f32.mrf.mxu0
      %v4783 = vadd.f32 %v4383, %v4782
      %v4784 = vpop.f32.mrf.mxu0
      %v4785 = vadd.f32 %v4379, %v4784
      %v4786 = vpop.f32.mrf.mxu0
      %v4787 = vadd.f32 %v4383, %v4786
      %4788 = vmatprep.mubr.bf16.mxu0 %v4203
      %4789 = vmatmul.mubr.bf16.gmra.mxu0 %v4202
      %v4790 = vpop.f32.mrf.mxu0
      %v4791 = vadd.f32 %v4379, %v4790
      %v4792 = vpop.f32.mrf.mxu0
      %v4793 = vadd.f32 %v4383, %v4792
      %v4794 = vpop.f32.mrf.mxu0
      %v4795 = vadd.f32 %v4379, %v4794
      %v4796 = vpop.f32.mrf.mxu0
      %v4797 = vadd.f32 %v4383, %v4796
      %4798 = vmatprep.mubr.bf16.mxu0 %v4207
      %4799 = vmatmul.mubr.bf16.gmra.mxu0 %v4206
      %v4800 = vpop.f32.mrf.mxu0
      %v4801 = vadd.f32 %v4379, %v4800
      %v4802 = vpop.f32.mrf.mxu0
      %v4803 = vadd.f32 %v4383, %v4802
      %v4804 = vpop.f32.mrf.mxu0
      %v4805 = vadd.f32 %v4379, %v4804
      %v4806 = vpop.f32.mrf.mxu0
      %v4807 = vadd.f32 %v4383, %v4806
      %4808 = vmatprep.mubr.bf16.mxu0 %v4211
      %4809 = vmatmul.mubr.bf16.gmra.mxu0 %v4210
      %v4810 = vpop.f32.mrf.mxu0
      %v4811 = vadd.f32 %v4379, %v4810
      %v4812 = vpop.f32.mrf.mxu0
      %v4813 = vadd.f32 %v4383, %v4812
      %v4814 = vpop.f32.mrf.mxu0
      %v4815 = vadd.f32 %v4379, %v4814
      %v4816 = vpop.f32.mrf.mxu0
      %v4817 = vadd.f32 %v4383, %v4816
      %4818 = vmatprep.mubr.bf16.mxu0 %v4215
      %4819 = vmatmul.mubr.bf16.gmra.mxu0 %v4214
      %v4820 = vpop.f32.mrf.mxu0
      %v4821 = vadd.f32 %v4379, %v4820
      %v4822 = vpop.f32.mrf.mxu0
      %v4823 = vadd.f32 %v4383, %v4822
      %v4824 = vpop.f32.mrf.mxu0
      %v4825 = vadd.f32 %v4379, %v4824
      %v4826 = vpop.f32.mrf.mxu0
      %v4827 = vadd.f32 %v4383, %v4826
      %4828 = vmatprep.mubr.bf16.mxu0 %v4219
      %4829 = vmatmul.mubr.bf16.gmra.mxu0 %v4218
      %v4830 = vpop.f32.mrf.mxu0
      %v4831 = vadd.f32 %v4379, %v4830
      %v4832 = vpop.f32.mrf.mxu0
      %v4833 = vadd.f32 %v4383, %v4832
      %v4834 = vpop.f32.mrf.mxu0
      %v4835 = vadd.f32 %v4379, %v4834
      %v4836 = vpop.f32.mrf.mxu0
      %v4837 = vadd.f32 %v4383, %v4836
      %4838 = vmatprep.mubr.bf16.mxu0 %v4223
      %4839 = vmatmul.mubr.bf16.gmra.mxu0 %v4222
      %v4840 = vpop.f32.mrf.mxu0
      %v4841 = vadd.f32 %v4379, %v4840
      %v4842 = vpop.f32.mrf.mxu0
      %v4843 = vadd.f32 %v4383, %v4842
      %v4844 = vpop.f32.mrf.mxu0
      %v4845 = vadd.f32 %v4379, %v4844
      %v4846 = vpop.f32.mrf.mxu0
      %v4847 = vadd.f32 %v4383, %v4846
      %4848 = vmatprep.mubr.bf16.mxu0 %v4227
      %4849 = vmatmul.mubr.bf16.gmra.mxu0 %v4226
      %v4850 = vpop.f32.mrf.mxu0
      %v4851 = vadd.f32 %v4379, %v4850
      %v4852 = vpop.f32.mrf.mxu0
      %v4853 = vadd.f32 %v4383, %v4852
      %v4854 = vpop.f32.mrf.mxu0
      %v4855 = vadd.f32 %v4379, %v4854
      %v4856 = vpop.f32.mrf.mxu0
      %v4857 = vadd.f32 %v4383, %v4856
      %4858 = vmatprep.mubr.bf16.mxu0 %v4231
      %4859 = vmatmul.mubr.bf16.gmra.mxu0 %v4230
      %v4860 = vpop.f32.mrf.mxu0
      %v4861 = vadd.f32 %v4379, %v4860
      %v4862 = vpop.f32.mrf.mxu0
      %v4863 = vadd.f32 %v4383, %v4862
      %v4864 = vpop.f32.mrf.mxu0
      %v4865 = vadd.f32 %v4379, %v4864
      %v4866 = vpop.f32.mrf.mxu0
      %v4867 = vadd.f32 %v4383, %v4866
      %4868 = vmatprep.mubr.bf16.mxu0 %v4235
      %4869 = vmatmul.mubr.bf16.gmra.mxu0 %v4234
      %v4870 = vpop.f32.mrf.mxu0
      %v4871 = vadd.f32 %v4379, %v4870
      %v4872 = vpop.f32.mrf.mxu0
      %v4873 = vadd.f32 %v4383, %v4872
      %v4874 = vpop.f32.mrf.mxu0
      %v4875 = vadd.f32 %v4379, %v4874
      %v4876 = vpop.f32.mrf.mxu0
      %v4877 = vadd.f32 %v4383, %v4876
      %4878 = vmatprep.mubr.bf16.mxu0 %v4239
      %4879 = vmatmul.mubr.bf16.gmra.mxu0 %v4238
      %v4880 = vpop.f32.mrf.mxu0
      %v4881 = vadd.f32 %v4379, %v4880
      %v4882 = vpop.f32.mrf.mxu0
      %v4883 = vadd.f32 %v4383, %v4882
      %v4884 = vpop.f32.mrf.mxu0
      %v4885 = vadd.f32 %v4379, %v4884
      %v4886 = vpop.f32.mrf.mxu0
      %v4887 = vadd.f32 %v4383, %v4886
      %4888 = vmatprep.mubr.bf16.mxu0 %v4243
      %4889 = vmatmul.mubr.bf16.gmra.mxu0 %v4242
      %v4890 = vpop.f32.mrf.mxu0
      %v4891 = vadd.f32 %v4379, %v4890
      %v4892 = vpop.f32.mrf.mxu0
      %v4893 = vadd.f32 %v4383, %v4892
      %v4894 = vpop.f32.mrf.mxu0
      %v4895 = vadd.f32 %v4379, %v4894
      %v4896 = vpop.f32.mrf.mxu0
      %v4897 = vadd.f32 %v4383, %v4896
      %4898 = vmatprep.mubr.bf16.mxu0 %v4247
      %4899 = vmatmul.mubr.bf16.gmra.mxu0 %v4246
      %v4900 = vpop.f32.mrf.mxu0
      %v4901 = vadd.f32 %v4379, %v4900
      %v4902 = vpop.f32.mrf.mxu0
      %v4903 = vadd.f32 %v4383, %v4902
      %v4904 = vpop.f32.mrf.mxu0
      %v4905 = vadd.f32 %v4379, %v4904
      %v4906 = vpop.f32.mrf.mxu0
      %v4907 = vadd.f32 %v4383, %v4906
      %4908 = vmatprep.mubr.bf16.mxu0 %v4251
      %4909 = vmatmul.mubr.bf16.gmra.mxu0 %v4250
      %v4910 = vpop.f32.mrf.mxu0
      %v4911 = vadd.f32 %v4379, %v4910
      %v4912 = vpop.f32.mrf.mxu0
      %v4913 = vadd.f32 %v4383, %v4912
      %v4914 = vpop.f32.mrf.mxu0
      %v4915 = vadd.f32 %v4379, %v4914
      %v4916 = vpop.f32.mrf.mxu0
      %v4917 = vadd.f32 %v4383, %v4916
      %4918 = vmatprep.mubr.bf16.mxu0 %v4255
      %4919 = vmatmul.mubr.bf16.gmra.mxu0 %v4254
      %v4920 = vpop.f32.mrf.mxu0
      %v4921 = vadd.f32 %v4379, %v4920
      %v4922 = vpop.f32.mrf.mxu0
      %v4923 = vadd.f32 %v4383, %v4922
      %v4924 = vpop.f32.mrf.mxu0
      %v4925 = vadd.f32 %v4379, %v4924
      %v4926 = vpop.f32.mrf.mxu0
      %v4927 = vadd.f32 %v4383, %v4926
      %4928 = vmatprep.mubr.bf16.mxu0 %v4259
      %4929 = vmatmul.mubr.bf16.gmra.mxu0 %v4258
      %v4930 = vpop.f32.mrf.mxu0
      %v4931 = vadd.f32 %v4379, %v4930
      %v4932 = vpop.f32.mrf.mxu0
      %v4933 = vadd.f32 %v4383, %v4932
      %v4934 = vpop.f32.mrf.mxu0
      %v4935 = vadd.f32 %v4379, %v4934
      %v4936 = vpop.f32.mrf.mxu0
      %v4937 = vadd.f32 %v4383, %v4936
      %4938 = vmatprep.mubr.bf16.mxu0 %v4263
      %4939 = vmatmul.mubr.bf16.gmra.mxu0 %v4262
      %v4940 = vpop.f32.mrf.mxu0
      %v4941 = vadd.f32 %v4379, %v4940
      %v4942 = vpop.f32.mrf.mxu0
      %v4943 = vadd.f32 %v4383, %v4942
      %v4944 = vpop.f32.mrf.mxu0
      %v4945 = vadd.f32 %v4379, %v4944
      %v4946 = vpop.f32.mrf.mxu0
      %v4947 = vadd.f32 %v4383, %v4946
      %4948 = vmatprep.mubr.bf16.mxu0 %v4267
      %4949 = vmatmul.mubr.bf16.gmra.mxu0 %v4266
      %v4950 = vpop.f32.mrf.mxu0
      %v4951 = vadd.f32 %v4379, %v4950
      %v4952 = vpop.f32.mrf.mxu0
      %v4953 = vadd.f32 %v4383, %v4952
      %v4954 = vpop.f32.mrf.mxu0
      %v4955 = vadd.f32 %v4379, %v4954
      %v4956 = vpop.f32.mrf.mxu0
      %v4957 = vadd.f32 %v4383, %v4956
      %4958 = vmatprep.mubr.bf16.mxu0 %v4271
      %4959 = vmatmul.mubr.bf16.gmra.mxu0 %v4270
      %v4960 = vpop.f32.mrf.mxu0
      %v4961 = vadd.f32 %v4379, %v4960
      %v4962 = vpop.f32.mrf.mxu0
      %v4963 = vadd.f32 %v4383, %v4962
      %v4964 = vpop.f32.mrf.mxu0
      %v4965 = vadd.f32 %v4379, %v4964
      %v4966 = vpop.f32.mrf.mxu0
      %v4967 = vadd.f32 %v4383, %v4966
      %4968 = vmatprep.mubr.bf16.mxu0 %v4275
      %4969 = vmatmul.mubr.bf16.gmra.mxu0 %v4274
      %v4970 = vpop.f32.mrf.mxu0
      %v4971 = vadd.f32 %v4379, %v4970
      %v4972 = vpop.f32.mrf.mxu0
      %v4973 = vadd.f32 %v4383, %v4972
      %v4974 = vpop.f32.mrf.mxu0
      %v4975 = vadd.f32 %v4379, %v4974
      %v4976 = vpop.f32.mrf.mxu0
      %v4977 = vadd.f32 %v4383, %v4976
      %4978 = vmatprep.mubr.bf16.mxu0 %v4279
      %4979 = vmatmul.mubr.bf16.gmra.mxu0 %v4278
      %v4980 = vpop.f32.mrf.mxu0
      %v4981 = vadd.f32 %v4379, %v4980
      %v4982 = vpop.f32.mrf.mxu0
      %v4983 = vadd.f32 %v4383, %v4982
      %v4984 = vpop.f32.mrf.mxu0
      %v4985 = vadd.f32 %v4379, %v4984
      %v4986 = vpop.f32.mrf.mxu0
      %v4987 = vadd.f32 %v4383, %v4986
      %4988 = vmatprep.mubr.bf16.mxu0 %v4283
      %4989 = vmatmul.mubr.bf16.gmra.mxu0 %v4282
      %v4990 = vpop.f32.mrf.mxu0
      %v4991 = vadd.f32 %v4379, %v4990
      %v4992 = vpop.f32.mrf.mxu0
      %v4993 = vadd.f32 %v4383, %v4992
      %v4994 = vpop.f32.mrf.mxu0
      %v4995 = vadd.f32 %v4379, %v4994
      %v4996 = vpop.f32.mrf.mxu0
      %v4997 = vadd.f32 %v4383, %v4996
      %4998 = vmatprep.mubr.bf16.mxu0 %v4287
      %4999 = vmatmul.mubr.bf16.gmra.mxu0 %v4286
      %v5000 = vpop.f32.mrf.mxu0
      %v5001 = vadd.f32 %v4379, %v5000
      %v5002 = vpop.f32.mrf.mxu0
      %v5003 = vadd.f32 %v4383, %v5002
      %v5004 = vpop.f32.mrf.mxu0
      %v5005 = vadd.f32 %v4379, %v5004
      %v5006 = vpop.f32.mrf.mxu0
      %v5007 = vadd.f32 %v4383, %v5006
      %5008 = vmatprep.mubr.bf16.mxu0 %v4291
      %5009 = vmatmul.mubr.bf16.gmra.mxu0 %v4290
      %v5010 = vpop.f32.mrf.mxu0
      %v5011 = vadd.f32 %v4379, %v5010
      %v5012 = vpop.f32.mrf.mxu0
      %v5013 = vadd.f32 %v4383, %v5012
      %v5014 = vpop.f32.mrf.mxu0
      %v5015 = vadd.f32 %v4379, %v5014
      %v5016 = vpop.f32.mrf.mxu0
      %v5017 = vadd.f32 %v4383, %v5016
      %5018 = vmatprep.mubr.bf16.mxu0 %v4295
      %5019 = vmatmul.mubr.bf16.gmra.mxu0 %v4294
      %v5020 = vpop.f32.mrf.mxu0
      %v5021 = vadd.f32 %v4379, %v5020
      %v5022 = vpop.f32.mrf.mxu0
      %v5023 = vadd.f32 %v4383, %v5022
      %v5024 = vpop.f32.mrf.mxu0
      %v5025 = vadd.f32 %v4379, %v5024
      %v5026 = vpop.f32.mrf.mxu0
      %v5027 = vadd.f32 %v4383, %v5026
      %5028 = vmatprep.mubr.bf16.mxu0 %v4299
      %5029 = vmatmul.mubr.bf16.gmra.mxu0 %v4298
      %v5030 = vpop.f32.mrf.mxu0
      %v5031 = vadd.f32 %v4379, %v5030
      %v5032 = vpop.f32.mrf.mxu0
      %v5033 = vadd.f32 %v4383, %v5032
      %v5034 = vpop.f32.mrf.mxu0
      %v5035 = vadd.f32 %v4379, %v5034
      %v5036 = vpop.f32.mrf.mxu0
      %v5037 = vadd.f32 %v4383, %v5036
      %5038 = vmatprep.mubr.bf16.mxu0 %v4303
      %5039 = vmatmul.mubr.bf16.gmra.mxu0 %v4302
      %v5040 = vpop.f32.mrf.mxu0
      %v5041 = vadd.f32 %v4379, %v5040
      %v5042 = vpop.f32.mrf.mxu0
      %v5043 = vadd.f32 %v4383, %v5042
      %v5044 = vpop.f32.mrf.mxu0
      %v5045 = vadd.f32 %v4379, %v5044
      %v5046 = vpop.f32.mrf.mxu0
      %v5047 = vadd.f32 %v4383, %v5046
      %5048 = vmatprep.mubr.bf16.mxu0 %v4307
      %5049 = vmatmul.mubr.bf16.gmra.mxu0 %v4306
      %v5050 = vpop.f32.mrf.mxu0
      %v5051 = vadd.f32 %v4379, %v5050
      %v5052 = vpop.f32.mrf.mxu0
      %v5053 = vadd.f32 %v4383, %v5052
      %v5054 = vpop.f32.mrf.mxu0
      %v5055 = vadd.f32 %v4379, %v5054
      %v5056 = vpop.f32.mrf.mxu0
      %v5057 = vadd.f32 %v4383, %v5056
      %5058 = vdwg.mxu0
      %5059 = vmatprep.subr.bf16.mxu0 %v4625
      %5060 = vmatpush1.bf16.msra.mxu0 %v4624
      %5061 = vmatprep.subr.bf16.mxu0 %v4623
      %5062 = vmatpush1.bf16.msra.mxu0 %v4622
      %5063 = vmatprep.subr.bf16.mxu0 %v4621
      %5064 = vmatpush1.bf16.msra.mxu0 %v4620
      %5065 = vmatprep.subr.bf16.mxu0 %v4619
      %5066 = vmatpush1.bf16.msra.mxu0 %v4618
      %5067 = vmatprep.subr.bf16.mxu0 %v4617
      %5068 = vmatpush1.bf16.msra.mxu0 %v4616
      %5069 = vmatprep.subr.bf16.mxu0 %v4615
      %5070 = vmatpush1.bf16.msra.mxu0 %v4614
      %5071 = vmatprep.subr.bf16.mxu0 %v4613
      %5072 = vmatpush1.bf16.msra.mxu0 %v4612
      %5073 = vmatprep.subr.bf16.mxu0 %v4611
      %5074 = vmatpush1.bf16.msra.mxu0 %v4610
      %5075 = vmatprep.subr.bf16.mxu0 %v4641
      %5076 = vmatpush2.bf16.msra.mxu0 %v4640
      %5077 = vmatprep.subr.bf16.mxu0 %v4639
      %5078 = vmatpush2.bf16.msra.mxu0 %v4638
      %5079 = vmatprep.subr.bf16.mxu0 %v4637
      %5080 = vmatpush2.bf16.msra.mxu0 %v4636
      %5081 = vmatprep.subr.bf16.mxu0 %v4635
      %5082 = vmatpush2.bf16.msra.mxu0 %v4634
      %5083 = vmatprep.subr.bf16.mxu0 %v4633
      %5084 = vmatpush2.bf16.msra.mxu0 %v4632
      %5085 = vmatprep.subr.bf16.mxu0 %v4631
      %5086 = vmatpush2.bf16.msra.mxu0 %v4630
      %5087 = vmatprep.subr.bf16.mxu0 %v4629
      %5088 = vmatpush2.bf16.msra.mxu0 %v4628
      %5089 = vmatprep.subr.bf16.mxu0 %v4627
      %5090 = vmatpush2.bf16.msra.mxu0 %v4626
      %5091 = vmatprep.mubr.bf16.mxu0 %v4185
      %5092 = vmatmul.mubr.bf16.gmra.mxu0 %v4184
      %v5093 = vpop.f32.mrf.mxu0
      %v5094 = vadd.f32 %v4741, %v5093
      %v5095 = vpop.f32.mrf.mxu0
      %v5096 = vadd.f32 %v4743, %v5095
      %v5097 = vpop.f32.mrf.mxu0
      %v5098 = vadd.f32 %v4745, %v5097
      %v5099 = vpop.f32.mrf.mxu0
      %v5100 = vadd.f32 %v4747, %v5099
      %5101 = vmatprep.mubr.bf16.mxu0 %v4189
      %5102 = vmatmul.mubr.bf16.gmra.mxu0 %v4188
      %v5103 = vpop.f32.mrf.mxu0
      %v5104 = vadd.f32 %v4751, %v5103
      %v5105 = vpop.f32.mrf.mxu0
      %v5106 = vadd.f32 %v4753, %v5105
      %v5107 = vpop.f32.mrf.mxu0
      %v5108 = vadd.f32 %v4755, %v5107
      %v5109 = vpop.f32.mrf.mxu0
      %v5110 = vadd.f32 %v4757, %v5109
      %5111 = vmatprep.mubr.bf16.mxu0 %v4193
      %5112 = vmatmul.mubr.bf16.gmra.mxu0 %v4192
      %v5113 = vpop.f32.mrf.mxu0
      %v5114 = vadd.f32 %v4761, %v5113
      %v5115 = vpop.f32.mrf.mxu0
      %v5116 = vadd.f32 %v4763, %v5115
      %v5117 = vpop.f32.mrf.mxu0
      %v5118 = vadd.f32 %v4765, %v5117
      %v5119 = vpop.f32.mrf.mxu0
      %v5120 = vadd.f32 %v4767, %v5119
      %5121 = vmatprep.mubr.bf16.mxu0 %v4197
      %5122 = vmatmul.mubr.bf16.gmra.mxu0 %v4196
      %v5123 = vpop.f32.mrf.mxu0
      %v5124 = vadd.f32 %v4771, %v5123
      %v5125 = vpop.f32.mrf.mxu0
      %v5126 = vadd.f32 %v4773, %v5125
      %v5127 = vpop.f32.mrf.mxu0
      %v5128 = vadd.f32 %v4775, %v5127
      %v5129 = vpop.f32.mrf.mxu0
      %v5130 = vadd.f32 %v4777, %v5129
      %5131 = vmatprep.mubr.bf16.mxu0 %v4201
      %5132 = vmatmul.mubr.bf16.gmra.mxu0 %v4200
      %v5133 = vpop.f32.mrf.mxu0
      %v5134 = vadd.f32 %v4781, %v5133
      %v5135 = vpop.f32.mrf.mxu0
      %v5136 = vadd.f32 %v4783, %v5135
      %v5137 = vpop.f32.mrf.mxu0
      %v5138 = vadd.f32 %v4785, %v5137
      %v5139 = vpop.f32.mrf.mxu0
      %v5140 = vadd.f32 %v4787, %v5139
      %5141 = vmatprep.mubr.bf16.mxu0 %v4205
      %5142 = vmatmul.mubr.bf16.gmra.mxu0 %v4204
      %v5143 = vpop.f32.mrf.mxu0
      %v5144 = vadd.f32 %v4791, %v5143
      %v5145 = vpop.f32.mrf.mxu0
      %v5146 = vadd.f32 %v4793, %v5145
      %v5147 = vpop.f32.mrf.mxu0
      %v5148 = vadd.f32 %v4795, %v5147
      %v5149 = vpop.f32.mrf.mxu0
      %v5150 = vadd.f32 %v4797, %v5149
      %5151 = vmatprep.mubr.bf16.mxu0 %v4209
      %5152 = vmatmul.mubr.bf16.gmra.mxu0 %v4208
      %v5153 = vpop.f32.mrf.mxu0
      %v5154 = vadd.f32 %v4801, %v5153
      %v5155 = vpop.f32.mrf.mxu0
      %v5156 = vadd.f32 %v4803, %v5155
      %v5157 = vpop.f32.mrf.mxu0
      %v5158 = vadd.f32 %v4805, %v5157
      %v5159 = vpop.f32.mrf.mxu0
      %v5160 = vadd.f32 %v4807, %v5159
      %5161 = vmatprep.mubr.bf16.mxu0 %v4213
      %5162 = vmatmul.mubr.bf16.gmra.mxu0 %v4212
      %v5163 = vpop.f32.mrf.mxu0
      %v5164 = vadd.f32 %v4811, %v5163
      %v5165 = vpop.f32.mrf.mxu0
      %v5166 = vadd.f32 %v4813, %v5165
      %v5167 = vpop.f32.mrf.mxu0
      %v5168 = vadd.f32 %v4815, %v5167
      %v5169 = vpop.f32.mrf.mxu0
      %v5170 = vadd.f32 %v4817, %v5169
      %5171 = vmatprep.mubr.bf16.mxu0 %v4217
      %5172 = vmatmul.mubr.bf16.gmra.mxu0 %v4216
      %v5173 = vpop.f32.mrf.mxu0
      %v5174 = vadd.f32 %v4821, %v5173
      %v5175 = vpop.f32.mrf.mxu0
      %v5176 = vadd.f32 %v4823, %v5175
      %v5177 = vpop.f32.mrf.mxu0
      %v5178 = vadd.f32 %v4825, %v5177
      %v5179 = vpop.f32.mrf.mxu0
      %v5180 = vadd.f32 %v4827, %v5179
      %5181 = vmatprep.mubr.bf16.mxu0 %v4221
      %5182 = vmatmul.mubr.bf16.gmra.mxu0 %v4220
      %v5183 = vpop.f32.mrf.mxu0
      %v5184 = vadd.f32 %v4831, %v5183
      %v5185 = vpop.f32.mrf.mxu0
      %v5186 = vadd.f32 %v4833, %v5185
      %v5187 = vpop.f32.mrf.mxu0
      %v5188 = vadd.f32 %v4835, %v5187
      %v5189 = vpop.f32.mrf.mxu0
      %v5190 = vadd.f32 %v4837, %v5189
      %5191 = vmatprep.mubr.bf16.mxu0 %v4225
      %5192 = vmatmul.mubr.bf16.gmra.mxu0 %v4224
      %v5193 = vpop.f32.mrf.mxu0
      %v5194 = vadd.f32 %v4841, %v5193
      %v5195 = vpop.f32.mrf.mxu0
      %v5196 = vadd.f32 %v4843, %v5195
      %v5197 = vpop.f32.mrf.mxu0
      %v5198 = vadd.f32 %v4845, %v5197
      %v5199 = vpop.f32.mrf.mxu0
      %v5200 = vadd.f32 %v4847, %v5199
      %5201 = vmatprep.mubr.bf16.mxu0 %v4229
      %5202 = vmatmul.mubr.bf16.gmra.mxu0 %v4228
      %v5203 = vpop.f32.mrf.mxu0
      %v5204 = vadd.f32 %v4851, %v5203
      %v5205 = vpop.f32.mrf.mxu0
      %v5206 = vadd.f32 %v4853, %v5205
      %v5207 = vpop.f32.mrf.mxu0
      %v5208 = vadd.f32 %v4855, %v5207
      %v5209 = vpop.f32.mrf.mxu0
      %v5210 = vadd.f32 %v4857, %v5209
      %5211 = vmatprep.mubr.bf16.mxu0 %v4233
      %5212 = vmatmul.mubr.bf16.gmra.mxu0 %v4232
      %v5213 = vpop.f32.mrf.mxu0
      %v5214 = vadd.f32 %v4861, %v5213
      %v5215 = vpop.f32.mrf.mxu0
      %v5216 = vadd.f32 %v4863, %v5215
      %v5217 = vpop.f32.mrf.mxu0
      %v5218 = vadd.f32 %v4865, %v5217
      %v5219 = vpop.f32.mrf.mxu0
      %v5220 = vadd.f32 %v4867, %v5219
      %5221 = vmatprep.mubr.bf16.mxu0 %v4237
      %5222 = vmatmul.mubr.bf16.gmra.mxu0 %v4236
      %v5223 = vpop.f32.mrf.mxu0
      %v5224 = vadd.f32 %v4871, %v5223
      %v5225 = vpop.f32.mrf.mxu0
      %v5226 = vadd.f32 %v4873, %v5225
      %v5227 = vpop.f32.mrf.mxu0
      %v5228 = vadd.f32 %v4875, %v5227
      %v5229 = vpop.f32.mrf.mxu0
      %v5230 = vadd.f32 %v4877, %v5229
      %5231 = vmatprep.mubr.bf16.mxu0 %v4241
      %5232 = vmatmul.mubr.bf16.gmra.mxu0 %v4240
      %v5233 = vpop.f32.mrf.mxu0
      %v5234 = vadd.f32 %v4881, %v5233
      %v5235 = vpop.f32.mrf.mxu0
      %v5236 = vadd.f32 %v4883, %v5235
      %v5237 = vpop.f32.mrf.mxu0
      %v5238 = vadd.f32 %v4885, %v5237
      %v5239 = vpop.f32.mrf.mxu0
      %v5240 = vadd.f32 %v4887, %v5239
      %5241 = vmatprep.mubr.bf16.mxu0 %v4245
      %5242 = vmatmul.mubr.bf16.gmra.mxu0 %v4244
      %v5243 = vpop.f32.mrf.mxu0
      %v5244 = vadd.f32 %v4891, %v5243
      %v5245 = vpop.f32.mrf.mxu0
      %v5246 = vadd.f32 %v4893, %v5245
      %v5247 = vpop.f32.mrf.mxu0
      %v5248 = vadd.f32 %v4895, %v5247
      %v5249 = vpop.f32.mrf.mxu0
      %v5250 = vadd.f32 %v4897, %v5249
      %5251 = vmatprep.mubr.bf16.mxu0 %v4249
      %5252 = vmatmul.mubr.bf16.gmra.mxu0 %v4248
      %v5253 = vpop.f32.mrf.mxu0
      %v5254 = vadd.f32 %v4901, %v5253
      %v5255 = vpop.f32.mrf.mxu0
      %v5256 = vadd.f32 %v4903, %v5255
      %v5257 = vpop.f32.mrf.mxu0
      %v5258 = vadd.f32 %v4905, %v5257
      %v5259 = vpop.f32.mrf.mxu0
      %v5260 = vadd.f32 %v4907, %v5259
      %5261 = vmatprep.mubr.bf16.mxu0 %v4253
      %5262 = vmatmul.mubr.bf16.gmra.mxu0 %v4252
      %v5263 = vpop.f32.mrf.mxu0
      %v5264 = vadd.f32 %v4911, %v5263
      %v5265 = vpop.f32.mrf.mxu0
      %v5266 = vadd.f32 %v4913, %v5265
      %v5267 = vpop.f32.mrf.mxu0
      %v5268 = vadd.f32 %v4915, %v5267
      %v5269 = vpop.f32.mrf.mxu0
      %v5270 = vadd.f32 %v4917, %v5269
      %5271 = vmatprep.mubr.bf16.mxu0 %v4257
      %5272 = vmatmul.mubr.bf16.gmra.mxu0 %v4256
      %v5273 = vpop.f32.mrf.mxu0
      %v5274 = vadd.f32 %v4921, %v5273
      %v5275 = vpop.f32.mrf.mxu0
      %v5276 = vadd.f32 %v4923, %v5275
      %v5277 = vpop.f32.mrf.mxu0
      %v5278 = vadd.f32 %v4925, %v5277
      %v5279 = vpop.f32.mrf.mxu0
      %v5280 = vadd.f32 %v4927, %v5279
      %5281 = vmatprep.mubr.bf16.mxu0 %v4261
      %5282 = vmatmul.mubr.bf16.gmra.mxu0 %v4260
      %v5283 = vpop.f32.mrf.mxu0
      %v5284 = vadd.f32 %v4931, %v5283
      %v5285 = vpop.f32.mrf.mxu0
      %v5286 = vadd.f32 %v4933, %v5285
      %v5287 = vpop.f32.mrf.mxu0
      %v5288 = vadd.f32 %v4935, %v5287
      %v5289 = vpop.f32.mrf.mxu0
      %v5290 = vadd.f32 %v4937, %v5289
      %5291 = vmatprep.mubr.bf16.mxu0 %v4265
      %5292 = vmatmul.mubr.bf16.gmra.mxu0 %v4264
      %v5293 = vpop.f32.mrf.mxu0
      %v5294 = vadd.f32 %v4941, %v5293
      %v5295 = vpop.f32.mrf.mxu0
      %v5296 = vadd.f32 %v4943, %v5295
      %v5297 = vpop.f32.mrf.mxu0
      %v5298 = vadd.f32 %v4945, %v5297
      %v5299 = vpop.f32.mrf.mxu0
      %v5300 = vadd.f32 %v4947, %v5299
      %5301 = vmatprep.mubr.bf16.mxu0 %v4269
      %5302 = vmatmul.mubr.bf16.gmra.mxu0 %v4268
      %v5303 = vpop.f32.mrf.mxu0
      %v5304 = vadd.f32 %v4951, %v5303
      %v5305 = vpop.f32.mrf.mxu0
      %v5306 = vadd.f32 %v4953, %v5305
      %v5307 = vpop.f32.mrf.mxu0
      %v5308 = vadd.f32 %v4955, %v5307
      %v5309 = vpop.f32.mrf.mxu0
      %v5310 = vadd.f32 %v4957, %v5309
      %5311 = vmatprep.mubr.bf16.mxu0 %v4273
      %5312 = vmatmul.mubr.bf16.gmra.mxu0 %v4272
      %v5313 = vpop.f32.mrf.mxu0
      %v5314 = vadd.f32 %v4961, %v5313
      %v5315 = vpop.f32.mrf.mxu0
      %v5316 = vadd.f32 %v4963, %v5315
      %v5317 = vpop.f32.mrf.mxu0
      %v5318 = vadd.f32 %v4965, %v5317
      %v5319 = vpop.f32.mrf.mxu0
      %v5320 = vadd.f32 %v4967, %v5319
      %5321 = vmatprep.mubr.bf16.mxu0 %v4277
      %5322 = vmatmul.mubr.bf16.gmra.mxu0 %v4276
      %v5323 = vpop.f32.mrf.mxu0
      %v5324 = vadd.f32 %v4971, %v5323
      %v5325 = vpop.f32.mrf.mxu0
      %v5326 = vadd.f32 %v4973, %v5325
      %v5327 = vpop.f32.mrf.mxu0
      %v5328 = vadd.f32 %v4975, %v5327
      %v5329 = vpop.f32.mrf.mxu0
      %v5330 = vadd.f32 %v4977, %v5329
      %5331 = vmatprep.mubr.bf16.mxu0 %v4281
      %5332 = vmatmul.mubr.bf16.gmra.mxu0 %v4280
      %v5333 = vpop.f32.mrf.mxu0
      %v5334 = vadd.f32 %v4981, %v5333
      %v5335 = vpop.f32.mrf.mxu0
      %v5336 = vadd.f32 %v4983, %v5335
      %v5337 = vpop.f32.mrf.mxu0
      %v5338 = vadd.f32 %v4985, %v5337
      %v5339 = vpop.f32.mrf.mxu0
      %v5340 = vadd.f32 %v4987, %v5339
      %5341 = vmatprep.mubr.bf16.mxu0 %v4285
      %5342 = vmatmul.mubr.bf16.gmra.mxu0 %v4284
      %v5343 = vpop.f32.mrf.mxu0
      %v5344 = vadd.f32 %v4991, %v5343
      %v5345 = vpop.f32.mrf.mxu0
      %v5346 = vadd.f32 %v4993, %v5345
      %v5347 = vpop.f32.mrf.mxu0
      %v5348 = vadd.f32 %v4995, %v5347
      %v5349 = vpop.f32.mrf.mxu0
      %v5350 = vadd.f32 %v4997, %v5349
      %5351 = vmatprep.mubr.bf16.mxu0 %v4289
      %5352 = vmatmul.mubr.bf16.gmra.mxu0 %v4288
      %v5353 = vpop.f32.mrf.mxu0
      %v5354 = vadd.f32 %v5001, %v5353
      %v5355 = vpop.f32.mrf.mxu0
      %v5356 = vadd.f32 %v5003, %v5355
      %v5357 = vpop.f32.mrf.mxu0
      %v5358 = vadd.f32 %v5005, %v5357
      %v5359 = vpop.f32.mrf.mxu0
      %v5360 = vadd.f32 %v5007, %v5359
      %5361 = vmatprep.mubr.bf16.mxu0 %v4293
      %5362 = vmatmul.mubr.bf16.gmra.mxu0 %v4292
      %v5363 = vpop.f32.mrf.mxu0
      %v5364 = vadd.f32 %v5011, %v5363
      %v5365 = vpop.f32.mrf.mxu0
      %v5366 = vadd.f32 %v5013, %v5365
      %v5367 = vpop.f32.mrf.mxu0
      %v5368 = vadd.f32 %v5015, %v5367
      %v5369 = vpop.f32.mrf.mxu0
      %v5370 = vadd.f32 %v5017, %v5369
      %5371 = vmatprep.mubr.bf16.mxu0 %v4297
      %5372 = vmatmul.mubr.bf16.gmra.mxu0 %v4296
      %v5373 = vpop.f32.mrf.mxu0
      %v5374 = vadd.f32 %v5021, %v5373
      %v5375 = vpop.f32.mrf.mxu0
      %v5376 = vadd.f32 %v5023, %v5375
      %v5377 = vpop.f32.mrf.mxu0
      %v5378 = vadd.f32 %v5025, %v5377
      %v5379 = vpop.f32.mrf.mxu0
      %v5380 = vadd.f32 %v5027, %v5379
      %5381 = vmatprep.mubr.bf16.mxu0 %v4301
      %5382 = vmatmul.mubr.bf16.gmra.mxu0 %v4300
      %v5383 = vpop.f32.mrf.mxu0
      %v5384 = vadd.f32 %v5031, %v5383
      %v5385 = vpop.f32.mrf.mxu0
      %v5386 = vadd.f32 %v5033, %v5385
      %v5387 = vpop.f32.mrf.mxu0
      %v5388 = vadd.f32 %v5035, %v5387
      %v5389 = vpop.f32.mrf.mxu0
      %v5390 = vadd.f32 %v5037, %v5389
      %5391 = vmatprep.mubr.bf16.mxu0 %v4305
      %5392 = vmatmul.mubr.bf16.gmra.mxu0 %v4304
      %v5393 = vpop.f32.mrf.mxu0
      %v5394 = vadd.f32 %v5041, %v5393
      %v5395 = vpop.f32.mrf.mxu0
      %v5396 = vadd.f32 %v5043, %v5395
      %v5397 = vpop.f32.mrf.mxu0
      %v5398 = vadd.f32 %v5045, %v5397
      %v5399 = vpop.f32.mrf.mxu0
      %v5400 = vadd.f32 %v5047, %v5399
      %5401 = vmatprep.mubr.bf16.mxu0 %v4309
      %5402 = vmatmul.mubr.bf16.gmra.mxu0 %v4308
      %v5403 = vpop.f32.mrf.mxu0
      %v5404 = vadd.f32 %v5051, %v5403
      %v5405 = vpop.f32.mrf.mxu0
      %v5406 = vadd.f32 %v5053, %v5405
      %v5407 = vpop.f32.mrf.mxu0
      %v5408 = vadd.f32 %v5055, %v5407
      %v5409 = vpop.f32.mrf.mxu0
      %v5410 = vadd.f32 %v5057, %v5409
      %5411 = vdwg.mxu0
      %v5412 = vmax.f32 %v5094, 0.0
      %v5413 = vmax.f32 %v5096, 0.0
      %v5414 = vmax.f32 %v5098, 0.0
      %v5415 = vmax.f32 %v5100, 0.0
      %v5416 = vmax.f32 %v5104, 0.0
      %v5417 = vmax.f32 %v5106, 0.0
      %v5418 = vmax.f32 %v5108, 0.0
      %v5419 = vmax.f32 %v5110, 0.0
      %v5420 = vmax.f32 %v5114, 0.0
      %v5421 = vmax.f32 %v5116, 0.0
      %v5422 = vmax.f32 %v5118, 0.0
      %v5423 = vmax.f32 %v5120, 0.0
      %v5424 = vmax.f32 %v5124, 0.0
      %v5425 = vmax.f32 %v5126, 0.0
      %v5426 = vmax.f32 %v5128, 0.0
      %v5427 = vmax.f32 %v5130, 0.0
      %v5428 = vmax.f32 %v5134, 0.0
      %v5429 = vmax.f32 %v5136, 0.0
      %v5430 = vmax.f32 %v5138, 0.0
      %v5431 = vmax.f32 %v5140, 0.0
      %v5432 = vmax.f32 %v5144, 0.0
      %v5433 = vmax.f32 %v5146, 0.0
      %v5434 = vmax.f32 %v5148, 0.0
      %v5435 = vmax.f32 %v5150, 0.0
      %v5436 = vmax.f32 %v5154, 0.0
      %v5437 = vmax.f32 %v5156, 0.0
      %v5438 = vmax.f32 %v5158, 0.0
      %v5439 = vmax.f32 %v5160, 0.0
      %v5440 = vmax.f32 %v5164, 0.0
      %v5441 = vmax.f32 %v5166, 0.0
      %v5442 = vmax.f32 %v5168, 0.0
      %v5443 = vmax.f32 %v5170, 0.0
      %v5444 = vmax.f32 %v5174, 0.0
      %v5445 = vmax.f32 %v5176, 0.0
      %v5446 = vmax.f32 %v5178, 0.0
      %v5447 = vmax.f32 %v5180, 0.0
      %v5448 = vmax.f32 %v5184, 0.0
      %v5449 = vmax.f32 %v5186, 0.0
      %v5450 = vmax.f32 %v5188, 0.0
      %v5451 = vmax.f32 %v5190, 0.0
      %v5452 = vmax.f32 %v5194, 0.0
      %v5453 = vmax.f32 %v5196, 0.0
      %v5454 = vmax.f32 %v5198, 0.0
      %v5455 = vmax.f32 %v5200, 0.0
      %v5456 = vmax.f32 %v5204, 0.0
      %v5457 = vmax.f32 %v5206, 0.0
      %v5458 = vmax.f32 %v5208, 0.0
      %v5459 = vmax.f32 %v5210, 0.0
      %v5460 = vmax.f32 %v5214, 0.0
      %v5461 = vmax.f32 %v5216, 0.0
      %v5462 = vmax.f32 %v5218, 0.0
      %v5463 = vmax.f32 %v5220, 0.0
      %v5464 = vmax.f32 %v5224, 0.0
      %v5465 = vmax.f32 %v5226, 0.0
      %v5466 = vmax.f32 %v5228, 0.0
      %v5467 = vmax.f32 %v5230, 0.0
      %v5468 = vmax.f32 %v5234, 0.0
      %v5469 = vmax.f32 %v5236, 0.0
      %v5470 = vmax.f32 %v5238, 0.0
      %v5471 = vmax.f32 %v5240, 0.0
      %v5472 = vmax.f32 %v5244, 0.0
      %v5473 = vmax.f32 %v5246, 0.0
      %v5474 = vmax.f32 %v5248, 0.0
      %v5475 = vmax.f32 %v5250, 0.0
      %v5476 = vmax.f32 %v5254, 0.0
      %v5477 = vmax.f32 %v5256, 0.0
      %v5478 = vmax.f32 %v5258, 0.0
      %v5479 = vmax.f32 %v5260, 0.0
      %v5480 = vmax.f32 %v5264, 0.0
      %v5481 = vmax.f32 %v5266, 0.0
      %v5482 = vmax.f32 %v5268, 0.0
      %v5483 = vmax.f32 %v5270, 0.0
      %v5484 = vmax.f32 %v5274, 0.0
      %v5485 = vmax.f32 %v5276, 0.0
      %v5486 = vmax.f32 %v5278, 0.0
      %v5487 = vmax.f32 %v5280, 0.0
      %v5488 = vmax.f32 %v5284, 0.0
      %v5489 = vmax.f32 %v5286, 0.0
      %v5490 = vmax.f32 %v5288, 0.0
      %v5491 = vmax.f32 %v5290, 0.0
      %v5492 = vmax.f32 %v5294, 0.0
      %v5493 = vmax.f32 %v5296, 0.0
      %v5494 = vmax.f32 %v5298, 0.0
      %v5495 = vmax.f32 %v5300, 0.0
      %v5496 = vmax.f32 %v5304, 0.0
      %v5497 = vmax.f32 %v5306, 0.0
      %v5498 = vmax.f32 %v5308, 0.0
      %v5499 = vmax.f32 %v5310, 0.0
      %v5500 = vmax.f32 %v5314, 0.0
      %v5501 = vmax.f32 %v5316, 0.0
      %v5502 = vmax.f32 %v5318, 0.0
      %v5503 = vmax.f32 %v5320, 0.0
      %v5504 = vmax.f32 %v5324, 0.0
      %v5505 = vmax.f32 %v5326, 0.0
      %v5506 = vmax.f32 %v5328, 0.0
      %v5507 = vmax.f32 %v5330, 0.0
      %v5508 = vmax.f32 %v5334, 0.0
      %v5509 = vmax.f32 %v5336, 0.0
      %v5510 = vmax.f32 %v5338, 0.0
      %v5511 = vmax.f32 %v5340, 0.0
      %v5512 = vmax.f32 %v5344, 0.0
      %v5513 = vmax.f32 %v5346, 0.0
      %v5514 = vmax.f32 %v5348, 0.0
      %v5515 = vmax.f32 %v5350, 0.0
      %v5516 = vmax.f32 %v5354, 0.0
      %v5517 = vmax.f32 %v5356, 0.0
      %v5518 = vmax.f32 %v5358, 0.0
      %v5519 = vmax.f32 %v5360, 0.0
      %v5520 = vmax.f32 %v5364, 0.0
      %v5521 = vmax.f32 %v5366, 0.0
      %v5522 = vmax.f32 %v5368, 0.0
      %v5523 = vmax.f32 %v5370, 0.0
      %v5524 = vmax.f32 %v5374, 0.0
      %v5525 = vmax.f32 %v5376, 0.0
      %v5526 = vmax.f32 %v5378, 0.0
      %v5527 = vmax.f32 %v5380, 0.0
      %v5528 = vmax.f32 %v5384, 0.0
      %v5529 = vmax.f32 %v5386, 0.0
      %v5530 = vmax.f32 %v5388, 0.0
      %v5531 = vmax.f32 %v5390, 0.0
      %v5532 = vmax.f32 %v5394, 0.0
      %v5533 = vmax.f32 %v5396, 0.0
      %v5534 = vmax.f32 %v5398, 0.0
      %v5535 = vmax.f32 %v5400, 0.0
      %v5536 = vmax.f32 %v5404, 0.0
      %v5537 = vmax.f32 %v5406, 0.0
      %v5538 = vmax.f32 %v5408, 0.0
      %v5539 = vmax.f32 %v5410, 0.0
      %v5540 = vld [vmem:[%s5] sm:$0x3]
      %v5542 = vlaneseq
      %v5543 = vshrl.u32 %v5542, 7
      %v5544 = vsub.s32 0, %v5543
      %v5545 = vrot.slane %v5540, %v5544
      %v5546 = vlaneseq
      %v5547 = vshrl.u32 %v5546, 7
      %v5548 = vsub.s32 1, %v5547
      %v5549 = vrot.slane %v5540, %v5548
      %v5552 = vmul.f32 %v5412, %v5545
      %v5553 = vmul.f32 %v5413, %v5549
      %v5554 = vmul.f32 %v5414, %v5545
      %v5555 = vmul.f32 %v5415, %v5549
      %v5556 = vmul.f32 %v5416, %v5545
      %v5557 = vmul.f32 %v5417, %v5549
      %v5558 = vmul.f32 %v5418, %v5545
      %v5559 = vmul.f32 %v5419, %v5549
      %v5560 = vmul.f32 %v5420, %v5545
      %v5561 = vmul.f32 %v5421, %v5549
      %v5562 = vmul.f32 %v5422, %v5545
      %v5563 = vmul.f32 %v5423, %v5549
      %v5564 = vmul.f32 %v5424, %v5545
      %v5565 = vmul.f32 %v5425, %v5549
      %v5566 = vmul.f32 %v5426, %v5545
      %v5567 = vmul.f32 %v5427, %v5549
      %v5568 = vmul.f32 %v5428, %v5545
      %v5569 = vmul.f32 %v5429, %v5549
      %v5570 = vmul.f32 %v5430, %v5545
      %v5571 = vmul.f32 %v5431, %v5549
      %v5572 = vmul.f32 %v5432, %v5545
      %v5573 = vmul.f32 %v5433, %v5549
      %v5574 = vmul.f32 %v5434, %v5545
      %v5575 = vmul.f32 %v5435, %v5549
      %v5576 = vmul.f32 %v5436, %v5545
      %v5577 = vmul.f32 %v5437, %v5549
      %v5578 = vmul.f32 %v5438, %v5545
      %v5579 = vmul.f32 %v5439, %v5549
      %v5580 = vmul.f32 %v5440, %v5545
      %v5581 = vmul.f32 %v5441, %v5549
      %v5582 = vmul.f32 %v5442, %v5545
      %v5583 = vmul.f32 %v5443, %v5549
      %v5584 = vmul.f32 %v5444, %v5545
      %v5585 = vmul.f32 %v5445, %v5549
      %v5586 = vmul.f32 %v5446, %v5545
      %v5587 = vmul.f32 %v5447, %v5549
      %v5588 = vmul.f32 %v5448, %v5545
      %v5589 = vmul.f32 %v5449, %v5549
      %v5590 = vmul.f32 %v5450, %v5545
      %v5591 = vmul.f32 %v5451, %v5549
      %v5592 = vmul.f32 %v5452, %v5545
      %v5593 = vmul.f32 %v5453, %v5549
      %v5594 = vmul.f32 %v5454, %v5545
      %v5595 = vmul.f32 %v5455, %v5549
      %v5596 = vmul.f32 %v5456, %v5545
      %v5597 = vmul.f32 %v5457, %v5549
      %v5598 = vmul.f32 %v5458, %v5545
      %v5599 = vmul.f32 %v5459, %v5549
      %v5600 = vmul.f32 %v5460, %v5545
      %v5601 = vmul.f32 %v5461, %v5549
      %v5602 = vmul.f32 %v5462, %v5545
      %v5603 = vmul.f32 %v5463, %v5549
      %v5604 = vmul.f32 %v5464, %v5545
      %v5605 = vmul.f32 %v5465, %v5549
      %v5606 = vmul.f32 %v5466, %v5545
      %v5607 = vmul.f32 %v5467, %v5549
      %v5608 = vmul.f32 %v5468, %v5545
      %v5609 = vmul.f32 %v5469, %v5549
      %v5610 = vmul.f32 %v5470, %v5545
      %v5611 = vmul.f32 %v5471, %v5549
      %v5612 = vmul.f32 %v5472, %v5545
      %v5613 = vmul.f32 %v5473, %v5549
      %v5614 = vmul.f32 %v5474, %v5545
      %v5615 = vmul.f32 %v5475, %v5549
      %v5616 = vmul.f32 %v5476, %v5545
      %v5617 = vmul.f32 %v5477, %v5549
      %v5618 = vmul.f32 %v5478, %v5545
      %v5619 = vmul.f32 %v5479, %v5549
      %v5620 = vmul.f32 %v5480, %v5545
      %v5621 = vmul.f32 %v5481, %v5549
      %v5622 = vmul.f32 %v5482, %v5545
      %v5623 = vmul.f32 %v5483, %v5549
      %v5624 = vmul.f32 %v5484, %v5545
      %v5625 = vmul.f32 %v5485, %v5549
      %v5626 = vmul.f32 %v5486, %v5545
      %v5627 = vmul.f32 %v5487, %v5549
      %v5628 = vmul.f32 %v5488, %v5545
      %v5629 = vmul.f32 %v5489, %v5549
      %v5630 = vmul.f32 %v5490, %v5545
      %v5631 = vmul.f32 %v5491, %v5549
      %v5632 = vmul.f32 %v5492, %v5545
      %v5633 = vmul.f32 %v5493, %v5549
      %v5634 = vmul.f32 %v5494, %v5545
      %v5635 = vmul.f32 %v5495, %v5549
      %v5636 = vmul.f32 %v5496, %v5545
      %v5637 = vmul.f32 %v5497, %v5549
      %v5638 = vmul.f32 %v5498, %v5545
      %v5639 = vmul.f32 %v5499, %v5549
      %v5640 = vmul.f32 %v5500, %v5545
      %v5641 = vmul.f32 %v5501, %v5549
      %v5642 = vmul.f32 %v5502, %v5545
      %v5643 = vmul.f32 %v5503, %v5549
      %v5644 = vmul.f32 %v5504, %v5545
      %v5645 = vmul.f32 %v5505, %v5549
      %v5646 = vmul.f32 %v5506, %v5545
      %v5647 = vmul.f32 %v5507, %v5549
      %v5648 = vmul.f32 %v5508, %v5545
      %v5649 = vmul.f32 %v5509, %v5549
      %v5650 = vmul.f32 %v5510, %v5545
      %v5651 = vmul.f32 %v5511, %v5549
      %v5652 = vmul.f32 %v5512, %v5545
      %v5653 = vmul.f32 %v5513, %v5549
      %v5654 = vmul.f32 %v5514, %v5545
      %v5655 = vmul.f32 %v5515, %v5549
      %v5656 = vmul.f32 %v5516, %v5545
      %v5657 = vmul.f32 %v5517, %v5549
      %v5658 = vmul.f32 %v5518, %v5545
      %v5659 = vmul.f32 %v5519, %v5549
      %v5660 = vmul.f32 %v5520, %v5545
      %v5661 = vmul.f32 %v5521, %v5549
      %v5662 = vmul.f32 %v5522, %v5545
      %v5663 = vmul.f32 %v5523, %v5549
      %v5664 = vmul.f32 %v5524, %v5545
      %v5665 = vmul.f32 %v5525, %v5549
      %v5666 = vmul.f32 %v5526, %v5545
      %v5667 = vmul.f32 %v5527, %v5549
      %v5668 = vmul.f32 %v5528, %v5545
      %v5669 = vmul.f32 %v5529, %v5549
      %v5670 = vmul.f32 %v5530, %v5545
      %v5671 = vmul.f32 %v5531, %v5549
      %v5672 = vmul.f32 %v5532, %v5545
      %v5673 = vmul.f32 %v5533, %v5549
      %v5674 = vmul.f32 %v5534, %v5545
      %v5675 = vmul.f32 %v5535, %v5549
      %v5676 = vmul.f32 %v5536, %v5545
      %v5677 = vmul.f32 %v5537, %v5549
      %v5678 = vmul.f32 %v5538, %v5545
      %v5679 = vmul.f32 %v5539, %v5549
      %v5680 = vadd.f32 %v5552, %v5553
      %5681 = vadd.xlane.f32.xlu0 %v5680
      %v5682 = vpop.xlane.xlu0 %5681
      %v5683 = vadd.f32 %v5554, %v5555
      %5684 = vadd.xlane.f32.xlu0 %v5683
      %v5685 = vpop.xlane.xlu0 %5684
      %v5686 = vadd.f32 %v5556, %v5557
      %5687 = vadd.xlane.f32.xlu0 %v5686
      %v5688 = vpop.xlane.xlu0 %5687
      %v5689 = vadd.f32 %v5558, %v5559
      %5690 = vadd.xlane.f32.xlu0 %v5689
      %v5691 = vpop.xlane.xlu0 %5690
      %v5692 = vadd.f32 %v5560, %v5561
      %5693 = vadd.xlane.f32.xlu0 %v5692
      %v5694 = vpop.xlane.xlu0 %5693
      %v5695 = vadd.f32 %v5562, %v5563
      %5696 = vadd.xlane.f32.xlu0 %v5695
      %v5697 = vpop.xlane.xlu0 %5696
      %v5698 = vadd.f32 %v5564, %v5565
      %5699 = vadd.xlane.f32.xlu0 %v5698
      %v5700 = vpop.xlane.xlu0 %5699
      %v5701 = vadd.f32 %v5566, %v5567
      %5702 = vadd.xlane.f32.xlu0 %v5701
      %v5703 = vpop.xlane.xlu0 %5702
      %v5704 = vadd.f32 %v5568, %v5569
      %5705 = vadd.xlane.f32.xlu0 %v5704
      %v5706 = vpop.xlane.xlu0 %5705
      %v5707 = vadd.f32 %v5570, %v5571
      %5708 = vadd.xlane.f32.xlu0 %v5707
      %v5709 = vpop.xlane.xlu0 %5708
      %v5710 = vadd.f32 %v5572, %v5573
      %5711 = vadd.xlane.f32.xlu0 %v5710
      %v5712 = vpop.xlane.xlu0 %5711
      %v5713 = vadd.f32 %v5574, %v5575
      %5714 = vadd.xlane.f32.xlu0 %v5713
      %v5715 = vpop.xlane.xlu0 %5714
      %v5716 = vadd.f32 %v5576, %v5577
      %5717 = vadd.xlane.f32.xlu0 %v5716
      %v5718 = vpop.xlane.xlu0 %5717
      %v5719 = vadd.f32 %v5578, %v5579
      %5720 = vadd.xlane.f32.xlu0 %v5719
      %v5721 = vpop.xlane.xlu0 %5720
      %v5722 = vadd.f32 %v5580, %v5581
      %5723 = vadd.xlane.f32.xlu0 %v5722
      %v5724 = vpop.xlane.xlu0 %5723
      %v5725 = vadd.f32 %v5582, %v5583
      %5726 = vadd.xlane.f32.xlu0 %v5725
      %v5727 = vpop.xlane.xlu0 %5726
      %v5728 = vadd.f32 %v5584, %v5585
      %5729 = vadd.xlane.f32.xlu0 %v5728
      %v5730 = vpop.xlane.xlu0 %5729
      %v5731 = vadd.f32 %v5586, %v5587
      %5732 = vadd.xlane.f32.xlu0 %v5731
      %v5733 = vpop.xlane.xlu0 %5732
      %v5734 = vadd.f32 %v5588, %v5589
      %5735 = vadd.xlane.f32.xlu0 %v5734
      %v5736 = vpop.xlane.xlu0 %5735
      %v5737 = vadd.f32 %v5590, %v5591
      %5738 = vadd.xlane.f32.xlu0 %v5737
      %v5739 = vpop.xlane.xlu0 %5738
      %v5740 = vadd.f32 %v5592, %v5593
      %5741 = vadd.xlane.f32.xlu0 %v5740
      %v5742 = vpop.xlane.xlu0 %5741
      %v5743 = vadd.f32 %v5594, %v5595
      %5744 = vadd.xlane.f32.xlu0 %v5743
      %v5745 = vpop.xlane.xlu0 %5744
      %v5746 = vadd.f32 %v5596, %v5597
      %5747 = vadd.xlane.f32.xlu0 %v5746
      %v5748 = vpop.xlane.xlu0 %5747
      %v5749 = vadd.f32 %v5598, %v5599
      %5750 = vadd.xlane.f32.xlu0 %v5749
      %v5751 = vpop.xlane.xlu0 %5750
      %v5752 = vadd.f32 %v5600, %v5601
      %5753 = vadd.xlane.f32.xlu0 %v5752
      %v5754 = vpop.xlane.xlu0 %5753
      %v5755 = vadd.f32 %v5602, %v5603
      %5756 = vadd.xlane.f32.xlu0 %v5755
      %v5757 = vpop.xlane.xlu0 %5756
      %v5758 = vadd.f32 %v5604, %v5605
      %5759 = vadd.xlane.f32.xlu0 %v5758
      %v5760 = vpop.xlane.xlu0 %5759
      %v5761 = vadd.f32 %v5606, %v5607
      %5762 = vadd.xlane.f32.xlu0 %v5761
      %v5763 = vpop.xlane.xlu0 %5762
      %v5764 = vadd.f32 %v5608, %v5609
      %5765 = vadd.xlane.f32.xlu0 %v5764
      %v5766 = vpop.xlane.xlu0 %5765
      %v5767 = vadd.f32 %v5610, %v5611
      %5768 = vadd.xlane.f32.xlu0 %v5767
      %v5769 = vpop.xlane.xlu0 %5768
      %v5770 = vadd.f32 %v5612, %v5613
      %5771 = vadd.xlane.f32.xlu0 %v5770
      %v5772 = vpop.xlane.xlu0 %5771
      %v5773 = vadd.f32 %v5614, %v5615
      %5774 = vadd.xlane.f32.xlu0 %v5773
      %v5775 = vpop.xlane.xlu0 %5774
      %v5776 = vadd.f32 %v5616, %v5617
      %5777 = vadd.xlane.f32.xlu0 %v5776
      %v5778 = vpop.xlane.xlu0 %5777
      %v5779 = vadd.f32 %v5618, %v5619
      %5780 = vadd.xlane.f32.xlu0 %v5779
      %v5781 = vpop.xlane.xlu0 %5780
      %v5782 = vadd.f32 %v5620, %v5621
      %5783 = vadd.xlane.f32.xlu0 %v5782
      %v5784 = vpop.xlane.xlu0 %5783
      %v5785 = vadd.f32 %v5622, %v5623
      %5786 = vadd.xlane.f32.xlu0 %v5785
      %v5787 = vpop.xlane.xlu0 %5786
      %v5788 = vadd.f32 %v5624, %v5625
      %5789 = vadd.xlane.f32.xlu0 %v5788
      %v5790 = vpop.xlane.xlu0 %5789
      %v5791 = vadd.f32 %v5626, %v5627
      %5792 = vadd.xlane.f32.xlu0 %v5791
      %v5793 = vpop.xlane.xlu0 %5792
      %v5794 = vadd.f32 %v5628, %v5629
      %5795 = vadd.xlane.f32.xlu0 %v5794
      %v5796 = vpop.xlane.xlu0 %5795
      %v5797 = vadd.f32 %v5630, %v5631
      %5798 = vadd.xlane.f32.xlu0 %v5797
      %v5799 = vpop.xlane.xlu0 %5798
      %v5800 = vadd.f32 %v5632, %v5633
      %5801 = vadd.xlane.f32.xlu0 %v5800
      %v5802 = vpop.xlane.xlu0 %5801
      %v5803 = vadd.f32 %v5634, %v5635
      %5804 = vadd.xlane.f32.xlu0 %v5803
      %v5805 = vpop.xlane.xlu0 %5804
      %v5806 = vadd.f32 %v5636, %v5637
      %5807 = vadd.xlane.f32.xlu0 %v5806
      %v5808 = vpop.xlane.xlu0 %5807
      %v5809 = vadd.f32 %v5638, %v5639
      %5810 = vadd.xlane.f32.xlu0 %v5809
      %v5811 = vpop.xlane.xlu0 %5810
      %v5812 = vadd.f32 %v5640, %v5641
      %5813 = vadd.xlane.f32.xlu0 %v5812
      %v5814 = vpop.xlane.xlu0 %5813
      %v5815 = vadd.f32 %v5642, %v5643
      %5816 = vadd.xlane.f32.xlu0 %v5815
      %v5817 = vpop.xlane.xlu0 %5816
      %v5818 = vadd.f32 %v5644, %v5645
      %5819 = vadd.xlane.f32.xlu0 %v5818
      %v5820 = vpop.xlane.xlu0 %5819
      %v5821 = vadd.f32 %v5646, %v5647
      %5822 = vadd.xlane.f32.xlu0 %v5821
      %v5823 = vpop.xlane.xlu0 %5822
      %v5824 = vadd.f32 %v5648, %v5649
      %5825 = vadd.xlane.f32.xlu0 %v5824
      %v5826 = vpop.xlane.xlu0 %5825
      %v5827 = vadd.f32 %v5650, %v5651
      %5828 = vadd.xlane.f32.xlu0 %v5827
      %v5829 = vpop.xlane.xlu0 %5828
      %v5830 = vadd.f32 %v5652, %v5653
      %5831 = vadd.xlane.f32.xlu0 %v5830
      %v5832 = vpop.xlane.xlu0 %5831
      %v5833 = vadd.f32 %v5654, %v5655
      %5834 = vadd.xlane.f32.xlu0 %v5833
      %v5835 = vpop.xlane.xlu0 %5834
      %v5836 = vadd.f32 %v5656, %v5657
      %5837 = vadd.xlane.f32.xlu0 %v5836
      %v5838 = vpop.xlane.xlu0 %5837
      %v5839 = vadd.f32 %v5658, %v5659
      %5840 = vadd.xlane.f32.xlu0 %v5839
      %v5841 = vpop.xlane.xlu0 %5840
      %v5842 = vadd.f32 %v5660, %v5661
      %5843 = vadd.xlane.f32.xlu0 %v5842
      %v5844 = vpop.xlane.xlu0 %5843
      %v5845 = vadd.f32 %v5662, %v5663
      %5846 = vadd.xlane.f32.xlu0 %v5845
      %v5847 = vpop.xlane.xlu0 %5846
      %v5848 = vadd.f32 %v5664, %v5665
      %5849 = vadd.xlane.f32.xlu0 %v5848
      %v5850 = vpop.xlane.xlu0 %5849
      %v5851 = vadd.f32 %v5666, %v5667
      %5852 = vadd.xlane.f32.xlu0 %v5851
      %v5853 = vpop.xlane.xlu0 %5852
      %v5854 = vadd.f32 %v5668, %v5669
      %5855 = vadd.xlane.f32.xlu0 %v5854
      %v5856 = vpop.xlane.xlu0 %5855
      %v5857 = vadd.f32 %v5670, %v5671
      %5858 = vadd.xlane.f32.xlu0 %v5857
      %v5859 = vpop.xlane.xlu0 %5858
      %v5860 = vadd.f32 %v5672, %v5673
      %5861 = vadd.xlane.f32.xlu0 %v5860
      %v5862 = vpop.xlane.xlu0 %5861
      %v5863 = vadd.f32 %v5674, %v5675
      %5864 = vadd.xlane.f32.xlu0 %v5863
      %v5865 = vpop.xlane.xlu0 %5864
      %v5866 = vadd.f32 %v5676, %v5677
      %5867 = vadd.xlane.f32.xlu0 %v5866
      %v5868 = vpop.xlane.xlu0 %5867
      %v5869 = vadd.f32 %v5678, %v5679
      %5870 = vadd.xlane.f32.xlu0 %v5869
      %v5871 = vpop.xlane.xlu0 %5870
      %v5872 = vld [vmem:[#allocation2] sm:$0x1]
      %v5874 = vlaneseq
      %v5875 = vshrl.u32 %v5874, 7
      %v5876 = vsub.s32 0, %v5875
      %v5877 = vrot.slane %v5872, %v5876
      %v5879 = vadd.f32 %v5682, %v5877
      %v5880 = vadd.f32 %v5685, %v5877
      %v5881 = vadd.f32 %v5688, %v5877
      %v5882 = vadd.f32 %v5691, %v5877
      %v5883 = vadd.f32 %v5694, %v5877
      %v5884 = vadd.f32 %v5697, %v5877
      %v5885 = vadd.f32 %v5700, %v5877
      %v5886 = vadd.f32 %v5703, %v5877
      %v5887 = vadd.f32 %v5706, %v5877
      %v5888 = vadd.f32 %v5709, %v5877
      %v5889 = vadd.f32 %v5712, %v5877
      %v5890 = vadd.f32 %v5715, %v5877
      %v5891 = vadd.f32 %v5718, %v5877
      %v5892 = vadd.f32 %v5721, %v5877
      %v5893 = vadd.f32 %v5724, %v5877
      %v5894 = vadd.f32 %v5727, %v5877
      %v5895 = vadd.f32 %v5730, %v5877
      %v5896 = vadd.f32 %v5733, %v5877
      %v5897 = vadd.f32 %v5736, %v5877
      %v5898 = vadd.f32 %v5739, %v5877
      %v5899 = vadd.f32 %v5742, %v5877
      %v5900 = vadd.f32 %v5745, %v5877
      %v5901 = vadd.f32 %v5748, %v5877
      %v5902 = vadd.f32 %v5751, %v5877
      %v5903 = vadd.f32 %v5754, %v5877
      %v5904 = vadd.f32 %v5757, %v5877
      %v5905 = vadd.f32 %v5760, %v5877
      %v5906 = vadd.f32 %v5763, %v5877
      %v5907 = vadd.f32 %v5766, %v5877
      %v5908 = vadd.f32 %v5769, %v5877
      %v5909 = vadd.f32 %v5772, %v5877
      %v5910 = vadd.f32 %v5775, %v5877
      %v5911 = vadd.f32 %v5778, %v5877
      %v5912 = vadd.f32 %v5781, %v5877
      %v5913 = vadd.f32 %v5784, %v5877
      %v5914 = vadd.f32 %v5787, %v5877
      %v5915 = vadd.f32 %v5790, %v5877
      %v5916 = vadd.f32 %v5793, %v5877
      %v5917 = vadd.f32 %v5796, %v5877
      %v5918 = vadd.f32 %v5799, %v5877
      %v5919 = vadd.f32 %v5802, %v5877
      %v5920 = vadd.f32 %v5805, %v5877
      %v5921 = vadd.f32 %v5808, %v5877
      %v5922 = vadd.f32 %v5811, %v5877
      %v5923 = vadd.f32 %v5814, %v5877
      %v5924 = vadd.f32 %v5817, %v5877
      %v5925 = vadd.f32 %v5820, %v5877
      %v5926 = vadd.f32 %v5823, %v5877
      %v5927 = vadd.f32 %v5826, %v5877
      %v5928 = vadd.f32 %v5829, %v5877
      %v5929 = vadd.f32 %v5832, %v5877
      %v5930 = vadd.f32 %v5835, %v5877
      %v5931 = vadd.f32 %v5838, %v5877
      %v5932 = vadd.f32 %v5841, %v5877
      %v5933 = vadd.f32 %v5844, %v5877
      %v5934 = vadd.f32 %v5847, %v5877
      %v5935 = vadd.f32 %v5850, %v5877
      %v5936 = vadd.f32 %v5853, %v5877
      %v5937 = vadd.f32 %v5856, %v5877
      %v5938 = vadd.f32 %v5859, %v5877
      %v5939 = vadd.f32 %v5862, %v5877
      %v5940 = vadd.f32 %v5865, %v5877
      %v5941 = vadd.f32 %v5868, %v5877
      %v5942 = vadd.f32 %v5871, %v5877
      %vm5943 = vcmask 7168
      %5944 = vst.msk [vmem:[%s285] sm:$0xff] %vm5943, %v5879
      %5945 = vst.msk [vmem:[%s285 + $0x8] sm:$0xff] %vm5943, %v5880
      %5946 = vst.msk [vmem:[%s285 + $0x10] sm:$0xff] %vm5943, %v5881
      %5947 = vst.msk [vmem:[%s285 + $0x18] sm:$0xff] %vm5943, %v5882
      %5948 = vst.msk [vmem:[%s285 + $0x20] sm:$0xff] %vm5943, %v5883
      %5949 = vst.msk [vmem:[%s285 + $0x28] sm:$0xff] %vm5943, %v5884
      %5950 = vst.msk [vmem:[%s285 + $0x30] sm:$0xff] %vm5943, %v5885
      %5951 = vst.msk [vmem:[%s285 + $0x38] sm:$0xff] %vm5943, %v5886
      %5952 = vst.msk [vmem:[%s285 + $0x40] sm:$0xff] %vm5943, %v5887
      %5953 = vst.msk [vmem:[%s285 + $0x48] sm:$0xff] %vm5943, %v5888
      %5954 = vst.msk [vmem:[%s285 + $0x50] sm:$0xff] %vm5943, %v5889
      %5955 = vst.msk [vmem:[%s285 + $0x58] sm:$0xff] %vm5943, %v5890
      %5956 = vst.msk [vmem:[%s285 + $0x60] sm:$0xff] %vm5943, %v5891
      %5957 = vst.msk [vmem:[%s285 + $0x68] sm:$0xff] %vm5943, %v5892
      %5958 = vst.msk [vmem:[%s285 + $0x70] sm:$0xff] %vm5943, %v5893
      %5959 = vst.msk [vmem:[%s285 + $0x78] sm:$0xff] %vm5943, %v5894
      %5960 = vst.msk [vmem:[%s285 + $0x80] sm:$0xff] %vm5943, %v5895
      %5961 = vst.msk [vmem:[%s285 + $0x88] sm:$0xff] %vm5943, %v5896
      %5962 = vst.msk [vmem:[%s285 + $0x90] sm:$0xff] %vm5943, %v5897
      %5963 = vst.msk [vmem:[%s285 + $0x98] sm:$0xff] %vm5943, %v5898
      %5964 = vst.msk [vmem:[%s285 + $0xa0] sm:$0xff] %vm5943, %v5899
      %5965 = vst.msk [vmem:[%s285 + $0xa8] sm:$0xff] %vm5943, %v5900
      %5966 = vst.msk [vmem:[%s285 + $0xb0] sm:$0xff] %vm5943, %v5901
      %5967 = vst.msk [vmem:[%s285 + $0xb8] sm:$0xff] %vm5943, %v5902
      %5968 = vst.msk [vmem:[%s285 + $0xc0] sm:$0xff] %vm5943, %v5903
      %5969 = vst.msk [vmem:[%s285 + $0xc8] sm:$0xff] %vm5943, %v5904
      %5970 = vst.msk [vmem:[%s285 + $0xd0] sm:$0xff] %vm5943, %v5905
      %5971 = vst.msk [vmem:[%s285 + $0xd8] sm:$0xff] %vm5943, %v5906
      %5972 = vst.msk [vmem:[%s285 + $0xe0] sm:$0xff] %vm5943, %v5907
      %5973 = vst.msk [vmem:[%s285 + $0xe8] sm:$0xff] %vm5943, %v5908
      %5974 = vst.msk [vmem:[%s285 + $0xf0] sm:$0xff] %vm5943, %v5909
      %5975 = vst.msk [vmem:[%s285 + $0xf8] sm:$0xff] %vm5943, %v5910
      %5976 = vst.msk [vmem:[%s285 + $0x100] sm:$0xff] %vm5943, %v5911
      %5977 = vst.msk [vmem:[%s285 + $0x108] sm:$0xff] %vm5943, %v5912
      %5978 = vst.msk [vmem:[%s285 + $0x110] sm:$0xff] %vm5943, %v5913
      %5979 = vst.msk [vmem:[%s285 + $0x118] sm:$0xff] %vm5943, %v5914
      %5980 = vst.msk [vmem:[%s285 + $0x120] sm:$0xff] %vm5943, %v5915
      %5981 = vst.msk [vmem:[%s285 + $0x128] sm:$0xff] %vm5943, %v5916
      %5982 = vst.msk [vmem:[%s285 + $0x130] sm:$0xff] %vm5943, %v5917
      %5983 = vst.msk [vmem:[%s285 + $0x138] sm:$0xff] %vm5943, %v5918
      %5984 = vst.msk [vmem:[%s285 + $0x140] sm:$0xff] %vm5943, %v5919
      %5985 = vst.msk [vmem:[%s285 + $0x148] sm:$0xff] %vm5943, %v5920
      %5986 = vst.msk [vmem:[%s285 + $0x150] sm:$0xff] %vm5943, %v5921
      %5987 = vst.msk [vmem:[%s285 + $0x158] sm:$0xff] %vm5943, %v5922
      %5988 = vst.msk [vmem:[%s285 + $0x160] sm:$0xff] %vm5943, %v5923
      %5989 = vst.msk [vmem:[%s285 + $0x168] sm:$0xff] %vm5943, %v5924
      %5990 = vst.msk [vmem:[%s285 + $0x170] sm:$0xff] %vm5943, %v5925
      %5991 = vst.msk [vmem:[%s285 + $0x178] sm:$0xff] %vm5943, %v5926
      %5992 = vst.msk [vmem:[%s285 + $0x180] sm:$0xff] %vm5943, %v5927
      %5993 = vst.msk [vmem:[%s285 + $0x188] sm:$0xff] %vm5943, %v5928
      %5994 = vst.msk [vmem:[%s285 + $0x190] sm:$0xff] %vm5943, %v5929
      %5995 = vst.msk [vmem:[%s285 + $0x198] sm:$0xff] %vm5943, %v5930
      %5996 = vst.msk [vmem:[%s285 + $0x1a0] sm:$0xff] %vm5943, %v5931
      %5997 = vst.msk [vmem:[%s285 + $0x1a8] sm:$0xff] %vm5943, %v5932
      %5998 = vst.msk [vmem:[%s285 + $0x1b0] sm:$0xff] %vm5943, %v5933
      %5999 = vst.msk [vmem:[%s285 + $0x1b8] sm:$0xff] %vm5943, %v5934
      %6000 = vst.msk [vmem:[%s285 + $0x1c0] sm:$0xff] %vm5943, %v5935
      %6001 = vst.msk [vmem:[%s285 + $0x1c8] sm:$0xff] %vm5943, %v5936
      %6002 = vst.msk [vmem:[%s285 + $0x1d0] sm:$0xff] %vm5943, %v5937
      %6003 = vst.msk [vmem:[%s285 + $0x1d8] sm:$0xff] %vm5943, %v5938
      %6004 = vst.msk [vmem:[%s285 + $0x1e0] sm:$0xff] %vm5943, %v5939
      %6005 = vst.msk [vmem:[%s285 + $0x1e8] sm:$0xff] %vm5943, %v5940
      %6006 = vst.msk [vmem:[%s285 + $0x1f0] sm:$0xff] %vm5943, %v5941
      %6007 = vst.msk [vmem:[%s285 + $0x1f8] sm:$0xff] %vm5943, %v5942
      %s6008 = smul.u32 64, %s20
      %p6009 = scmp.lt.s32.totalorder %s6008, 127
      %s6010 = scalar_select %p6009, %s6008, 127
      %s6011 = smul.addr %s6010, 8
      %s6012 = scalar_lea.vmem %s7, %s6011
      // Predicated region
      $region49: #{tpu_custom_call.1} parent=47 // pred_check
        %p6013 = pneg %p190
      $region50: #{tpu_custom_call.1} parent=47 // pred_check_branch
        %6015 = sbr.rel (%p6013) target = $region52
      $region51: #{tpu_custom_call.1} parent=47 // pred_region
        %s6016 = smul.u32 64, %s20
      $region52: #{tpu_custom_call.1} parent=47 // pred_fallthru
        _
    $region48: #{tpu_custom_call.1} parent=5 // pred_fallthru
      _
    %p6017 = scmp.le.s32.totalorder 2, %s15
    // Predicated region
    $region53: #{tpu_custom_call.1} parent=5 // pred_check
      %p6018 = pneg %p6017
    $region54: #{tpu_custom_call.1} parent=5 // pred_check_branch
      %6020 = sbr.rel (%p6018) target = $region56
    $region55: #{tpu_custom_call.1} parent=5 // pred_region
      %s6021 = ssub.s32 %s15, 2
      // Predicated region
      $region57: #{tpu_custom_call.1} parent=55 // pred_check
        %p6022 = pneg %p196
      $region58: #{tpu_custom_call.1} parent=55 // pred_check_branch
        %6024 = sbr.rel (%p6022) target = $region60
      $region59: #{tpu_custom_call.1} parent=55 // pred_region
        %s6025 = smul.u32 64, %s21
        %p6026 = scmp.lt.s32.totalorder %s6025, 127
        %s6027 = scalar_select %p6026, %s6025, 127
        %s6028 = smul.addr %s6027, 8
        %s6029 = scalar_lea.vmem %s7, %s6028
      $region60: #{tpu_custom_call.1} parent=55 // pred_fallthru
        _
    $region56: #{tpu_custom_call.1} parent=5 // pred_fallthru
      _
  $region6: #{tpu_custom_call.1} parent=0 // loop_footer
    %s19 = sadd.s32 1, %s15
  $region7: #{tpu_custom_call.1} parent=0 // loop_footer_branch
    %14 = sbr.rel target = $region3
  $region8: #{tpu_custom_call.1} parent=0 // loop_exit
    _

</llo_original>
